<compile_context>
chip_gen: v5e
topology: v5e:2x2
jax: 0.10.0
libtpu: 0.0.40
codegen_flags: <defaults>
</compile_context>

<pallas_src>
import numpy as np
import jax
import jax.numpy as jnp
from jax.experimental import pallas as pl
from jax.experimental.pallas import tpu as pltpu


def resblock_kernel(x_ref, m1_ref, b1_ref, m2_ref, b2_ref,
                    w1_ref, w2_ref, alpha_ref, o_ref):
    x = x_ref[0]                        # (CD, HW) f32, one batch element
    a1 = alpha_ref[0, 0]                # PReLU1 slope (scalar, SMEM)
    a2 = alpha_ref[0, 1]                # PReLU2 slope (scalar, SMEM)

    # conv1: depth-only 3x1x1 Conv3d as banded LEFT matmul (bf16 in, f32 acc),
    # + bias (broadcast over HW lanes), + PReLU1 (f32)
    h1 = jnp.dot(m1_ref[...], x.astype(jnp.bfloat16),
                 preferred_element_type=jnp.float32) + b1_ref[...]
    h1 = jnp.where(h1 > 0.0, h1, a1 * h1)

    # conv2: same structure, + bias (f32)
    h2 = jnp.dot(m2_ref[...], h1.astype(jnp.bfloat16),
                 preferred_element_type=jnp.float32) + b2_ref[...]

    # CBAM spectral gate (matches the module: fc(avg_pool + max_pool)):
    # pool over the spatial (lane) axis -> (CD, 1) column, then
    # Linear(256->16, no bias) -> ReLU -> Linear(16->256, no bias) -> Sigmoid
    s = (jnp.mean(h2, axis=1, keepdims=True)
         + jnp.max(h2, axis=1, keepdims=True))                               # (CD, 1)
    hid = jnp.maximum(
        jnp.dot(w1_ref[...], s, preferred_element_type=jnp.float32), 0.0)   # (R, 1)
    gate = jax.nn.sigmoid(
        jnp.dot(w2_ref[...], hid, preferred_element_type=jnp.float32))      # (CD, 1)

    out = h2 * gate + x                 # channel/depth-wise scale + residual add
    o_ref[0] = jnp.where(out > 0.0, out, a2 * out)   # PReLU2


def conv_depth_as_matrix(w_np, D):
    """Lower a (Cout, Cin, 3) depth-only Conv3d (padding=1) to a banded matrix M with
    out_flat = M @ x_flat, flat index = c*D + d (matches x.view(b, c*d, h, w))."""
    Cout, Cin, K = w_np.shape
    M = np.zeros((Cout * D, Cin * D), np.float32)
    for o in range(Cout):
        for i in range(Cin):
            for k in range(K):
                for d in range(D):
                    dp = d + k - 1          # cross-correlation, zero pad at edges
                    if 0 <= dp < D:
                        M[o * D + d, i * D + dp] = w_np[o, i, k]
    return M


def resblock3d_spectral(x, w1c, b1c, w2c, b2c, W1, W2, a1, a2):
    B, C, D, H, W = x.shape
    CD, HW = C * D, H * W
    R = W1.shape[0]

    # glue: conv weights -> banded matrices (bf16 for the MXU), biases -> columns
    m1 = jnp.asarray(conv_depth_as_matrix(np.asarray(w1c), D), dtype=jnp.bfloat16)
    m2 = jnp.asarray(conv_depth_as_matrix(np.asarray(w2c), D), dtype=jnp.bfloat16)
    b1col = jnp.repeat(jnp.asarray(b1c, jnp.float32), D).reshape(CD, 1)
    b2col = jnp.repeat(jnp.asarray(b2c, jnp.float32), D).reshape(CD, 1)
    w1 = jnp.asarray(W1, jnp.float32)                        # (R, CD), used directly
    w2 = jnp.asarray(W2, jnp.float32)                        # (CD, R), used directly
    alphas = jnp.array([[a1, a2]], dtype=jnp.float32)        # (1, 2) SMEM scalars

    x_flat = x.reshape(B, CD, HW)                            # free reshape, no transpose

    # Advisory cost hint: two (CD,CD)x(CD,HW) matmuls per batch + tiny MLP.
    flops = 2 * 2 * B * CD * CD * HW + 2 * 2 * B * CD * R
    transcendentals = B * CD                                 # sigmoid exps
    bytes_accessed = (2 * B * CD * HW * 4                    # x in + out (f32)
                      + 2 * CD * CD * 2                      # bf16 conv matrices
                      + 2 * CD * 4 + 2 * CD * R * 4 + 8)     # biases + MLP + alphas

    out_flat = pl.pallas_call(
        resblock_kernel,
        out_shape=jax.ShapeDtypeStruct((B, CD, HW), jnp.float32),
        grid_spec=pltpu.PrefetchScalarGridSpec(
            num_scalar_prefetch=0,
            grid=(B,),
            in_specs=[
                pl.BlockSpec((1, CD, HW), lambda b: (b, 0, 0)),   # x (per batch)
                pl.BlockSpec((CD, CD), lambda b: (0, 0)),         # conv1 banded matrix (bf16)
                pl.BlockSpec((CD, 1), lambda b: (0, 0)),          # conv1 bias column
                pl.BlockSpec((CD, CD), lambda b: (0, 0)),         # conv2 banded matrix (bf16)
                pl.BlockSpec((CD, 1), lambda b: (0, 0)),          # conv2 bias column
                pl.BlockSpec((R, CD), lambda b: (0, 0)),          # fc W1  (256 -> 16)
                pl.BlockSpec((CD, R), lambda b: (0, 0)),          # fc W2  (16 -> 256)
                pl.BlockSpec(memory_space=pltpu.MemorySpace.SMEM),  # PReLU alphas
            ],
            out_specs=pl.BlockSpec((1, CD, HW), lambda b: (b, 0, 0)),
        ),
        compiler_params=pltpu.CompilerParams(
            dimension_semantics=("parallel",)),
        cost_estimate=pl.CostEstimate(flops=flops,
                                      transcendentals=transcendentals,
                                      bytes_accessed=bytes_accessed),
    )(x_flat, m1, b1col, m2, b2col, w1, w2, alphas)

    return out_flat.reshape(B, C, D, H, W)                   # free reshape


def ref_forward(x, w1c, b1c, w2c, b2c, W1, W2, a1, a2):
    """Pure-JAX f32 reference matching the PyTorch forward exactly."""
    B, C, D, H, W = x.shape

    def conv_depth(z, wgt, bias):
        zp = jnp.pad(z, ((0, 0), (0, 0), (1, 1), (0, 0), (0, 0)))
        out = sum(
            jnp.einsum('oi,bidhw->bodhw', wgt[:, :, k], zp[:, :, k:k + D],
                       precision='highest')
            for k in range(3))
        return out + bias[None, :, None, None, None]

    out = conv_depth(x, w1c, b1c)
    out = jnp.where(out > 0, out, a1 * out)            # PReLU1
    out = conv_depth(out, w2c, b2c)
    of = out.reshape(B, C * D, H * W)
    s = of.mean(-1) + of.max(-1)                        # (B, CD): avg+max summed BEFORE fc (as in module)
    hid = jnp.maximum(jnp.dot(s, W1.T, precision='highest'), 0.0)
    gate = jax.nn.sigmoid(jnp.dot(hid, W2.T, precision='highest'))
    out = out * gate.reshape(B, C, D, 1, 1)
    out = out + x                                       # residual
    return jnp.where(out > 0, out, a2 * out)            # PReLU2


if __name__ == "__main__":
    # C*D must be 256 because the module hard-codes CBAMLayer3DSpectral(256, 16).
    B, C, D, H, W = 2, 8, 32, 16, 16

    x = jax.random.normal(jax.random.PRNGKey(0), (B, C, D, H, W), jnp.float32)

    # Deterministic synthetic parameters (shapes from the module's __init__).
    pk = jax.random.PRNGKey(1)
    k1, k2, k3, k4, k5, k6 = jax.random.split(pk, 6)
    w1c = 0.1 * jax.random.normal(k1, (C, C, 3), jnp.float32)    # Conv3d(8,8,(3,1,1)) weight (trailing 1x1 squeezed)
    b1c = 0.1 * jax.random.normal(k2, (C,), jnp.float32)
    w2c = 0.1 * jax.random.normal(k3, (C, C, 3), jnp.float32)
    b2c = 0.1 * jax.random.normal(k4, (C,), jnp.float32)
    W1 = 0.05 * jax.random.normal(k5, (16, C * D), jnp.float32)  # Linear(256 -> 16, bias=False)
    W2 = 0.05 * jax.random.normal(k6, (C * D, 16), jnp.float32)  # Linear(16 -> 256, bias=False)
    a1 = 0.25                                                    # PReLU default init
    a2 = 0.25

    out = resblock3d_spectral(x, w1c, b1c, w2c, b2c, W1, W2, a1, a2)
    out = jax.block_until_ready(out)

    ref = ref_forward(x, w1c, b1c, w2c, b2c, W1, W2, a1, a2)
    assert out.shape == ref.shape == (B, C, D, H, W)
    # Tolerance loosened vs. the all-f32 version: the conv matmuls now feed the MXU
    # bf16 inputs (f32 accumulation); everything else remains f32.
    np.testing.assert_allclose(np.asarray(out), np.asarray(ref), rtol=5e-2, atol=5e-2)
    print("KERNEL_OK")
</pallas_src>

<mosaic_0001>
module attributes {stable_mosaic.version = 11 : i64} {
  func.func @resblock_kernel(%arg0: i32, %arg1: memref<1x256x256xf32, #tpu.memory_space<vmem>>, %arg2: memref<256x256xbf16, #tpu.memory_space<vmem>>, %arg3: memref<256x1xf32, #tpu.memory_space<vmem>>, %arg4: memref<256x256xbf16, #tpu.memory_space<vmem>>, %arg5: memref<256x1xf32, #tpu.memory_space<vmem>>, %arg6: memref<16x256xf32, #tpu.memory_space<vmem>>, %arg7: memref<256x16xf32, #tpu.memory_space<vmem>>, %arg8: memref<1x2xf32, #tpu.memory_space<smem>>, %arg9: memref<1x256x256xf32, #tpu.memory_space<vmem>>) attributes {dimension_semantics = [#tpu.dimension_semantics<parallel>], iteration_bounds = array<i64: 2>, scalar_prefetch = 0 : i64, scratch_operands = 0 : i64, tpu.core_type = #tpu.core_type<tc>, window_params = [{transform_indices = @transform_0, window_bounds = array<i64: 1, 256, 256>}, {pipeline_mode = #tpu.pipeline_mode<synchronous>, transform_indices = @transform_1, window_bounds = array<i64: 256, 256>}, {pipeline_mode = #tpu.pipeline_mode<synchronous>, transform_indices = @transform_2, window_bounds = array<i64: 256, 1>}, {pipeline_mode = #tpu.pipeline_mode<synchronous>, transform_indices = @transform_3, window_bounds = array<i64: 256, 256>}, {pipeline_mode = #tpu.pipeline_mode<synchronous>, transform_indices = @transform_4, window_bounds = array<i64: 256, 1>}, {pipeline_mode = #tpu.pipeline_mode<synchronous>, transform_indices = @transform_5, window_bounds = array<i64: 16, 256>}, {pipeline_mode = #tpu.pipeline_mode<synchronous>, transform_indices = @transform_6, window_bounds = array<i64: 256, 16>}, {transform_indices = @transform_7, window_bounds = array<i64: 1, 2>}, {transform_indices = @transform_8, window_bounds = array<i64: 1, 256, 256>}]} {
    %c0 = arith.constant 0 : index
    %c0_0 = arith.constant 0 : index
    %c0_1 = arith.constant 0 : index
    %0 = vector.load %arg1[%c0, %c0_0, %c0_1] : memref<1x256x256xf32, #tpu.memory_space<vmem>>, vector<1x256x256xf32>
    %1 = vector.shape_cast %0 : vector<1x256x256xf32> to vector<256x256xf32>
    %c0_2 = arith.constant 0 : index
    %c0_3 = arith.constant 0 : index
    %2 = memref.load %arg8[%c0_2, %c0_3] : memref<1x2xf32, #tpu.memory_space<smem>>
    %c0_4 = arith.constant 0 : index
    %c1 = arith.constant 1 : index
    %3 = memref.load %arg8[%c0_4, %c1] : memref<1x2xf32, #tpu.memory_space<smem>>
    %c0_5 = arith.constant 0 : index
    %c0_6 = arith.constant 0 : index
    %4 = vector.load %arg2[%c0_5, %c0_6] : memref<256x256xbf16, #tpu.memory_space<vmem>>, vector<256x256xbf16>
    %5 = arith.truncf %1 : vector<256x256xf32> to vector<256x256xbf16>
    %cst = arith.constant dense<0.000000e+00> : vector<256x256xf32>
    %6 = tpu.matmul %4, %5, %cst {dimension_numbers = #tpu.dot_dimension_numbers<[1], [0], [0], [1], [0, 0, 1, 1], [], []>} : vector<256x256xbf16>, vector<256x256xbf16>, vector<256x256xf32> -> vector<256x256xf32>
    %c0_7 = arith.constant 0 : index
    %c0_8 = arith.constant 0 : index
    %7 = vector.load %arg3[%c0_7, %c0_8] : memref<256x1xf32, #tpu.memory_space<vmem>>, vector<256x1xf32>
    %8 = vector.broadcast %7 : vector<256x1xf32> to vector<256x256xf32>
    %9 = arith.addf %6, %8 : vector<256x256xf32>
    %cst_9 = arith.constant 0.000000e+00 : f32
    %10 = vector.broadcast %cst_9 : f32 to vector<256x256xf32>
    %11 = arith.cmpf ogt, %9, %10 : vector<256x256xf32>
    %12 = vector.broadcast %2 : f32 to vector<256x256xf32>
    %13 = arith.mulf %12, %9 : vector<256x256xf32>
    %14 = arith.select %11, %9, %13 : vector<256x256xi1>, vector<256x256xf32>
    %c0_10 = arith.constant 0 : index
    %c0_11 = arith.constant 0 : index
    %15 = vector.load %arg4[%c0_10, %c0_11] : memref<256x256xbf16, #tpu.memory_space<vmem>>, vector<256x256xbf16>
    %16 = arith.truncf %14 : vector<256x256xf32> to vector<256x256xbf16>
    %cst_12 = arith.constant dense<0.000000e+00> : vector<256x256xf32>
    %17 = tpu.matmul %15, %16, %cst_12 {dimension_numbers = #tpu.dot_dimension_numbers<[1], [0], [0], [1], [0, 0, 1, 1], [], []>} : vector<256x256xbf16>, vector<256x256xbf16>, vector<256x256xf32> -> vector<256x256xf32>
    %c0_13 = arith.constant 0 : index
    %c0_14 = arith.constant 0 : index
    %18 = vector.load %arg5[%c0_13, %c0_14] : memref<256x1xf32, #tpu.memory_space<vmem>>, vector<256x1xf32>
    %19 = vector.broadcast %18 : vector<256x1xf32> to vector<256x256xf32>
    %20 = arith.addf %17, %19 : vector<256x256xf32>
    %cst_15 = arith.constant dense<0.000000e+00> : vector<256xf32>
    %21 = vector.multi_reduction <add>, %20, %cst_15 [1] : vector<256x256xf32> to vector<256xf32>
    %22 = vector.shape_cast %21 : vector<256xf32> to vector<256x1xf32>
    %cst_16 = arith.constant 2.560000e+02 : f32
    %23 = vector.broadcast %cst_16 : f32 to vector<256x1xf32>
    %24 = arith.divf %22, %23 : vector<256x1xf32>
    %cst_17 = arith.constant dense<0xFF800000> : vector<256xf32>
    %25 = vector.multi_reduction <maximumf>, %20, %cst_17 [1] : vector<256x256xf32> to vector<256xf32>
    %26 = vector.shape_cast %25 : vector<256xf32> to vector<256x1xf32>
    %27 = arith.addf %24, %26 : vector<256x1xf32>
    %c0_18 = arith.constant 0 : index
    %c0_19 = arith.constant 0 : index
    %28 = vector.load %arg6[%c0_18, %c0_19] : memref<16x256xf32, #tpu.memory_space<vmem>>, vector<16x256xf32>
    %cst_20 = arith.constant dense<0.000000e+00> : vector<16x1xf32>
    %29 = tpu.matmul %28, %27, %cst_20 {dimension_numbers = #tpu.dot_dimension_numbers<[1], [0], [0], [1], [0, 0, 1, 1], [], []>} : vector<16x256xf32>, vector<256x1xf32>, vector<16x1xf32> -> vector<16x1xf32>
    %cst_21 = arith.constant 0.000000e+00 : f32
    %30 = vector.broadcast %cst_21 : f32 to vector<16x1xf32>
    %31 = arith.maximumf %29, %30 : vector<16x1xf32>
    %c0_22 = arith.constant 0 : index
    %c0_23 = arith.constant 0 : index
    %32 = vector.load %arg7[%c0_22, %c0_23] : memref<256x16xf32, #tpu.memory_space<vmem>>, vector<256x16xf32>
    %cst_24 = arith.constant dense<0.000000e+00> : vector<256x1xf32>
    %33 = tpu.matmul %32, %31, %cst_24 {dimension_numbers = #tpu.dot_dimension_numbers<[1], [0], [0], [1], [0, 0, 1, 1], [], []>} : vector<256x16xf32>, vector<16x1xf32>, vector<256x1xf32> -> vector<256x1xf32>
    %34 = arith.negf %33 : vector<256x1xf32>
    %35 = math.exp %34 : vector<256x1xf32>
    %cst_25 = arith.constant 1.000000e+00 : f32
    %36 = vector.broadcast %cst_25 : f32 to vector<256x1xf32>
    %37 = arith.addf %36, %35 : vector<256x1xf32>
    %38 = arith.divf %36, %37 : vector<256x1xf32>
    %39 = vector.broadcast %38 : vector<256x1xf32> to vector<256x256xf32>
    %40 = arith.mulf %20, %39 : vector<256x256xf32>
    %41 = arith.addf %40, %1 : vector<256x256xf32>
    %cst_26 = arith.constant 0.000000e+00 : f32
    %42 = vector.broadcast %cst_26 : f32 to vector<256x256xf32>
    %43 = arith.cmpf ogt, %41, %42 : vector<256x256xf32>
    %44 = vector.broadcast %3 : f32 to vector<256x256xf32>
    %45 = arith.mulf %44, %41 : vector<256x256xf32>
    %46 = arith.select %43, %41, %45 : vector<256x256xi1>, vector<256x256xf32>
    %c0_27 = arith.constant 0 : index
    %c0_28 = arith.constant 0 : index
    %c0_29 = arith.constant 0 : index
    %47 = vector.load %arg9[%c0_27, %c0_28, %c0_29] : memref<1x256x256xf32, #tpu.memory_space<vmem>>, vector<1x256x256xf32>
    %48 = vector.shape_cast %47 : vector<1x256x256xf32> to vector<256x256xf32>
    %49 = vector.shape_cast %46 : vector<256x256xf32> to vector<1x256x256xf32>
    tpu.vector_store %arg9[%c0_27, %c0_28, %c0_29], %49 {strides = array<i32>} : memref<1x256x256xf32, #tpu.memory_space<vmem>>, vector<1x256x256xf32>,
    return
  }
  func.func @transform_0(%arg0: i32) -> (i32, i32, i32) {
    %c0_i32 = arith.constant 0 : i32
    %c0_i32_0 = arith.constant 0 : i32
    %c0_i32_1 = arith.constant 0 : i32
    return %arg0, %c0_i32, %c0_i32_0 : i32, i32, i32
  }
  func.func @transform_1(%arg0: i32) -> (i32, i32) {
    %c0_i32 = arith.constant 0 : i32
    %c0_i32_0 = arith.constant 0 : i32
    %c0_i32_1 = arith.constant 0 : i32
    return %c0_i32, %c0_i32_0 : i32, i32
  }
  func.func @transform_2(%arg0: i32) -> (i32, i32) {
    %c0_i32 = arith.constant 0 : i32
    %c0_i32_0 = arith.constant 0 : i32
    %c0_i32_1 = arith.constant 0 : i32
    return %c0_i32, %c0_i32_0 : i32, i32
  }
  func.func @transform_3(%arg0: i32) -> (i32, i32) {
    %c0_i32 = arith.constant 0 : i32
    %c0_i32_0 = arith.constant 0 : i32
    %c0_i32_1 = arith.constant 0 : i32
    return %c0_i32, %c0_i32_0 : i32, i32
  }
  func.func @transform_4(%arg0: i32) -> (i32, i32) {
    %c0_i32 = arith.constant 0 : i32
    %c0_i32_0 = arith.constant 0 : i32
    %c0_i32_1 = arith.constant 0 : i32
    return %c0_i32, %c0_i32_0 : i32, i32
  }
  func.func @transform_5(%arg0: i32) -> (i32, i32) {
    %c0_i32 = arith.constant 0 : i32
    %c0_i32_0 = arith.constant 0 : i32
    %c0_i32_1 = arith.constant 0 : i32
    return %c0_i32, %c0_i32_0 : i32, i32
  }
  func.func @transform_6(%arg0: i32) -> (i32, i32) {
    %c0_i32 = arith.constant 0 : i32
    %c0_i32_0 = arith.constant 0 : i32
    %c0_i32_1 = arith.constant 0 : i32
    return %c0_i32, %c0_i32_0 : i32, i32
  }
  func.func @transform_7(%arg0: i32) -> (i32, i32) {
    %c0_i32 = arith.constant 0 : i32
    %c0_i32_0 = arith.constant 0 : i32
    %c0_i32_1 = arith.constant 0 : i32
    return %c0_i32, %c0_i32_0 : i32, i32
  }
  func.func @transform_8(%arg0: i32) -> (i32, i32, i32) {
    %c0_i32 = arith.constant 0 : i32
    %c0_i32_0 = arith.constant 0 : i32
    %c0_i32_1 = arith.constant 0 : i32
    return %arg0, %c0_i32, %c0_i32_0 : i32, i32, i32
  }
}

</mosaic_0001>

<llo_original>
// kernel: tpu_custom_call.1
$region0: #{tpu_custom_call.1}
  #allocation0 [shape = 'u32[]', space=smem, size = 0x4, offset = 0x4, fixed_abs, tag = 'smem constant byte address 0x4 - core index']
  #allocation1 [shape = 'u32[72,128]{1,0:T(1,128)}', space=vmem, size = 0x9000, scoped, tag = 'internal scratch']
  %s0 = inlined_call_operand.hbm [shape: f32[2,256,256], index: 0, kind: input, shape index: {}]
  %s1 = inlined_call_operand.vmem [shape: bf16[256,256], index: 1, kind: input, shape index: {}]
  %s2 = inlined_call_operand.vmem [shape: f32[256,1], index: 2, kind: input, shape index: {}]
  %s3 = inlined_call_operand.vmem [shape: bf16[256,256], index: 3, kind: input, shape index: {}]
  %s4 = inlined_call_operand.vmem [shape: f32[256,1], index: 4, kind: input, shape index: {}]
  %s5 = inlined_call_operand.vmem [shape: f32[16,256], index: 5, kind: input, shape index: {}]
  %s6 = inlined_call_operand.vmem [shape: f32[256,16], index: 6, kind: input, shape index: {}]
  %s7 = inlined_call_operand.vmem [shape: f32[1,2], index: 7, kind: input, shape index: {}]
  %s8 = inlined_call_operand.hbm [shape: f32[2,256,256], index: 8, kind: output, shape index: {}]
  %s9 = sld [smem:[#allocation0]]
  $region73: #{tpu_custom_call.1} parent=0
    _
  %s11 = ssub.s32 1, %s9
  %s12 = scalar_select 0, %s11, %s9
  $region1: #{tpu_custom_call.1} parent=0
    #allocation2 [shape = 'u8[524288]{0}', space=vmem, size = 0x80000, scoped, tag = 'input window, operand 0']
    #allocation3 [shape = 's32[2]{0}', space=sflag, size = 0x8, scoped, tag = 'scoped memory for tpu_custom_call.1']
    #allocation4 [shape = 's32[2]{0}', space=sflag, size = 0x8, scoped, tag = 'scoped memory for tpu_custom_call.1']
    #allocation5 [shape = 's32[2]{0}', space=sflag, size = 0x8, scoped, tag = 'scoped memory for tpu_custom_call.1']
    #allocation6 [shape = 'u8[512]{0}', space=smem, size = 0x200, scoped, tag = 'input window, operand 7, single buffered']
    #allocation7 [shape = 'u8[524288]{0}', space=vmem, size = 0x80000, scoped, tag = 'output window, operand 0']
    %13 = vsyncpa [#allocation3], 0
    %s14 = scalar_lea.sflag [#allocation3], 1
    %15 = vsyncpa %s14, 0
    %16 = vsyncpa [#allocation5], 0
    %17 = vsyncpa [#allocation4], 0
    %s18 = scalar_lea.sflag [#allocation4], 1
    %19 = vsyncpa %s18, 0
    loop: start=0, step=1, limit=4
    $region2: #{tpu_custom_call.1} parent=1 // loop_pre_header
      _
    $region3: #{tpu_custom_call.1} parent=1 // loop_header
      %s21 = sphi 0, %s25
      %p22 = scmp.ge.s32.totalorder %s21, 4
      %s31 = sphi 0, %s33
      %s34 = sphi 0, %s31
      %s35 = sphi 0, %s34
      %s51 = sphi 0, %s35
      %s55 = sphi 0, %s55
      %s57 = sphi 0, %s55
      %s58 = sphi 0, %s57
      %s72 = sphi 0, %s58
      %s76 = sphi 0, %s76
      %s78 = sphi 0, %s76
      %s79 = sphi 0, %s78
      %s93 = sphi 0, %s79
      %s97 = sphi 0, %s97
      %s99 = sphi 0, %s97
      %s100 = sphi 0, %s99
      %s114 = sphi 0, %s100
      %s118 = sphi 0, %s118
      %s120 = sphi 0, %s118
      %s121 = sphi 0, %s120
      %s135 = sphi 0, %s121
      %s139 = sphi 0, %s139
      %s141 = sphi 0, %s139
      %s142 = sphi 0, %s141
      %s156 = sphi 0, %s142
      %s160 = sphi 0, %s160
      %s162 = sphi 0, %s160
      %s163 = sphi 0, %s162
      %s177 = sphi 0, %s163
      %s181 = sphi 0, %s181
      %s183 = sphi 0, %s181
      %s184 = sphi 0, %s183
      %s198 = sphi 0, %s184
      %s204 = sphi 0, %s206
      %s207 = sphi 0, %s204
      %s208 = sphi 0, %s207
      %s224 = sphi 0, %s208
    $region4: #{tpu_custom_call.1} parent=1 // loop_header_branch
      %24 = sbr.rel (%p22) target = $region8
    $region5: #{tpu_custom_call.1} parent=1 // loop_body
      %s26 = ssub.s32 %s21, 1
      %s27 = ssub.s32 %s21, 2
      %s28 = sadd.s32 %s21, 1
      %s29 = ssub.s32 %s21, %s28
      %p30 = scmp.eq.s32.totalorder %s29, 0
      %s32 = sadd.s32 %s31, 1
      %s33 = scalar_select %p30, %s31, %s32
      %p36 = pneg %p30
      %p37 = scmp.eq.s32.totalorder %s21, 1
      %p38 = por %p36, %p37
      %p39 = scmp.ne.s32.totalorder %s31, %s34
      %p40 = scmp.eq.s32.totalorder %s21, 0
      %p41 = por %p39, %p40
      %p42 = scmp.ne.s32.totalorder %s31, %s34
      %p43 = scmp.eq.s32.totalorder %s26, 1
      %p44 = por %p42, %p43
      %p45 = scmp.ne.s32.totalorder %s34, %s35
      %p46 = scmp.eq.s32.totalorder %s26, 0
      %p47 = por %p45, %p46
      %p48 = scmp.ne.s32.totalorder %s34, %s35
      %p49 = scmp.eq.s32.totalorder %s27, 1
      %p50 = por %p48, %p49
      %p52 = scmp.ne.s32.totalorder %s35, %s51
      %p53 = scmp.eq.s32.totalorder %s27, 0
      %p54 = por %p52, %p53
      %s56 = sadd.s32 %s55, 1
      %p59 = scmp.eq.s32.totalorder %s21, 1
      %p60 = scmp.ne.s32.totalorder %s55, %s57
      %p61 = scmp.eq.s32.totalorder %s21, 0
      %p62 = por %p60, %p61
      %p63 = scmp.ne.s32.totalorder %s55, %s57
      %p64 = scmp.eq.s32.totalorder %s26, 1
      %p65 = por %p63, %p64
      %p66 = scmp.ne.s32.totalorder %s57, %s58
      %p67 = scmp.eq.s32.totalorder %s26, 0
      %p68 = por %p66, %p67
      %p69 = scmp.ne.s32.totalorder %s57, %s58
      %p70 = scmp.eq.s32.totalorder %s27, 1
      %p71 = por %p69, %p70
      %p73 = scmp.ne.s32.totalorder %s58, %s72
      %p74 = scmp.eq.s32.totalorder %s27, 0
      %p75 = por %p73, %p74
      %s77 = sadd.s32 %s76, 1
      %p80 = scmp.eq.s32.totalorder %s21, 1
      %p81 = scmp.ne.s32.totalorder %s76, %s78
      %p82 = scmp.eq.s32.totalorder %s21, 0
      %p83 = por %p81, %p82
      %p84 = scmp.ne.s32.totalorder %s76, %s78
      %p85 = scmp.eq.s32.totalorder %s26, 1
      %p86 = por %p84, %p85
      %p87 = scmp.ne.s32.totalorder %s78, %s79
      %p88 = scmp.eq.s32.totalorder %s26, 0
      %p89 = por %p87, %p88
      %p90 = scmp.ne.s32.totalorder %s78, %s79
      %p91 = scmp.eq.s32.totalorder %s27, 1
      %p92 = por %p90, %p91
      %p94 = scmp.ne.s32.totalorder %s79, %s93
      %p95 = scmp.eq.s32.totalorder %s27, 0
      %p96 = por %p94, %p95
      %s98 = sadd.s32 %s97, 1
      %p101 = scmp.eq.s32.totalorder %s21, 1
      %p102 = scmp.ne.s32.totalorder %s97, %s99
      %p103 = scmp.eq.s32.totalorder %s21, 0
      %p104 = por %p102, %p103
      %p105 = scmp.ne.s32.totalorder %s97, %s99
      %p106 = scmp.eq.s32.totalorder %s26, 1
      %p107 = por %p105, %p106
      %p108 = scmp.ne.s32.totalorder %s99, %s100
      %p109 = scmp.eq.s32.totalorder %s26, 0
      %p110 = por %p108, %p109
      %p111 = scmp.ne.s32.totalorder %s99, %s100
      %p112 = scmp.eq.s32.totalorder %s27, 1
      %p113 = por %p111, %p112
      %p115 = scmp.ne.s32.totalorder %s100, %s114
      %p116 = scmp.eq.s32.totalorder %s27, 0
      %p117 = por %p115, %p116
      %s119 = sadd.s32 %s118, 1
      %p122 = scmp.eq.s32.totalorder %s21, 1
      %p123 = scmp.ne.s32.totalorder %s118, %s120
      %p124 = scmp.eq.s32.totalorder %s21, 0
      %p125 = por %p123, %p124
      %p126 = scmp.ne.s32.totalorder %s118, %s120
      %p127 = scmp.eq.s32.totalorder %s26, 1
      %p128 = por %p126, %p127
      %p129 = scmp.ne.s32.totalorder %s120, %s121
      %p130 = scmp.eq.s32.totalorder %s26, 0
      %p131 = por %p129, %p130
      %p132 = scmp.ne.s32.totalorder %s120, %s121
      %p133 = scmp.eq.s32.totalorder %s27, 1
      %p134 = por %p132, %p133
      %p136 = scmp.ne.s32.totalorder %s121, %s135
      %p137 = scmp.eq.s32.totalorder %s27, 0
      %p138 = por %p136, %p137
      %s140 = sadd.s32 %s139, 1
      %p143 = scmp.eq.s32.totalorder %s21, 1
      %p144 = scmp.ne.s32.totalorder %s139, %s141
      %p145 = scmp.eq.s32.totalorder %s21, 0
      %p146 = por %p144, %p145
      %p147 = scmp.ne.s32.totalorder %s139, %s141
      %p148 = scmp.eq.s32.totalorder %s26, 1
      %p149 = por %p147, %p148
      %p150 = scmp.ne.s32.totalorder %s141, %s142
      %p151 = scmp.eq.s32.totalorder %s26, 0
      %p152 = por %p150, %p151
      %p153 = scmp.ne.s32.totalorder %s141, %s142
      %p154 = scmp.eq.s32.totalorder %s27, 1
      %p155 = por %p153, %p154
      %p157 = scmp.ne.s32.totalorder %s142, %s156
      %p158 = scmp.eq.s32.totalorder %s27, 0
      %p159 = por %p157, %p158
      %s161 = sadd.s32 %s160, 1
      %p164 = scmp.eq.s32.totalorder %s21, 1
      %p165 = scmp.ne.s32.totalorder %s160, %s162
      %p166 = scmp.eq.s32.totalorder %s21, 0
      %p167 = por %p165, %p166
      %p168 = scmp.ne.s32.totalorder %s160, %s162
      %p169 = scmp.eq.s32.totalorder %s26, 1
      %p170 = por %p168, %p169
      %p171 = scmp.ne.s32.totalorder %s162, %s163
      %p172 = scmp.eq.s32.totalorder %s26, 0
      %p173 = por %p171, %p172
      %p174 = scmp.ne.s32.totalorder %s162, %s163
      %p175 = scmp.eq.s32.totalorder %s27, 1
      %p176 = por %p174, %p175
      %p178 = scmp.ne.s32.totalorder %s163, %s177
      %p179 = scmp.eq.s32.totalorder %s27, 0
      %p180 = por %p178, %p179
      %s182 = sadd.s32 %s181, 1
      %p185 = scmp.eq.s32.totalorder %s21, 1
      %p186 = scmp.ne.s32.totalorder %s181, %s183
      %p187 = scmp.eq.s32.totalorder %s21, 0
      %p188 = por %p186, %p187
      %p189 = scmp.ne.s32.totalorder %s181, %s183
      %p190 = scmp.eq.s32.totalorder %s26, 1
      %p191 = por %p189, %p190
      %p192 = scmp.ne.s32.totalorder %s183, %s184
      %p193 = scmp.eq.s32.totalorder %s26, 0
      %p194 = por %p192, %p193
      %p195 = scmp.ne.s32.totalorder %s183, %s184
      %p196 = scmp.eq.s32.totalorder %s27, 1
      %p197 = por %p195, %p196
      %p199 = scmp.ne.s32.totalorder %s184, %s198
      %p200 = scmp.eq.s32.totalorder %s27, 0
      %p201 = por %p199, %p200
      %s202 = ssub.s32 %s21, %s28
      %p203 = scmp.eq.s32.totalorder %s202, 0
      %s205 = sadd.s32 %s204, 1
      %s206 = scalar_select %p203, %s204, %s205
      %p209 = pneg %p203
      %p210 = scmp.eq.s32.totalorder %s21, 1
      %p211 = por %p209, %p210
      %p212 = scmp.ne.s32.totalorder %s204, %s207
      %p213 = scmp.eq.s32.totalorder %s21, 0
      %p214 = por %p212, %p213
      %p215 = scmp.ne.s32.totalorder %s204, %s207
      %p216 = scmp.eq.s32.totalorder %s26, 1
      %p217 = por %p215, %p216
      %p218 = scmp.ne.s32.totalorder %s207, %s208
      %p219 = scmp.eq.s32.totalorder %s26, 0
      %p220 = por %p218, %p219
      %p221 = scmp.ne.s32.totalorder %s207, %s208
      %p222 = scmp.eq.s32.totalorder %s27, 1
      %p223 = por %p221, %p222
      %p225 = scmp.ne.s32.totalorder %s208, %s224
      %p226 = scmp.eq.s32.totalorder %s27, 0
      %p227 = por %p225, %p226
      %p228 = scmp.le.s32.totalorder 1, %s21
      %p229 = scmp.lt.s32.totalorder %s21, 3
      %p230 = pnand %p228, %p229
      %p231 = pneg %p230
      // Predicated region
      $region9: #{tpu_custom_call.1} parent=5 // pred_check
        _
      $region10: #{tpu_custom_call.1} parent=5 // pred_check_branch
        %233 = sbr.rel (%p230) target = $region12
      $region11: #{tpu_custom_call.1} parent=5 // pred_region
        %s234 = ssub.s32 %s21, 1
        // Predicated region
        $region13: #{tpu_custom_call.1} parent=11 // pred_check
          %p235 = pneg %p68
        $region14: #{tpu_custom_call.1} parent=11 // pred_check_branch
          %237 = sbr.rel (%p235) target = $region16
        $region15: #{tpu_custom_call.1} parent=11 // pred_region
          _
        $region16: #{tpu_custom_call.1} parent=11 // pred_fallthru
          _
        // Predicated region
        $region17: #{tpu_custom_call.1} parent=11 // pred_check
          %p238 = pneg %p89
        $region18: #{tpu_custom_call.1} parent=11 // pred_check_branch
          %240 = sbr.rel (%p238) target = $region20
        $region19: #{tpu_custom_call.1} parent=11 // pred_region
          _
        $region20: #{tpu_custom_call.1} parent=11 // pred_fallthru
          _
        // Predicated region
        $region21: #{tpu_custom_call.1} parent=11 // pred_check
          %p241 = pneg %p110
        $region22: #{tpu_custom_call.1} parent=11 // pred_check_branch
          %243 = sbr.rel (%p241) target = $region24
        $region23: #{tpu_custom_call.1} parent=11 // pred_region
          _
        $region24: #{tpu_custom_call.1} parent=11 // pred_fallthru
          _
        // Predicated region
        $region25: #{tpu_custom_call.1} parent=11 // pred_check
          %p244 = pneg %p131
        $region26: #{tpu_custom_call.1} parent=11 // pred_check_branch
          %246 = sbr.rel (%p244) target = $region28
        $region27: #{tpu_custom_call.1} parent=11 // pred_region
          _
        $region28: #{tpu_custom_call.1} parent=11 // pred_fallthru
          _
        // Predicated region
        $region29: #{tpu_custom_call.1} parent=11 // pred_check
          %p247 = pneg %p152
        $region30: #{tpu_custom_call.1} parent=11 // pred_check_branch
          %249 = sbr.rel (%p247) target = $region32
        $region31: #{tpu_custom_call.1} parent=11 // pred_region
          _
        $region32: #{tpu_custom_call.1} parent=11 // pred_fallthru
          _
        // Predicated region
        $region33: #{tpu_custom_call.1} parent=11 // pred_check
          %p250 = pneg %p173
        $region34: #{tpu_custom_call.1} parent=11 // pred_check_branch
          %252 = sbr.rel (%p250) target = $region36
        $region35: #{tpu_custom_call.1} parent=11 // pred_region
          _
        $region36: #{tpu_custom_call.1} parent=11 // pred_fallthru
          _
        // Predicated region
        $region37: #{tpu_custom_call.1} parent=11 // pred_check
          %p253 = pneg %p194
        $region38: #{tpu_custom_call.1} parent=11 // pred_check_branch
          %255 = sbr.rel (%p253) target = $region40
        $region39: #{tpu_custom_call.1} parent=11 // pred_region
          %257 = vsyncadd [#allocation5], 0
          %s259 = sshll.u32 %s7, 4
          %s260 = int_to_ptr.vmem [resolvable:$true] %s259
          %262 = dma.vmem_to_smem %s260, 16, [#allocation6], [#allocation5]
        $region40: #{tpu_custom_call.1} parent=11 // pred_fallthru
          _
      $region12: #{tpu_custom_call.1} parent=5 // pred_fallthru
        _
      %p263 = scmp.lt.s32.totalorder %s21, 2
      // Predicated region
      $region41: #{tpu_custom_call.1} parent=5 // pred_check
        %p264 = pneg %p263
      $region42: #{tpu_custom_call.1} parent=5 // pred_check_branch
        %266 = sbr.rel (%p264) target = $region44
      $region43: #{tpu_custom_call.1} parent=5 // pred_region
        // Predicated region
        $region45: #{tpu_custom_call.1} parent=43 // pred_check
          %p267 = pneg %p41
        $region46: #{tpu_custom_call.1} parent=43 // pred_check_branch
          %269 = sbr.rel (%p267) target = $region48
        $region47: #{tpu_custom_call.1} parent=43 // pred_region
          %s270 = sand.u32 %s31, 1
          %s271 = scalar_lea.sflag [#allocation3], %s270
          %s272 = sand.u32 %s31, 1
          %s273 = smul.addr %s272, 512
          %s274 = scalar_lea.vmem [#allocation2], %s273
          %276 = vsyncadd %s271, 0
          %s277 = smul.addr %s21, 64
          %s278 = smul.addr %s277, 8
          %s279 = scalar_lea.hbm %s0, %s278
          %s280 = sshll.u32 %s279, 4
          %s281 = int_to_ptr.hbm [resolvable:$true] %s280
          %s282 = sshll.u32 %s274, 4
          %s283 = int_to_ptr.vmem [resolvable:$true] %s282
          %288 = dma.hbm_to_vmem [thread:$0]  %s281, 8192, %s283, %s271, 256, 256, 16
        $region48: #{tpu_custom_call.1} parent=43 // pred_fallthru
          _
      $region44: #{tpu_custom_call.1} parent=5 // pred_fallthru
        _
      %p289 = scmp.le.s32.totalorder 1, %s21
      %p290 = scmp.lt.s32.totalorder %s21, 3
      %p291 = pnand %p289, %p290
      %p292 = pneg %p291
      // Predicated region
      $region49: #{tpu_custom_call.1} parent=5 // pred_check
        _
      $region50: #{tpu_custom_call.1} parent=5 // pred_check_branch
        %294 = sbr.rel (%p291) target = $region52
      $region51: #{tpu_custom_call.1} parent=5 // pred_region
        %s295 = ssub.s32 %s21, 1
        %s296 = sand.u32 %s34, 1
        %s297 = scalar_lea.sflag [#allocation3], %s296
        %s298 = sand.u32 %s34, 1
        %s299 = smul.addr %s298, 512
        %s300 = scalar_lea.vmem [#allocation2], %s299
        // Predicated region
        $region53: #{tpu_custom_call.1} parent=51 // pred_check
          %p301 = pneg %p47
        $region54: #{tpu_custom_call.1} parent=51 // pred_check_branch
          %303 = sbr.rel (%p301) target = $region56
        $region55: #{tpu_custom_call.1} parent=51 // pred_region
          %305 = dma.done %s297, 8192
        $region56: #{tpu_custom_call.1} parent=51 // pred_fallthru
          _
        // Predicated region
        $region57: #{tpu_custom_call.1} parent=51 // pred_check
          %p306 = pneg %p194
        $region58: #{tpu_custom_call.1} parent=51 // pred_check_branch
          %308 = sbr.rel (%p306) target = $region60
        $region59: #{tpu_custom_call.1} parent=51 // pred_region
          %310 = dma.done [#allocation5], 16
        $region60: #{tpu_custom_call.1} parent=51 // pred_fallthru
          _
        %311 = sfence
        %s312 = sand.u32 %s34, 1
        %s313 = scalar_lea.sflag [#allocation3], %s312
        %s314 = sand.u32 %s34, 1
        %s315 = smul.addr %s314, 512
        %s316 = scalar_lea.vmem [#allocation2], %s315
        %p317 = pneg %p47
        %p318 = pneg %p44
        %p319 = pneg %p68
        %p320 = pneg %p65
        %p321 = pneg %p89
        %p322 = pneg %p86
        %p323 = pneg %p110
        %p324 = pneg %p107
        %p325 = pneg %p131
        %p326 = pneg %p128
        %p327 = pneg %p152
        %p328 = pneg %p149
        %p329 = pneg %p173
        %p330 = pneg %p170
        %p331 = pneg %p194
        %p332 = pneg %p191
        %p333 = pneg %p220
        %p334 = pneg %p217
        %s335 = sand.u32 %s207, 1
        %s336 = scalar_lea.sflag [#allocation4], %s335
        %s337 = sand.u32 %s207, 1
        %s338 = smul.addr %s337, 512
        %s339 = scalar_lea.vmem [#allocation7], %s338
        %v340 = vld [vmem:[%s300] sm:$0xff]
        %v341 = vld [vmem:[%s300 + $0x8] sm:$0xff]
        %v342 = vld [vmem:[%s300 + $0x10] sm:$0xff]
        %v343 = vld [vmem:[%s300 + $0x18] sm:$0xff]
        %v344 = vld [vmem:[%s300 + $0x20] sm:$0xff]
        %v345 = vld [vmem:[%s300 + $0x28] sm:$0xff]
        %v346 = vld [vmem:[%s300 + $0x30] sm:$0xff]
        %v347 = vld [vmem:[%s300 + $0x38] sm:$0xff]
        %v348 = vld [vmem:[%s300 + $0x40] sm:$0xff]
        %v349 = vld [vmem:[%s300 + $0x48] sm:$0xff]
        %v350 = vld [vmem:[%s300 + $0x50] sm:$0xff]
        %v351 = vld [vmem:[%s300 + $0x58] sm:$0xff]
        %v352 = vld [vmem:[%s300 + $0x60] sm:$0xff]
        %v353 = vld [vmem:[%s300 + $0x68] sm:$0xff]
        %v354 = vld [vmem:[%s300 + $0x70] sm:$0xff]
        %v355 = vld [vmem:[%s300 + $0x78] sm:$0xff]
        %v356 = vld [vmem:[%s300 + $0x80] sm:$0xff]
        %v357 = vld [vmem:[%s300 + $0x88] sm:$0xff]
        %v358 = vld [vmem:[%s300 + $0x90] sm:$0xff]
        %v359 = vld [vmem:[%s300 + $0x98] sm:$0xff]
        %v360 = vld [vmem:[%s300 + $0xa0] sm:$0xff]
        %v361 = vld [vmem:[%s300 + $0xa8] sm:$0xff]
        %v362 = vld [vmem:[%s300 + $0xb0] sm:$0xff]
        %v363 = vld [vmem:[%s300 + $0xb8] sm:$0xff]
        %v364 = vld [vmem:[%s300 + $0xc0] sm:$0xff]
        %v365 = vld [vmem:[%s300 + $0xc8] sm:$0xff]
        %v366 = vld [vmem:[%s300 + $0xd0] sm:$0xff]
        %v367 = vld [vmem:[%s300 + $0xd8] sm:$0xff]
        %v368 = vld [vmem:[%s300 + $0xe0] sm:$0xff]
        %v369 = vld [vmem:[%s300 + $0xe8] sm:$0xff]
        %v370 = vld [vmem:[%s300 + $0xf0] sm:$0xff]
        %v371 = vld [vmem:[%s300 + $0xf8] sm:$0xff]
        %v372 = vld [vmem:[%s300 + $0x100] sm:$0xff]
        %v373 = vld [vmem:[%s300 + $0x108] sm:$0xff]
        %v374 = vld [vmem:[%s300 + $0x110] sm:$0xff]
        %v375 = vld [vmem:[%s300 + $0x118] sm:$0xff]
        %v376 = vld [vmem:[%s300 + $0x120] sm:$0xff]
        %v377 = vld [vmem:[%s300 + $0x128] sm:$0xff]
        %v378 = vld [vmem:[%s300 + $0x130] sm:$0xff]
        %v379 = vld [vmem:[%s300 + $0x138] sm:$0xff]
        %v380 = vld [vmem:[%s300 + $0x140] sm:$0xff]
        %v381 = vld [vmem:[%s300 + $0x148] sm:$0xff]
        %v382 = vld [vmem:[%s300 + $0x150] sm:$0xff]
        %v383 = vld [vmem:[%s300 + $0x158] sm:$0xff]
        %v384 = vld [vmem:[%s300 + $0x160] sm:$0xff]
        %v385 = vld [vmem:[%s300 + $0x168] sm:$0xff]
        %v386 = vld [vmem:[%s300 + $0x170] sm:$0xff]
        %v387 = vld [vmem:[%s300 + $0x178] sm:$0xff]
        %v388 = vld [vmem:[%s300 + $0x180] sm:$0xff]
        %v389 = vld [vmem:[%s300 + $0x188] sm:$0xff]
        %v390 = vld [vmem:[%s300 + $0x190] sm:$0xff]
        %v391 = vld [vmem:[%s300 + $0x198] sm:$0xff]
        %v392 = vld [vmem:[%s300 + $0x1a0] sm:$0xff]
        %v393 = vld [vmem:[%s300 + $0x1a8] sm:$0xff]
        %v394 = vld [vmem:[%s300 + $0x1b0] sm:$0xff]
        %v395 = vld [vmem:[%s300 + $0x1b8] sm:$0xff]
        %v396 = vld [vmem:[%s300 + $0x1c0] sm:$0xff]
        %v397 = vld [vmem:[%s300 + $0x1c8] sm:$0xff]
        %v398 = vld [vmem:[%s300 + $0x1d0] sm:$0xff]
        %v399 = vld [vmem:[%s300 + $0x1d8] sm:$0xff]
        %v400 = vld [vmem:[%s300 + $0x1e0] sm:$0xff]
        %v401 = vld [vmem:[%s300 + $0x1e8] sm:$0xff]
        %v402 = vld [vmem:[%s300 + $0x1f0] sm:$0xff]
        %v403 = vld [vmem:[%s300 + $0x1f8] sm:$0xff]
        %s404 = sld [smem:[#allocation6]]
        %s405 = sld [smem:[#allocation6 + $0x1]]
        %v406 = vld [vmem:[%s1] sm:$0xff]
        %v407 = vld [vmem:[%s1 + $0x8] sm:$0xff]
        %v408 = vld [vmem:[%s1 + $0x10] sm:$0xff]
        %v409 = vld [vmem:[%s1 + $0x18] sm:$0xff]
        %v410 = vld [vmem:[%s1 + $0x20] sm:$0xff]
        %v411 = vld [vmem:[%s1 + $0x28] sm:$0xff]
        %v412 = vld [vmem:[%s1 + $0x30] sm:$0xff]
        %v413 = vld [vmem:[%s1 + $0x38] sm:$0xff]
        %v414 = vld [vmem:[%s1 + $0x40] sm:$0xff]
        %v415 = vld [vmem:[%s1 + $0x48] sm:$0xff]
        %v416 = vld [vmem:[%s1 + $0x50] sm:$0xff]
        %v417 = vld [vmem:[%s1 + $0x58] sm:$0xff]
        %v418 = vld [vmem:[%s1 + $0x60] sm:$0xff]
        %v419 = vld [vmem:[%s1 + $0x68] sm:$0xff]
        %v420 = vld [vmem:[%s1 + $0x70] sm:$0xff]
        %v421 = vld [vmem:[%s1 + $0x78] sm:$0xff]
        %v422 = vld [vmem:[%s1 + $0x80] sm:$0xff]
        %v423 = vld [vmem:[%s1 + $0x88] sm:$0xff]
        %v424 = vld [vmem:[%s1 + $0x90] sm:$0xff]
        %v425 = vld [vmem:[%s1 + $0x98] sm:$0xff]
        %v426 = vld [vmem:[%s1 + $0xa0] sm:$0xff]
        %v427 = vld [vmem:[%s1 + $0xa8] sm:$0xff]
        %v428 = vld [vmem:[%s1 + $0xb0] sm:$0xff]
        %v429 = vld [vmem:[%s1 + $0xb8] sm:$0xff]
        %v430 = vld [vmem:[%s1 + $0xc0] sm:$0xff]
        %v431 = vld [vmem:[%s1 + $0xc8] sm:$0xff]
        %v432 = vld [vmem:[%s1 + $0xd0] sm:$0xff]
        %v433 = vld [vmem:[%s1 + $0xd8] sm:$0xff]
        %v434 = vld [vmem:[%s1 + $0xe0] sm:$0xff]
        %v435 = vld [vmem:[%s1 + $0xe8] sm:$0xff]
        %v436 = vld [vmem:[%s1 + $0xf0] sm:$0xff]
        %v437 = vld [vmem:[%s1 + $0xf8] sm:$0xff]
        %v438 = vpack.c.bf16 %v342, %v340
        %v439 = vpack.c.bf16 %v343, %v341
        %v440 = vpack.c.bf16 %v346, %v344
        %v441 = vpack.c.bf16 %v347, %v345
        %v442 = vpack.c.bf16 %v350, %v348
        %v443 = vpack.c.bf16 %v351, %v349
        %v444 = vpack.c.bf16 %v354, %v352
        %v445 = vpack.c.bf16 %v355, %v353
        %v446 = vpack.c.bf16 %v358, %v356
        %v447 = vpack.c.bf16 %v359, %v357
        %v448 = vpack.c.bf16 %v362, %v360
        %v449 = vpack.c.bf16 %v363, %v361
        %v450 = vpack.c.bf16 %v366, %v364
        %v451 = vpack.c.bf16 %v367, %v365
        %v452 = vpack.c.bf16 %v370, %v368
        %v453 = vpack.c.bf16 %v371, %v369
        %v454 = vpack.c.bf16 %v374, %v372
        %v455 = vpack.c.bf16 %v375, %v373
        %v456 = vpack.c.bf16 %v378, %v376
        %v457 = vpack.c.bf16 %v379, %v377
        %v458 = vpack.c.bf16 %v382, %v380
        %v459 = vpack.c.bf16 %v383, %v381
        %v460 = vpack.c.bf16 %v386, %v384
        %v461 = vpack.c.bf16 %v387, %v385
        %v462 = vpack.c.bf16 %v390, %v388
        %v463 = vpack.c.bf16 %v391, %v389
        %v464 = vpack.c.bf16 %v394, %v392
        %v465 = vpack.c.bf16 %v395, %v393
        %v466 = vpack.c.bf16 %v398, %v396
        %v467 = vpack.c.bf16 %v399, %v397
        %v468 = vpack.c.bf16 %v402, %v400
        %v469 = vpack.c.bf16 %v403, %v401
        %v470 = vld [vmem:[%s2] sm:$0xff]
        %v471 = vld [vmem:[%s2 + $0x8] sm:$0xff]
        %v472 = vld [vmem:[%s2 + $0x10] sm:$0xff]
        %v473 = vld [vmem:[%s2 + $0x18] sm:$0xff]
        %v474 = vld [vmem:[%s2 + $0x20] sm:$0xff]
        %v475 = vld [vmem:[%s2 + $0x28] sm:$0xff]
        %v476 = vld [vmem:[%s2 + $0x30] sm:$0xff]
        %v477 = vld [vmem:[%s2 + $0x38] sm:$0xff]
        %v478 = vld [vmem:[%s2 + $0x40] sm:$0xff]
        %v479 = vld [vmem:[%s2 + $0x48] sm:$0xff]
        %v480 = vld [vmem:[%s2 + $0x50] sm:$0xff]
        %v481 = vld [vmem:[%s2 + $0x58] sm:$0xff]
        %v482 = vld [vmem:[%s2 + $0x60] sm:$0xff]
        %v483 = vld [vmem:[%s2 + $0x68] sm:$0xff]
        %v484 = vld [vmem:[%s2 + $0x70] sm:$0xff]
        %v485 = vld [vmem:[%s2 + $0x78] sm:$0xff]
        %v486 = vld [vmem:[%s2 + $0x80] sm:$0xff]
        %v487 = vld [vmem:[%s2 + $0x88] sm:$0xff]
        %v488 = vld [vmem:[%s2 + $0x90] sm:$0xff]
        %v489 = vld [vmem:[%s2 + $0x98] sm:$0xff]
        %v490 = vld [vmem:[%s2 + $0xa0] sm:$0xff]
        %v491 = vld [vmem:[%s2 + $0xa8] sm:$0xff]
        %v492 = vld [vmem:[%s2 + $0xb0] sm:$0xff]
        %v493 = vld [vmem:[%s2 + $0xb8] sm:$0xff]
        %v494 = vld [vmem:[%s2 + $0xc0] sm:$0xff]
        %v495 = vld [vmem:[%s2 + $0xc8] sm:$0xff]
        %v496 = vld [vmem:[%s2 + $0xd0] sm:$0xff]
        %v497 = vld [vmem:[%s2 + $0xd8] sm:$0xff]
        %v498 = vld [vmem:[%s2 + $0xe0] sm:$0xff]
        %v499 = vld [vmem:[%s2 + $0xe8] sm:$0xff]
        %v500 = vld [vmem:[%s2 + $0xf0] sm:$0xff]
        %v501 = vld [vmem:[%s2 + $0xf8] sm:$0xff]
        %503 = vset.pattern.permute.xlu0 0
        %504 = vperm.xlu0 %503, %v470
        %v505 = vpop.permute.xlu0 %504
        %508 = vset.pattern.permute.xlu0 0
        %509 = vperm.xlu0 %508, %v471
        %v510 = vpop.permute.xlu0 %509
        %513 = vset.pattern.permute.xlu0 0
        %514 = vperm.xlu0 %513, %v472
        %v515 = vpop.permute.xlu0 %514
        %518 = vset.pattern.permute.xlu0 0
        %519 = vperm.xlu0 %518, %v473
        %v520 = vpop.permute.xlu0 %519
        %523 = vset.pattern.permute.xlu0 0
        %524 = vperm.xlu0 %523, %v474
        %v525 = vpop.permute.xlu0 %524
        %528 = vset.pattern.permute.xlu0 0
        %529 = vperm.xlu0 %528, %v475
        %v530 = vpop.permute.xlu0 %529
        %533 = vset.pattern.permute.xlu0 0
        %534 = vperm.xlu0 %533, %v476
        %v535 = vpop.permute.xlu0 %534
        %538 = vset.pattern.permute.xlu0 0
        %539 = vperm.xlu0 %538, %v477
        %v540 = vpop.permute.xlu0 %539
        %543 = vset.pattern.permute.xlu0 0
        %544 = vperm.xlu0 %543, %v478
        %v545 = vpop.permute.xlu0 %544
        %548 = vset.pattern.permute.xlu0 0
        %549 = vperm.xlu0 %548, %v479
        %v550 = vpop.permute.xlu0 %549
        %553 = vset.pattern.permute.xlu0 0
        %554 = vperm.xlu0 %553, %v480
        %v555 = vpop.permute.xlu0 %554
        %558 = vset.pattern.permute.xlu0 0
        %559 = vperm.xlu0 %558, %v481
        %v560 = vpop.permute.xlu0 %559
        %563 = vset.pattern.permute.xlu0 0
        %564 = vperm.xlu0 %563, %v482
        %v565 = vpop.permute.xlu0 %564
        %568 = vset.pattern.permute.xlu0 0
        %569 = vperm.xlu0 %568, %v483
        %v570 = vpop.permute.xlu0 %569
        %573 = vset.pattern.permute.xlu0 0
        %574 = vperm.xlu0 %573, %v484
        %v575 = vpop.permute.xlu0 %574
        %578 = vset.pattern.permute.xlu0 0
        %579 = vperm.xlu0 %578, %v485
        %v580 = vpop.permute.xlu0 %579
        %583 = vset.pattern.permute.xlu0 0
        %584 = vperm.xlu0 %583, %v486
        %v585 = vpop.permute.xlu0 %584
        %588 = vset.pattern.permute.xlu0 0
        %589 = vperm.xlu0 %588, %v487
        %v590 = vpop.permute.xlu0 %589
        %593 = vset.pattern.permute.xlu0 0
        %594 = vperm.xlu0 %593, %v488
        %v595 = vpop.permute.xlu0 %594
        %598 = vset.pattern.permute.xlu0 0
        %599 = vperm.xlu0 %598, %v489
        %v600 = vpop.permute.xlu0 %599
        %603 = vset.pattern.permute.xlu0 0
        %604 = vperm.xlu0 %603, %v490
        %v605 = vpop.permute.xlu0 %604
        %608 = vset.pattern.permute.xlu0 0
        %609 = vperm.xlu0 %608, %v491
        %v610 = vpop.permute.xlu0 %609
        %613 = vset.pattern.permute.xlu0 0
        %614 = vperm.xlu0 %613, %v492
        %v615 = vpop.permute.xlu0 %614
        %618 = vset.pattern.permute.xlu0 0
        %619 = vperm.xlu0 %618, %v493
        %v620 = vpop.permute.xlu0 %619
        %623 = vset.pattern.permute.xlu0 0
        %624 = vperm.xlu0 %623, %v494
        %v625 = vpop.permute.xlu0 %624
        %628 = vset.pattern.permute.xlu0 0
        %629 = vperm.xlu0 %628, %v495
        %v630 = vpop.permute.xlu0 %629
        %633 = vset.pattern.permute.xlu0 0
        %634 = vperm.xlu0 %633, %v496
        %v635 = vpop.permute.xlu0 %634
        %638 = vset.pattern.permute.xlu0 0
        %639 = vperm.xlu0 %638, %v497
        %v640 = vpop.permute.xlu0 %639
        %643 = vset.pattern.permute.xlu0 0
        %644 = vperm.xlu0 %643, %v498
        %v645 = vpop.permute.xlu0 %644
        %648 = vset.pattern.permute.xlu0 0
        %649 = vperm.xlu0 %648, %v499
        %v650 = vpop.permute.xlu0 %649
        %653 = vset.pattern.permute.xlu0 0
        %654 = vperm.xlu0 %653, %v500
        %v655 = vpop.permute.xlu0 %654
        %658 = vset.pattern.permute.xlu0 0
        %659 = vperm.xlu0 %658, %v501
        %v660 = vpop.permute.xlu0 %659
        %v694 = vunpack.c.l.b16 %v406
        %v695 = vunpack.c.h.b16 %v406
        %v696 = vunpack.c.l.b16 %v407
        %v697 = vunpack.c.h.b16 %v407
        %v698 = vunpack.c.l.b16 %v408
        %v699 = vunpack.c.h.b16 %v408
        %v700 = vunpack.c.l.b16 %v409
        %v701 = vunpack.c.h.b16 %v409
        %v702 = vunpack.c.l.b16 %v410
        %v703 = vunpack.c.h.b16 %v410
        %v704 = vunpack.c.l.b16 %v411
        %v705 = vunpack.c.h.b16 %v411
        %v706 = vunpack.c.l.b16 %v412
        %v707 = vunpack.c.h.b16 %v412
        %v708 = vunpack.c.l.b16 %v413
        %v709 = vunpack.c.h.b16 %v413
        %v710 = vunpack.c.l.b16 %v414
        %v711 = vunpack.c.h.b16 %v414
        %v712 = vunpack.c.l.b16 %v415
        %v713 = vunpack.c.h.b16 %v415
        %v714 = vunpack.c.l.b16 %v416
        %v715 = vunpack.c.h.b16 %v416
        %v716 = vunpack.c.l.b16 %v417
        %v717 = vunpack.c.h.b16 %v417
        %v718 = vunpack.c.l.b16 %v418
        %v719 = vunpack.c.h.b16 %v418
        %v720 = vunpack.c.l.b16 %v419
        %v721 = vunpack.c.h.b16 %v419
        %v722 = vunpack.c.l.b16 %v420
        %v723 = vunpack.c.h.b16 %v420
        %v724 = vunpack.c.l.b16 %v421
        %v725 = vunpack.c.h.b16 %v421
        %v726 = vunpack.c.l.b16 %v422
        %v727 = vunpack.c.h.b16 %v422
        %v728 = vunpack.c.l.b16 %v423
        %v729 = vunpack.c.h.b16 %v423
        %v730 = vunpack.c.l.b16 %v424
        %v731 = vunpack.c.h.b16 %v424
        %v732 = vunpack.c.l.b16 %v425
        %v733 = vunpack.c.h.b16 %v425
        %v734 = vunpack.c.l.b16 %v426
        %v735 = vunpack.c.h.b16 %v426
        %v736 = vunpack.c.l.b16 %v427
        %v737 = vunpack.c.h.b16 %v427
        %v738 = vunpack.c.l.b16 %v428
        %v739 = vunpack.c.h.b16 %v428
        %v740 = vunpack.c.l.b16 %v429
        %v741 = vunpack.c.h.b16 %v429
        %v742 = vunpack.c.l.b16 %v430
        %v743 = vunpack.c.h.b16 %v430
        %v744 = vunpack.c.l.b16 %v431
        %v745 = vunpack.c.h.b16 %v431
        %v746 = vunpack.c.l.b16 %v432
        %v747 = vunpack.c.h.b16 %v432
        %v748 = vunpack.c.l.b16 %v433
        %v749 = vunpack.c.h.b16 %v433
        %v750 = vunpack.c.l.b16 %v434
        %v751 = vunpack.c.h.b16 %v434
        %v752 = vunpack.c.l.b16 %v435
        %v753 = vunpack.c.h.b16 %v435
        %v754 = vunpack.c.l.b16 %v436
        %v755 = vunpack.c.h.b16 %v436
        %v756 = vunpack.c.l.b16 %v437
        %v757 = vunpack.c.h.b16 %v437
        %v758 = vpack.c.b16 %v696, %v694
        %v759 = vpack.c.b16 %v697, %v695
        %v760 = vpack.c.b16 %v700, %v698
        %v761 = vpack.c.b16 %v701, %v699
        %v762 = vpack.c.b16 %v704, %v702
        %v763 = vpack.c.b16 %v705, %v703
        %v764 = vpack.c.b16 %v708, %v706
        %v765 = vpack.c.b16 %v709, %v707
        %v766 = vpack.c.b16 %v712, %v710
        %v767 = vpack.c.b16 %v713, %v711
        %v768 = vpack.c.b16 %v716, %v714
        %v769 = vpack.c.b16 %v717, %v715
        %v770 = vpack.c.b16 %v720, %v718
        %v771 = vpack.c.b16 %v721, %v719
        %v772 = vpack.c.b16 %v724, %v722
        %v773 = vpack.c.b16 %v725, %v723
        %v774 = vpack.c.b16 %v728, %v726
        %v775 = vpack.c.b16 %v729, %v727
        %v776 = vpack.c.b16 %v732, %v730
        %v777 = vpack.c.b16 %v733, %v731
        %v778 = vpack.c.b16 %v736, %v734
        %v779 = vpack.c.b16 %v737, %v735
        %v780 = vpack.c.b16 %v740, %v738
        %v781 = vpack.c.b16 %v741, %v739
        %v782 = vpack.c.b16 %v744, %v742
        %v783 = vpack.c.b16 %v745, %v743
        %v784 = vpack.c.b16 %v748, %v746
        %v785 = vpack.c.b16 %v749, %v747
        %v786 = vpack.c.b16 %v752, %v750
        %v787 = vpack.c.b16 %v753, %v751
        %v788 = vpack.c.b16 %v756, %v754
        %v789 = vpack.c.b16 %v757, %v755
        %822 = vmatpush.bf16.msra.mxu0 %v452
        %823 = vmatpush.bf16.msra.mxu0 %v450
        %824 = vmatpush.bf16.msra.mxu0 %v448
        %825 = vmatpush.bf16.msra.mxu0 %v446
        %826 = vmatpush.bf16.msra.mxu0 %v444
        %827 = vmatpush.bf16.msra.mxu0 %v442
        %828 = vmatpush.bf16.msra.mxu0 %v440
        %829 = vmatpush.bf16.msra.mxu0 %v438
        %830 = vmatmul.bf16.gmra.mxu0 %v758
        %v831 = vpop.f32.mrf.mxu0
        %v832 = vadd.f32 %v505, %v831
        %v833 = vpop.f32.mrf.mxu0
        %v834 = vadd.f32 %v510, %v833
        %835 = vmatmul.bf16.gmra.mxu0 %v760
        %v836 = vpop.f32.mrf.mxu0
        %v837 = vadd.f32 %v515, %v836
        %v838 = vpop.f32.mrf.mxu0
        %v839 = vadd.f32 %v520, %v838
        %840 = vmatmul.bf16.gmra.mxu0 %v762
        %v841 = vpop.f32.mrf.mxu0
        %v842 = vadd.f32 %v525, %v841
        %v843 = vpop.f32.mrf.mxu0
        %v844 = vadd.f32 %v530, %v843
        %845 = vmatmul.bf16.gmra.mxu0 %v764
        %v846 = vpop.f32.mrf.mxu0
        %v847 = vadd.f32 %v535, %v846
        %v848 = vpop.f32.mrf.mxu0
        %v849 = vadd.f32 %v540, %v848
        %850 = vmatmul.bf16.gmra.mxu0 %v766
        %v851 = vpop.f32.mrf.mxu0
        %v852 = vadd.f32 %v545, %v851
        %v853 = vpop.f32.mrf.mxu0
        %v854 = vadd.f32 %v550, %v853
        %855 = vmatmul.bf16.gmra.mxu0 %v768
        %v856 = vpop.f32.mrf.mxu0
        %v857 = vadd.f32 %v555, %v856
        %v858 = vpop.f32.mrf.mxu0
        %v859 = vadd.f32 %v560, %v858
        %860 = vmatmul.bf16.gmra.mxu0 %v770
        %v861 = vpop.f32.mrf.mxu0
        %v862 = vadd.f32 %v565, %v861
        %v863 = vpop.f32.mrf.mxu0
        %v864 = vadd.f32 %v570, %v863
        %865 = vmatmul.bf16.gmra.mxu0 %v772
        %v866 = vpop.f32.mrf.mxu0
        %v867 = vadd.f32 %v575, %v866
        %v868 = vpop.f32.mrf.mxu0
        %v869 = vadd.f32 %v580, %v868
        %870 = vmatmul.bf16.gmra.mxu0 %v774
        %v871 = vpop.f32.mrf.mxu0
        %v872 = vadd.f32 %v585, %v871
        %v873 = vpop.f32.mrf.mxu0
        %v874 = vadd.f32 %v590, %v873
        %875 = vmatmul.bf16.gmra.mxu0 %v776
        %v876 = vpop.f32.mrf.mxu0
        %v877 = vadd.f32 %v595, %v876
        %v878 = vpop.f32.mrf.mxu0
        %v879 = vadd.f32 %v600, %v878
        %880 = vmatmul.bf16.gmra.mxu0 %v778
        %v881 = vpop.f32.mrf.mxu0
        %v882 = vadd.f32 %v605, %v881
        %v883 = vpop.f32.mrf.mxu0
        %v884 = vadd.f32 %v610, %v883
        %885 = vmatmul.bf16.gmra.mxu0 %v780
        %v886 = vpop.f32.mrf.mxu0
        %v887 = vadd.f32 %v615, %v886
        %v888 = vpop.f32.mrf.mxu0
        %v889 = vadd.f32 %v620, %v888
        %890 = vmatmul.bf16.gmra.mxu0 %v782
        %v891 = vpop.f32.mrf.mxu0
        %v892 = vadd.f32 %v625, %v891
        %v893 = vpop.f32.mrf.mxu0
        %v894 = vadd.f32 %v630, %v893
        %895 = vmatmul.bf16.gmra.mxu0 %v784
        %v896 = vpop.f32.mrf.mxu0
        %v897 = vadd.f32 %v635, %v896
        %v898 = vpop.f32.mrf.mxu0
        %v899 = vadd.f32 %v640, %v898
        %900 = vmatmul.bf16.gmra.mxu0 %v786
        %v901 = vpop.f32.mrf.mxu0
        %v902 = vadd.f32 %v645, %v901
        %v903 = vpop.f32.mrf.mxu0
        %v904 = vadd.f32 %v650, %v903
        %905 = vmatmul.bf16.gmra.mxu0 %v788
        %v906 = vpop.f32.mrf.mxu0
        %v907 = vadd.f32 %v655, %v906
        %v908 = vpop.f32.mrf.mxu0
        %v909 = vadd.f32 %v660, %v908
        %910 = vdwg.mxu0
        %911 = vmatpush.bf16.msra.mxu0 %v468
        %912 = vmatpush.bf16.msra.mxu0 %v466
        %913 = vmatpush.bf16.msra.mxu0 %v464
        %914 = vmatpush.bf16.msra.mxu0 %v462
        %915 = vmatpush.bf16.msra.mxu0 %v460
        %916 = vmatpush.bf16.msra.mxu0 %v458
        %917 = vmatpush.bf16.msra.mxu0 %v456
        %918 = vmatpush.bf16.msra.mxu0 %v454
        %919 = vmatmul.bf16.gmra.mxu0 %v759
        %v920 = vpop.f32.mrf.mxu0
        %v921 = vadd.f32 %v832, %v920
        %v922 = vpop.f32.mrf.mxu0
        %v923 = vadd.f32 %v834, %v922
        %924 = vmatmul.bf16.gmra.mxu0 %v761
        %v925 = vpop.f32.mrf.mxu0
        %v926 = vadd.f32 %v837, %v925
        %v927 = vpop.f32.mrf.mxu0
        %v928 = vadd.f32 %v839, %v927
        %929 = vmatmul.bf16.gmra.mxu0 %v763
        %v930 = vpop.f32.mrf.mxu0
        %v931 = vadd.f32 %v842, %v930
        %v932 = vpop.f32.mrf.mxu0
        %v933 = vadd.f32 %v844, %v932
        %934 = vmatmul.bf16.gmra.mxu0 %v765
        %v935 = vpop.f32.mrf.mxu0
        %v936 = vadd.f32 %v847, %v935
        %v937 = vpop.f32.mrf.mxu0
        %v938 = vadd.f32 %v849, %v937
        %939 = vmatmul.bf16.gmra.mxu0 %v767
        %v940 = vpop.f32.mrf.mxu0
        %v941 = vadd.f32 %v852, %v940
        %v942 = vpop.f32.mrf.mxu0
        %v943 = vadd.f32 %v854, %v942
        %944 = vmatmul.bf16.gmra.mxu0 %v769
        %v945 = vpop.f32.mrf.mxu0
        %v946 = vadd.f32 %v857, %v945
        %v947 = vpop.f32.mrf.mxu0
        %v948 = vadd.f32 %v859, %v947
        %949 = vmatmul.bf16.gmra.mxu0 %v771
        %v950 = vpop.f32.mrf.mxu0
        %v951 = vadd.f32 %v862, %v950
        %v952 = vpop.f32.mrf.mxu0
        %v953 = vadd.f32 %v864, %v952
        %954 = vmatmul.bf16.gmra.mxu0 %v773
        %v955 = vpop.f32.mrf.mxu0
        %v956 = vadd.f32 %v867, %v955
        %v957 = vpop.f32.mrf.mxu0
        %v958 = vadd.f32 %v869, %v957
        %959 = vmatmul.bf16.gmra.mxu0 %v775
        %v960 = vpop.f32.mrf.mxu0
        %v961 = vadd.f32 %v872, %v960
        %v962 = vpop.f32.mrf.mxu0
        %v963 = vadd.f32 %v874, %v962
        %964 = vmatmul.bf16.gmra.mxu0 %v777
        %v965 = vpop.f32.mrf.mxu0
        %v966 = vadd.f32 %v877, %v965
        %v967 = vpop.f32.mrf.mxu0
        %v968 = vadd.f32 %v879, %v967
        %969 = vmatmul.bf16.gmra.mxu0 %v779
        %v970 = vpop.f32.mrf.mxu0
        %v971 = vadd.f32 %v882, %v970
        %v972 = vpop.f32.mrf.mxu0
        %v973 = vadd.f32 %v884, %v972
        %974 = vmatmul.bf16.gmra.mxu0 %v781
        %v975 = vpop.f32.mrf.mxu0
        %v976 = vadd.f32 %v887, %v975
        %v977 = vpop.f32.mrf.mxu0
        %v978 = vadd.f32 %v889, %v977
        %979 = vmatmul.bf16.gmra.mxu0 %v783
        %v980 = vpop.f32.mrf.mxu0
        %v981 = vadd.f32 %v892, %v980
        %v982 = vpop.f32.mrf.mxu0
        %v983 = vadd.f32 %v894, %v982
        %984 = vmatmul.bf16.gmra.mxu0 %v785
        %v985 = vpop.f32.mrf.mxu0
        %v986 = vadd.f32 %v897, %v985
        %v987 = vpop.f32.mrf.mxu0
        %v988 = vadd.f32 %v899, %v987
        %989 = vmatmul.bf16.gmra.mxu0 %v787
        %v990 = vpop.f32.mrf.mxu0
        %v991 = vadd.f32 %v902, %v990
        %v992 = vpop.f32.mrf.mxu0
        %v993 = vadd.f32 %v904, %v992
        %994 = vmatmul.bf16.gmra.mxu0 %v789
        %v995 = vpop.f32.mrf.mxu0
        %v996 = vadd.f32 %v907, %v995
        %v997 = vpop.f32.mrf.mxu0
        %v998 = vadd.f32 %v909, %v997
        %999 = vdwg.mxu0
        %1000 = vmatpush.bf16.msra.mxu0 %v453
        %1001 = vmatpush.bf16.msra.mxu0 %v451
        %1002 = vmatpush.bf16.msra.mxu0 %v449
        %1003 = vmatpush.bf16.msra.mxu0 %v447
        %1004 = vmatpush.bf16.msra.mxu0 %v445
        %1005 = vmatpush.bf16.msra.mxu0 %v443
        %1006 = vmatpush.bf16.msra.mxu0 %v441
        %1007 = vmatpush.bf16.msra.mxu0 %v439
        %1008 = vmatmul.bf16.gmra.mxu0 %v758
        %v1009 = vpop.f32.mrf.mxu0
        %v1010 = vadd.f32 %v505, %v1009
        %v1011 = vpop.f32.mrf.mxu0
        %v1012 = vadd.f32 %v510, %v1011
        %1013 = vmatmul.bf16.gmra.mxu0 %v760
        %v1014 = vpop.f32.mrf.mxu0
        %v1015 = vadd.f32 %v515, %v1014
        %v1016 = vpop.f32.mrf.mxu0
        %v1017 = vadd.f32 %v520, %v1016
        %1018 = vmatmul.bf16.gmra.mxu0 %v762
        %v1019 = vpop.f32.mrf.mxu0
        %v1020 = vadd.f32 %v525, %v1019
        %v1021 = vpop.f32.mrf.mxu0
        %v1022 = vadd.f32 %v530, %v1021
        %1023 = vmatmul.bf16.gmra.mxu0 %v764
        %v1024 = vpop.f32.mrf.mxu0
        %v1025 = vadd.f32 %v535, %v1024
        %v1026 = vpop.f32.mrf.mxu0
        %v1027 = vadd.f32 %v540, %v1026
        %1028 = vmatmul.bf16.gmra.mxu0 %v766
        %v1029 = vpop.f32.mrf.mxu0
        %v1030 = vadd.f32 %v545, %v1029
        %v1031 = vpop.f32.mrf.mxu0
        %v1032 = vadd.f32 %v550, %v1031
        %1033 = vmatmul.bf16.gmra.mxu0 %v768
        %v1034 = vpop.f32.mrf.mxu0
        %v1035 = vadd.f32 %v555, %v1034
        %v1036 = vpop.f32.mrf.mxu0
        %v1037 = vadd.f32 %v560, %v1036
        %1038 = vmatmul.bf16.gmra.mxu0 %v770
        %v1039 = vpop.f32.mrf.mxu0
        %v1040 = vadd.f32 %v565, %v1039
        %v1041 = vpop.f32.mrf.mxu0
        %v1042 = vadd.f32 %v570, %v1041
        %1043 = vmatmul.bf16.gmra.mxu0 %v772
        %v1044 = vpop.f32.mrf.mxu0
        %v1045 = vadd.f32 %v575, %v1044
        %v1046 = vpop.f32.mrf.mxu0
        %v1047 = vadd.f32 %v580, %v1046
        %1048 = vmatmul.bf16.gmra.mxu0 %v774
        %v1049 = vpop.f32.mrf.mxu0
        %v1050 = vadd.f32 %v585, %v1049
        %v1051 = vpop.f32.mrf.mxu0
        %v1052 = vadd.f32 %v590, %v1051
        %1053 = vmatmul.bf16.gmra.mxu0 %v776
        %v1054 = vpop.f32.mrf.mxu0
        %v1055 = vadd.f32 %v595, %v1054
        %v1056 = vpop.f32.mrf.mxu0
        %v1057 = vadd.f32 %v600, %v1056
        %1058 = vmatmul.bf16.gmra.mxu0 %v778
        %v1059 = vpop.f32.mrf.mxu0
        %v1060 = vadd.f32 %v605, %v1059
        %v1061 = vpop.f32.mrf.mxu0
        %v1062 = vadd.f32 %v610, %v1061
        %1063 = vmatmul.bf16.gmra.mxu0 %v780
        %v1064 = vpop.f32.mrf.mxu0
        %v1065 = vadd.f32 %v615, %v1064
        %v1066 = vpop.f32.mrf.mxu0
        %v1067 = vadd.f32 %v620, %v1066
        %1068 = vmatmul.bf16.gmra.mxu0 %v782
        %v1069 = vpop.f32.mrf.mxu0
        %v1070 = vadd.f32 %v625, %v1069
        %v1071 = vpop.f32.mrf.mxu0
        %v1072 = vadd.f32 %v630, %v1071
        %1073 = vmatmul.bf16.gmra.mxu0 %v784
        %v1074 = vpop.f32.mrf.mxu0
        %v1075 = vadd.f32 %v635, %v1074
        %v1076 = vpop.f32.mrf.mxu0
        %v1077 = vadd.f32 %v640, %v1076
        %1078 = vmatmul.bf16.gmra.mxu0 %v786
        %v1079 = vpop.f32.mrf.mxu0
        %v1080 = vadd.f32 %v645, %v1079
        %v1081 = vpop.f32.mrf.mxu0
        %v1082 = vadd.f32 %v650, %v1081
        %1083 = vmatmul.bf16.gmra.mxu0 %v788
        %v1084 = vpop.f32.mrf.mxu0
        %v1085 = vadd.f32 %v655, %v1084
        %v1086 = vpop.f32.mrf.mxu0
        %v1087 = vadd.f32 %v660, %v1086
        %1088 = vdwg.mxu0
        %1089 = vmatpush.bf16.msra.mxu0 %v469
        %1090 = vmatpush.bf16.msra.mxu0 %v467
        %1091 = vmatpush.bf16.msra.mxu0 %v465
        %1092 = vmatpush.bf16.msra.mxu0 %v463
        %1093 = vmatpush.bf16.msra.mxu0 %v461
        %1094 = vmatpush.bf16.msra.mxu0 %v459
        %1095 = vmatpush.bf16.msra.mxu0 %v457
        %1096 = vmatpush.bf16.msra.mxu0 %v455
        %1097 = vmatmul.bf16.gmra.mxu0 %v759
        %v1098 = vpop.f32.mrf.mxu0
        %v1099 = vadd.f32 %v1010, %v1098
        %v1100 = vpop.f32.mrf.mxu0
        %v1101 = vadd.f32 %v1012, %v1100
        %1102 = vmatmul.bf16.gmra.mxu0 %v761
        %v1103 = vpop.f32.mrf.mxu0
        %v1104 = vadd.f32 %v1015, %v1103
        %v1105 = vpop.f32.mrf.mxu0
        %v1106 = vadd.f32 %v1017, %v1105
        %1107 = vmatmul.bf16.gmra.mxu0 %v763
        %v1108 = vpop.f32.mrf.mxu0
        %v1109 = vadd.f32 %v1020, %v1108
        %v1110 = vpop.f32.mrf.mxu0
        %v1111 = vadd.f32 %v1022, %v1110
        %1112 = vmatmul.bf16.gmra.mxu0 %v765
        %v1113 = vpop.f32.mrf.mxu0
        %v1114 = vadd.f32 %v1025, %v1113
        %v1115 = vpop.f32.mrf.mxu0
        %v1116 = vadd.f32 %v1027, %v1115
        %1117 = vmatmul.bf16.gmra.mxu0 %v767
        %v1118 = vpop.f32.mrf.mxu0
        %v1119 = vadd.f32 %v1030, %v1118
        %v1120 = vpop.f32.mrf.mxu0
        %v1121 = vadd.f32 %v1032, %v1120
        %1122 = vmatmul.bf16.gmra.mxu0 %v769
        %v1123 = vpop.f32.mrf.mxu0
        %v1124 = vadd.f32 %v1035, %v1123
        %v1125 = vpop.f32.mrf.mxu0
        %v1126 = vadd.f32 %v1037, %v1125
        %1127 = vmatmul.bf16.gmra.mxu0 %v771
        %v1128 = vpop.f32.mrf.mxu0
        %v1129 = vadd.f32 %v1040, %v1128
        %v1130 = vpop.f32.mrf.mxu0
        %v1131 = vadd.f32 %v1042, %v1130
        %1132 = vmatmul.bf16.gmra.mxu0 %v773
        %v1133 = vpop.f32.mrf.mxu0
        %v1134 = vadd.f32 %v1045, %v1133
        %v1135 = vpop.f32.mrf.mxu0
        %v1136 = vadd.f32 %v1047, %v1135
        %1137 = vmatmul.bf16.gmra.mxu0 %v775
        %v1138 = vpop.f32.mrf.mxu0
        %v1139 = vadd.f32 %v1050, %v1138
        %v1140 = vpop.f32.mrf.mxu0
        %v1141 = vadd.f32 %v1052, %v1140
        %1142 = vmatmul.bf16.gmra.mxu0 %v777
        %v1143 = vpop.f32.mrf.mxu0
        %v1144 = vadd.f32 %v1055, %v1143
        %v1145 = vpop.f32.mrf.mxu0
        %v1146 = vadd.f32 %v1057, %v1145
        %1147 = vmatmul.bf16.gmra.mxu0 %v779
        %v1148 = vpop.f32.mrf.mxu0
        %v1149 = vadd.f32 %v1060, %v1148
        %v1150 = vpop.f32.mrf.mxu0
        %v1151 = vadd.f32 %v1062, %v1150
        %1152 = vmatmul.bf16.gmra.mxu0 %v781
        %v1153 = vpop.f32.mrf.mxu0
        %v1154 = vadd.f32 %v1065, %v1153
        %v1155 = vpop.f32.mrf.mxu0
        %v1156 = vadd.f32 %v1067, %v1155
        %1157 = vmatmul.bf16.gmra.mxu0 %v783
        %v1158 = vpop.f32.mrf.mxu0
        %v1159 = vadd.f32 %v1070, %v1158
        %v1160 = vpop.f32.mrf.mxu0
        %v1161 = vadd.f32 %v1072, %v1160
        %1162 = vmatmul.bf16.gmra.mxu0 %v785
        %v1163 = vpop.f32.mrf.mxu0
        %v1164 = vadd.f32 %v1075, %v1163
        %v1165 = vpop.f32.mrf.mxu0
        %v1166 = vadd.f32 %v1077, %v1165
        %1167 = vmatmul.bf16.gmra.mxu0 %v787
        %v1168 = vpop.f32.mrf.mxu0
        %v1169 = vadd.f32 %v1080, %v1168
        %v1170 = vpop.f32.mrf.mxu0
        %v1171 = vadd.f32 %v1082, %v1170
        %1172 = vmatmul.bf16.gmra.mxu0 %v789
        %v1173 = vpop.f32.mrf.mxu0
        %v1174 = vadd.f32 %v1085, %v1173
        %v1175 = vpop.f32.mrf.mxu0
        %v1176 = vadd.f32 %v1087, %v1175
        %1177 = vdwg.mxu0
        %vm1178 = vcmp.gt.f32.partialorder %v921, 0.0
        %vm1179 = vcmp.gt.f32.partialorder %v1099, 0.0
        %vm1180 = vcmp.gt.f32.partialorder %v923, 0.0
        %vm1181 = vcmp.gt.f32.partialorder %v1101, 0.0
        %vm1182 = vcmp.gt.f32.partialorder %v926, 0.0
        %vm1183 = vcmp.gt.f32.partialorder %v1104, 0.0
        %vm1184 = vcmp.gt.f32.partialorder %v928, 0.0
        %vm1185 = vcmp.gt.f32.partialorder %v1106, 0.0
        %vm1186 = vcmp.gt.f32.partialorder %v931, 0.0
        %vm1187 = vcmp.gt.f32.partialorder %v1109, 0.0
        %vm1188 = vcmp.gt.f32.partialorder %v933, 0.0
        %vm1189 = vcmp.gt.f32.partialorder %v1111, 0.0
        %vm1190 = vcmp.gt.f32.partialorder %v936, 0.0
        %vm1191 = vcmp.gt.f32.partialorder %v1114, 0.0
        %vm1192 = vcmp.gt.f32.partialorder %v938, 0.0
        %vm1193 = vcmp.gt.f32.partialorder %v1116, 0.0
        %vm1194 = vcmp.gt.f32.partialorder %v941, 0.0
        %vm1195 = vcmp.gt.f32.partialorder %v1119, 0.0
        %vm1196 = vcmp.gt.f32.partialorder %v943, 0.0
        %vm1197 = vcmp.gt.f32.partialorder %v1121, 0.0
        %vm1198 = vcmp.gt.f32.partialorder %v946, 0.0
        %vm1199 = vcmp.gt.f32.partialorder %v1124, 0.0
        %vm1200 = vcmp.gt.f32.partialorder %v948, 0.0
        %vm1201 = vcmp.gt.f32.partialorder %v1126, 0.0
        %vm1202 = vcmp.gt.f32.partialorder %v951, 0.0
        %vm1203 = vcmp.gt.f32.partialorder %v1129, 0.0
        %vm1204 = vcmp.gt.f32.partialorder %v953, 0.0
        %vm1205 = vcmp.gt.f32.partialorder %v1131, 0.0
        %vm1206 = vcmp.gt.f32.partialorder %v956, 0.0
        %vm1207 = vcmp.gt.f32.partialorder %v1134, 0.0
        %vm1208 = vcmp.gt.f32.partialorder %v958, 0.0
        %vm1209 = vcmp.gt.f32.partialorder %v1136, 0.0
        %vm1210 = vcmp.gt.f32.partialorder %v961, 0.0
        %vm1211 = vcmp.gt.f32.partialorder %v1139, 0.0
        %vm1212 = vcmp.gt.f32.partialorder %v963, 0.0
        %vm1213 = vcmp.gt.f32.partialorder %v1141, 0.0
        %vm1214 = vcmp.gt.f32.partialorder %v966, 0.0
        %vm1215 = vcmp.gt.f32.partialorder %v1144, 0.0
        %vm1216 = vcmp.gt.f32.partialorder %v968, 0.0
        %vm1217 = vcmp.gt.f32.partialorder %v1146, 0.0
        %vm1218 = vcmp.gt.f32.partialorder %v971, 0.0
        %vm1219 = vcmp.gt.f32.partialorder %v1149, 0.0
        %vm1220 = vcmp.gt.f32.partialorder %v973, 0.0
        %vm1221 = vcmp.gt.f32.partialorder %v1151, 0.0
        %vm1222 = vcmp.gt.f32.partialorder %v976, 0.0
        %vm1223 = vcmp.gt.f32.partialorder %v1154, 0.0
        %vm1224 = vcmp.gt.f32.partialorder %v978, 0.0
        %vm1225 = vcmp.gt.f32.partialorder %v1156, 0.0
        %vm1226 = vcmp.gt.f32.partialorder %v981, 0.0
        %vm1227 = vcmp.gt.f32.partialorder %v1159, 0.0
        %vm1228 = vcmp.gt.f32.partialorder %v983, 0.0
        %vm1229 = vcmp.gt.f32.partialorder %v1161, 0.0
        %vm1230 = vcmp.gt.f32.partialorder %v986, 0.0
        %vm1231 = vcmp.gt.f32.partialorder %v1164, 0.0
        %vm1232 = vcmp.gt.f32.partialorder %v988, 0.0
        %vm1233 = vcmp.gt.f32.partialorder %v1166, 0.0
        %vm1234 = vcmp.gt.f32.partialorder %v991, 0.0
        %vm1235 = vcmp.gt.f32.partialorder %v1169, 0.0
        %vm1236 = vcmp.gt.f32.partialorder %v993, 0.0
        %vm1237 = vcmp.gt.f32.partialorder %v1171, 0.0
        %vm1238 = vcmp.gt.f32.partialorder %v996, 0.0
        %vm1239 = vcmp.gt.f32.partialorder %v1174, 0.0
        %vm1240 = vcmp.gt.f32.partialorder %v998, 0.0
        %vm1241 = vcmp.gt.f32.partialorder %v1176, 0.0
        %v1242 = vstv %s404
        %v1243 = vmul.f32 %v1242, %v921
        %v1244 = vmul.f32 %v1242, %v1099
        %v1245 = vmul.f32 %v1242, %v923
        %v1246 = vmul.f32 %v1242, %v1101
        %v1247 = vmul.f32 %v1242, %v926
        %v1248 = vmul.f32 %v1242, %v1104
        %v1249 = vmul.f32 %v1242, %v928
        %v1250 = vmul.f32 %v1242, %v1106
        %v1251 = vmul.f32 %v1242, %v931
        %v1252 = vmul.f32 %v1242, %v1109
        %v1253 = vmul.f32 %v1242, %v933
        %v1254 = vmul.f32 %v1242, %v1111
        %v1255 = vmul.f32 %v1242, %v936
        %v1256 = vmul.f32 %v1242, %v1114
        %v1257 = vmul.f32 %v1242, %v938
        %v1258 = vmul.f32 %v1242, %v1116
        %v1259 = vmul.f32 %v1242, %v941
        %v1260 = vmul.f32 %v1242, %v1119
        %v1261 = vmul.f32 %v1242, %v943
        %v1262 = vmul.f32 %v1242, %v1121
        %v1263 = vmul.f32 %v1242, %v946
        %v1264 = vmul.f32 %v1242, %v1124
        %v1265 = vmul.f32 %v1242, %v948
        %v1266 = vmul.f32 %v1242, %v1126
        %v1267 = vmul.f32 %v1242, %v951
        %v1268 = vmul.f32 %v1242, %v1129
        %v1269 = vmul.f32 %v1242, %v953
        %v1270 = vmul.f32 %v1242, %v1131
        %v1271 = vmul.f32 %v1242, %v956
        %v1272 = vmul.f32 %v1242, %v1134
        %v1273 = vmul.f32 %v1242, %v958
        %v1274 = vmul.f32 %v1242, %v1136
        %v1275 = vmul.f32 %v1242, %v961
        %v1276 = vmul.f32 %v1242, %v1139
        %v1277 = vmul.f32 %v1242, %v963
        %v1278 = vmul.f32 %v1242, %v1141
        %v1279 = vmul.f32 %v1242, %v966
        %v1280 = vmul.f32 %v1242, %v1144
        %v1281 = vmul.f32 %v1242, %v968
        %v1282 = vmul.f32 %v1242, %v1146
        %v1283 = vmul.f32 %v1242, %v971
        %v1284 = vmul.f32 %v1242, %v1149
        %v1285 = vmul.f32 %v1242, %v973
        %v1286 = vmul.f32 %v1242, %v1151
        %v1287 = vmul.f32 %v1242, %v976
        %v1288 = vmul.f32 %v1242, %v1154
        %v1289 = vmul.f32 %v1242, %v978
        %v1290 = vmul.f32 %v1242, %v1156
        %v1291 = vmul.f32 %v1242, %v981
        %v1292 = vmul.f32 %v1242, %v1159
        %v1293 = vmul.f32 %v1242, %v983
        %v1294 = vmul.f32 %v1242, %v1161
        %v1295 = vmul.f32 %v1242, %v986
        %v1296 = vmul.f32 %v1242, %v1164
        %v1297 = vmul.f32 %v1242, %v988
        %v1298 = vmul.f32 %v1242, %v1166
        %v1299 = vmul.f32 %v1242, %v991
        %v1300 = vmul.f32 %v1242, %v1169
        %v1301 = vmul.f32 %v1242, %v993
        %v1302 = vmul.f32 %v1242, %v1171
        %v1303 = vmul.f32 %v1242, %v996
        %v1304 = vmul.f32 %v1242, %v1174
        %v1305 = vmul.f32 %v1242, %v998
        %v1306 = vmul.f32 %v1242, %v1176
        %v1307 = vsel %vm1178, %v921, %v1243
        %v1308 = vsel %vm1179, %v1099, %v1244
        %v1309 = vsel %vm1180, %v923, %v1245
        %v1310 = vsel %vm1181, %v1101, %v1246
        %v1311 = vsel %vm1182, %v926, %v1247
        %v1312 = vsel %vm1183, %v1104, %v1248
        %v1313 = vsel %vm1184, %v928, %v1249
        %v1314 = vsel %vm1185, %v1106, %v1250
        %v1315 = vsel %vm1186, %v931, %v1251
        %v1316 = vsel %vm1187, %v1109, %v1252
        %v1317 = vsel %vm1188, %v933, %v1253
        %v1318 = vsel %vm1189, %v1111, %v1254
        %v1319 = vsel %vm1190, %v936, %v1255
        %v1320 = vsel %vm1191, %v1114, %v1256
        %v1321 = vsel %vm1192, %v938, %v1257
        %v1322 = vsel %vm1193, %v1116, %v1258
        %v1323 = vsel %vm1194, %v941, %v1259
        %v1324 = vsel %vm1195, %v1119, %v1260
        %v1325 = vsel %vm1196, %v943, %v1261
        %v1326 = vsel %vm1197, %v1121, %v1262
        %v1327 = vsel %vm1198, %v946, %v1263
        %v1328 = vsel %vm1199, %v1124, %v1264
        %v1329 = vsel %vm1200, %v948, %v1265
        %v1330 = vsel %vm1201, %v1126, %v1266
        %v1331 = vsel %vm1202, %v951, %v1267
        %v1332 = vsel %vm1203, %v1129, %v1268
        %v1333 = vsel %vm1204, %v953, %v1269
        %v1334 = vsel %vm1205, %v1131, %v1270
        %v1335 = vsel %vm1206, %v956, %v1271
        %v1336 = vsel %vm1207, %v1134, %v1272
        %v1337 = vsel %vm1208, %v958, %v1273
        %v1338 = vsel %vm1209, %v1136, %v1274
        %v1339 = vsel %vm1210, %v961, %v1275
        %v1340 = vsel %vm1211, %v1139, %v1276
        %v1341 = vsel %vm1212, %v963, %v1277
        %v1342 = vsel %vm1213, %v1141, %v1278
        %v1343 = vsel %vm1214, %v966, %v1279
        %v1344 = vsel %vm1215, %v1144, %v1280
        %v1345 = vsel %vm1216, %v968, %v1281
        %v1346 = vsel %vm1217, %v1146, %v1282
        %v1347 = vsel %vm1218, %v971, %v1283
        %v1348 = vsel %vm1219, %v1149, %v1284
        %v1349 = vsel %vm1220, %v973, %v1285
        %v1350 = vsel %vm1221, %v1151, %v1286
        %v1351 = vsel %vm1222, %v976, %v1287
        %v1352 = vsel %vm1223, %v1154, %v1288
        %v1353 = vsel %vm1224, %v978, %v1289
        %v1354 = vsel %vm1225, %v1156, %v1290
        %v1355 = vsel %vm1226, %v981, %v1291
        %v1356 = vsel %vm1227, %v1159, %v1292
        %v1357 = vsel %vm1228, %v983, %v1293
        %v1358 = vsel %vm1229, %v1161, %v1294
        %v1359 = vsel %vm1230, %v986, %v1295
        %v1360 = vsel %vm1231, %v1164, %v1296
        %v1361 = vsel %vm1232, %v988, %v1297
        %v1362 = vsel %vm1233, %v1166, %v1298
        %v1363 = vsel %vm1234, %v991, %v1299
        %v1364 = vsel %vm1235, %v1169, %v1300
        %v1365 = vsel %vm1236, %v993, %v1301
        %v1366 = vsel %vm1237, %v1171, %v1302
        %v1367 = vsel %vm1238, %v996, %v1303
        %v1368 = vsel %vm1239, %v1174, %v1304
        %v1369 = vsel %vm1240, %v998, %v1305
        %v1370 = vsel %vm1241, %v1176, %v1306
        %v1371 = vld [vmem:[%s3] sm:$0xff]
        %v1372 = vld [vmem:[%s3 + $0x8] sm:$0xff]
        %v1373 = vld [vmem:[%s3 + $0x10] sm:$0xff]
        %v1374 = vld [vmem:[%s3 + $0x18] sm:$0xff]
        %v1375 = vld [vmem:[%s3 + $0x20] sm:$0xff]
        %v1376 = vld [vmem:[%s3 + $0x28] sm:$0xff]
        %v1377 = vld [vmem:[%s3 + $0x30] sm:$0xff]
        %v1378 = vld [vmem:[%s3 + $0x38] sm:$0xff]
        %v1379 = vld [vmem:[%s3 + $0x40] sm:$0xff]
        %v1380 = vld [vmem:[%s3 + $0x48] sm:$0xff]
        %v1381 = vld [vmem:[%s3 + $0x50] sm:$0xff]
        %v1382 = vld [vmem:[%s3 + $0x58] sm:$0xff]
        %v1383 = vld [vmem:[%s3 + $0x60] sm:$0xff]
        %v1384 = vld [vmem:[%s3 + $0x68] sm:$0xff]
        %v1385 = vld [vmem:[%s3 + $0x70] sm:$0xff]
        %v1386 = vld [vmem:[%s3 + $0x78] sm:$0xff]
        %v1387 = vld [vmem:[%s3 + $0x80] sm:$0xff]
        %v1388 = vld [vmem:[%s3 + $0x88] sm:$0xff]
        %v1389 = vld [vmem:[%s3 + $0x90] sm:$0xff]
        %v1390 = vld [vmem:[%s3 + $0x98] sm:$0xff]
        %v1391 = vld [vmem:[%s3 + $0xa0] sm:$0xff]
        %v1392 = vld [vmem:[%s3 + $0xa8] sm:$0xff]
        %v1393 = vld [vmem:[%s3 + $0xb0] sm:$0xff]
        %v1394 = vld [vmem:[%s3 + $0xb8] sm:$0xff]
        %v1395 = vld [vmem:[%s3 + $0xc0] sm:$0xff]
        %v1396 = vld [vmem:[%s3 + $0xc8] sm:$0xff]
        %v1397 = vld [vmem:[%s3 + $0xd0] sm:$0xff]
        %v1398 = vld [vmem:[%s3 + $0xd8] sm:$0xff]
        %v1399 = vld [vmem:[%s3 + $0xe0] sm:$0xff]
        %v1400 = vld [vmem:[%s3 + $0xe8] sm:$0xff]
        %v1401 = vld [vmem:[%s3 + $0xf0] sm:$0xff]
        %v1402 = vld [vmem:[%s3 + $0xf8] sm:$0xff]
        %v1403 = vpack.c.bf16 %v1309, %v1307
        %v1404 = vpack.c.bf16 %v1310, %v1308
        %v1405 = vpack.c.bf16 %v1313, %v1311
        %v1406 = vpack.c.bf16 %v1314, %v1312
        %v1407 = vpack.c.bf16 %v1317, %v1315
        %v1408 = vpack.c.bf16 %v1318, %v1316
        %v1409 = vpack.c.bf16 %v1321, %v1319
        %v1410 = vpack.c.bf16 %v1322, %v1320
        %v1411 = vpack.c.bf16 %v1325, %v1323
        %v1412 = vpack.c.bf16 %v1326, %v1324
        %v1413 = vpack.c.bf16 %v1329, %v1327
        %v1414 = vpack.c.bf16 %v1330, %v1328
        %v1415 = vpack.c.bf16 %v1333, %v1331
        %v1416 = vpack.c.bf16 %v1334, %v1332
        %v1417 = vpack.c.bf16 %v1337, %v1335
        %v1418 = vpack.c.bf16 %v1338, %v1336
        %v1419 = vpack.c.bf16 %v1341, %v1339
        %v1420 = vpack.c.bf16 %v1342, %v1340
        %v1421 = vpack.c.bf16 %v1345, %v1343
        %v1422 = vpack.c.bf16 %v1346, %v1344
        %v1423 = vpack.c.bf16 %v1349, %v1347
        %v1424 = vpack.c.bf16 %v1350, %v1348
        %v1425 = vpack.c.bf16 %v1353, %v1351
        %v1426 = vpack.c.bf16 %v1354, %v1352
        %v1427 = vpack.c.bf16 %v1357, %v1355
        %v1428 = vpack.c.bf16 %v1358, %v1356
        %v1429 = vpack.c.bf16 %v1361, %v1359
        %v1430 = vpack.c.bf16 %v1362, %v1360
        %v1431 = vpack.c.bf16 %v1365, %v1363
        %v1432 = vpack.c.bf16 %v1366, %v1364
        %v1433 = vpack.c.bf16 %v1369, %v1367
        %v1434 = vpack.c.bf16 %v1370, %v1368
        %v1435 = vld [vmem:[%s4] sm:$0xff]
        %v1436 = vld [vmem:[%s4 + $0x8] sm:$0xff]
        %v1437 = vld [vmem:[%s4 + $0x10] sm:$0xff]
        %v1438 = vld [vmem:[%s4 + $0x18] sm:$0xff]
        %v1439 = vld [vmem:[%s4 + $0x20] sm:$0xff]
        %v1440 = vld [vmem:[%s4 + $0x28] sm:$0xff]
        %v1441 = vld [vmem:[%s4 + $0x30] sm:$0xff]
        %v1442 = vld [vmem:[%s4 + $0x38] sm:$0xff]
        %v1443 = vld [vmem:[%s4 + $0x40] sm:$0xff]
        %v1444 = vld [vmem:[%s4 + $0x48] sm:$0xff]
        %v1445 = vld [vmem:[%s4 + $0x50] sm:$0xff]
        %v1446 = vld [vmem:[%s4 + $0x58] sm:$0xff]
        %v1447 = vld [vmem:[%s4 + $0x60] sm:$0xff]
        %v1448 = vld [vmem:[%s4 + $0x68] sm:$0xff]
        %v1449 = vld [vmem:[%s4 + $0x70] sm:$0xff]
        %v1450 = vld [vmem:[%s4 + $0x78] sm:$0xff]
        %v1451 = vld [vmem:[%s4 + $0x80] sm:$0xff]
        %v1452 = vld [vmem:[%s4 + $0x88] sm:$0xff]
        %v1453 = vld [vmem:[%s4 + $0x90] sm:$0xff]
        %v1454 = vld [vmem:[%s4 + $0x98] sm:$0xff]
        %v1455 = vld [vmem:[%s4 + $0xa0] sm:$0xff]
        %v1456 = vld [vmem:[%s4 + $0xa8] sm:$0xff]
        %v1457 = vld [vmem:[%s4 + $0xb0] sm:$0xff]
        %v1458 = vld [vmem:[%s4 + $0xb8] sm:$0xff]
        %v1459 = vld [vmem:[%s4 + $0xc0] sm:$0xff]
        %v1460 = vld [vmem:[%s4 + $0xc8] sm:$0xff]
        %v1461 = vld [vmem:[%s4 + $0xd0] sm:$0xff]
        %v1462 = vld [vmem:[%s4 + $0xd8] sm:$0xff]
        %v1463 = vld [vmem:[%s4 + $0xe0] sm:$0xff]
        %v1464 = vld [vmem:[%s4 + $0xe8] sm:$0xff]
        %v1465 = vld [vmem:[%s4 + $0xf0] sm:$0xff]
        %v1466 = vld [vmem:[%s4 + $0xf8] sm:$0xff]
        %1468 = vset.pattern.permute.xlu0 0
        %1469 = vperm.xlu0 %1468, %v1435
        %v1470 = vpop.permute.xlu0 %1469
        %1473 = vset.pattern.permute.xlu0 0
        %1474 = vperm.xlu0 %1473, %v1436
        %v1475 = vpop.permute.xlu0 %1474
        %1478 = vset.pattern.permute.xlu0 0
        %1479 = vperm.xlu0 %1478, %v1437
        %v1480 = vpop.permute.xlu0 %1479
        %1483 = vset.pattern.permute.xlu0 0
        %1484 = vperm.xlu0 %1483, %v1438
        %v1485 = vpop.permute.xlu0 %1484
        %1488 = vset.pattern.permute.xlu0 0
        %1489 = vperm.xlu0 %1488, %v1439
        %v1490 = vpop.permute.xlu0 %1489
        %1493 = vset.pattern.permute.xlu0 0
        %1494 = vperm.xlu0 %1493, %v1440
        %v1495 = vpop.permute.xlu0 %1494
        %1498 = vset.pattern.permute.xlu0 0
        %1499 = vperm.xlu0 %1498, %v1441
        %v1500 = vpop.permute.xlu0 %1499
        %1503 = vset.pattern.permute.xlu0 0
        %1504 = vperm.xlu0 %1503, %v1442
        %v1505 = vpop.permute.xlu0 %1504
        %1508 = vset.pattern.permute.xlu0 0
        %1509 = vperm.xlu0 %1508, %v1443
        %v1510 = vpop.permute.xlu0 %1509
        %1513 = vset.pattern.permute.xlu0 0
        %1514 = vperm.xlu0 %1513, %v1444
        %v1515 = vpop.permute.xlu0 %1514
        %1518 = vset.pattern.permute.xlu0 0
        %1519 = vperm.xlu0 %1518, %v1445
        %v1520 = vpop.permute.xlu0 %1519
        %1523 = vset.pattern.permute.xlu0 0
        %1524 = vperm.xlu0 %1523, %v1446
        %v1525 = vpop.permute.xlu0 %1524
        %1528 = vset.pattern.permute.xlu0 0
        %1529 = vperm.xlu0 %1528, %v1447
        %v1530 = vpop.permute.xlu0 %1529
        %1533 = vset.pattern.permute.xlu0 0
        %1534 = vperm.xlu0 %1533, %v1448
        %v1535 = vpop.permute.xlu0 %1534
        %1538 = vset.pattern.permute.xlu0 0
        %1539 = vperm.xlu0 %1538, %v1449
        %v1540 = vpop.permute.xlu0 %1539
        %1543 = vset.pattern.permute.xlu0 0
        %1544 = vperm.xlu0 %1543, %v1450
        %v1545 = vpop.permute.xlu0 %1544
        %1548 = vset.pattern.permute.xlu0 0
        %1549 = vperm.xlu0 %1548, %v1451
        %v1550 = vpop.permute.xlu0 %1549
        %1553 = vset.pattern.permute.xlu0 0
        %1554 = vperm.xlu0 %1553, %v1452
        %v1555 = vpop.permute.xlu0 %1554
        %1558 = vset.pattern.permute.xlu0 0
        %1559 = vperm.xlu0 %1558, %v1453
        %v1560 = vpop.permute.xlu0 %1559
        %1563 = vset.pattern.permute.xlu0 0
        %1564 = vperm.xlu0 %1563, %v1454
        %v1565 = vpop.permute.xlu0 %1564
        %1568 = vset.pattern.permute.xlu0 0
        %1569 = vperm.xlu0 %1568, %v1455
        %v1570 = vpop.permute.xlu0 %1569
        %1573 = vset.pattern.permute.xlu0 0
        %1574 = vperm.xlu0 %1573, %v1456
        %v1575 = vpop.permute.xlu0 %1574
        %1578 = vset.pattern.permute.xlu0 0
        %1579 = vperm.xlu0 %1578, %v1457
        %v1580 = vpop.permute.xlu0 %1579
        %1583 = vset.pattern.permute.xlu0 0
        %1584 = vperm.xlu0 %1583, %v1458
        %v1585 = vpop.permute.xlu0 %1584
        %1588 = vset.pattern.permute.xlu0 0
        %1589 = vperm.xlu0 %1588, %v1459
        %v1590 = vpop.permute.xlu0 %1589
        %1593 = vset.pattern.permute.xlu0 0
        %1594 = vperm.xlu0 %1593, %v1460
        %v1595 = vpop.permute.xlu0 %1594
        %1598 = vset.pattern.permute.xlu0 0
        %1599 = vperm.xlu0 %1598, %v1461
        %v1600 = vpop.permute.xlu0 %1599
        %1603 = vset.pattern.permute.xlu0 0
        %1604 = vperm.xlu0 %1603, %v1462
        %v1605 = vpop.permute.xlu0 %1604
        %1608 = vset.pattern.permute.xlu0 0
        %1609 = vperm.xlu0 %1608, %v1463
        %v1610 = vpop.permute.xlu0 %1609
        %1613 = vset.pattern.permute.xlu0 0
        %1614 = vperm.xlu0 %1613, %v1464
        %v1615 = vpop.permute.xlu0 %1614
        %1618 = vset.pattern.permute.xlu0 0
        %1619 = vperm.xlu0 %1618, %v1465
        %v1620 = vpop.permute.xlu0 %1619
        %1623 = vset.pattern.permute.xlu0 0
        %1624 = vperm.xlu0 %1623, %v1466
        %v1625 = vpop.permute.xlu0 %1624
        %v1659 = vunpack.c.l.b16 %v1371
        %v1660 = vunpack.c.h.b16 %v1371
        %v1661 = vunpack.c.l.b16 %v1372
        %v1662 = vunpack.c.h.b16 %v1372
        %v1663 = vunpack.c.l.b16 %v1373
        %v1664 = vunpack.c.h.b16 %v1373
        %v1665 = vunpack.c.l.b16 %v1374
        %v1666 = vunpack.c.h.b16 %v1374
        %v1667 = vunpack.c.l.b16 %v1375
        %v1668 = vunpack.c.h.b16 %v1375
        %v1669 = vunpack.c.l.b16 %v1376
        %v1670 = vunpack.c.h.b16 %v1376
        %v1671 = vunpack.c.l.b16 %v1377
        %v1672 = vunpack.c.h.b16 %v1377
        %v1673 = vunpack.c.l.b16 %v1378
        %v1674 = vunpack.c.h.b16 %v1378
        %v1675 = vunpack.c.l.b16 %v1379
        %v1676 = vunpack.c.h.b16 %v1379
        %v1677 = vunpack.c.l.b16 %v1380
        %v1678 = vunpack.c.h.b16 %v1380
        %v1679 = vunpack.c.l.b16 %v1381
        %v1680 = vunpack.c.h.b16 %v1381
        %v1681 = vunpack.c.l.b16 %v1382
        %v1682 = vunpack.c.h.b16 %v1382
        %v1683 = vunpack.c.l.b16 %v1383
        %v1684 = vunpack.c.h.b16 %v1383
        %v1685 = vunpack.c.l.b16 %v1384
        %v1686 = vunpack.c.h.b16 %v1384
        %v1687 = vunpack.c.l.b16 %v1385
        %v1688 = vunpack.c.h.b16 %v1385
        %v1689 = vunpack.c.l.b16 %v1386
        %v1690 = vunpack.c.h.b16 %v1386
        %v1691 = vunpack.c.l.b16 %v1387
        %v1692 = vunpack.c.h.b16 %v1387
        %v1693 = vunpack.c.l.b16 %v1388
        %v1694 = vunpack.c.h.b16 %v1388
        %v1695 = vunpack.c.l.b16 %v1389
        %v1696 = vunpack.c.h.b16 %v1389
        %v1697 = vunpack.c.l.b16 %v1390
        %v1698 = vunpack.c.h.b16 %v1390
        %v1699 = vunpack.c.l.b16 %v1391
        %v1700 = vunpack.c.h.b16 %v1391
        %v1701 = vunpack.c.l.b16 %v1392
        %v1702 = vunpack.c.h.b16 %v1392
        %v1703 = vunpack.c.l.b16 %v1393
        %v1704 = vunpack.c.h.b16 %v1393
        %v1705 = vunpack.c.l.b16 %v1394
        %v1706 = vunpack.c.h.b16 %v1394
        %v1707 = vunpack.c.l.b16 %v1395
        %v1708 = vunpack.c.h.b16 %v1395
        %v1709 = vunpack.c.l.b16 %v1396
        %v1710 = vunpack.c.h.b16 %v1396
        %v1711 = vunpack.c.l.b16 %v1397
        %v1712 = vunpack.c.h.b16 %v1397
        %v1713 = vunpack.c.l.b16 %v1398
        %v1714 = vunpack.c.h.b16 %v1398
        %v1715 = vunpack.c.l.b16 %v1399
        %v1716 = vunpack.c.h.b16 %v1399
        %v1717 = vunpack.c.l.b16 %v1400
        %v1718 = vunpack.c.h.b16 %v1400
        %v1719 = vunpack.c.l.b16 %v1401
        %v1720 = vunpack.c.h.b16 %v1401
        %v1721 = vunpack.c.l.b16 %v1402
        %v1722 = vunpack.c.h.b16 %v1402
        %v1723 = vpack.c.b16 %v1661, %v1659
        %v1724 = vpack.c.b16 %v1662, %v1660
        %v1725 = vpack.c.b16 %v1665, %v1663
        %v1726 = vpack.c.b16 %v1666, %v1664
        %v1727 = vpack.c.b16 %v1669, %v1667
        %v1728 = vpack.c.b16 %v1670, %v1668
        %v1729 = vpack.c.b16 %v1673, %v1671
        %v1730 = vpack.c.b16 %v1674, %v1672
        %v1731 = vpack.c.b16 %v1677, %v1675
        %v1732 = vpack.c.b16 %v1678, %v1676
        %v1733 = vpack.c.b16 %v1681, %v1679
        %v1734 = vpack.c.b16 %v1682, %v1680
        %v1735 = vpack.c.b16 %v1685, %v1683
        %v1736 = vpack.c.b16 %v1686, %v1684
        %v1737 = vpack.c.b16 %v1689, %v1687
        %v1738 = vpack.c.b16 %v1690, %v1688
        %v1739 = vpack.c.b16 %v1693, %v1691
        %v1740 = vpack.c.b16 %v1694, %v1692
        %v1741 = vpack.c.b16 %v1697, %v1695
        %v1742 = vpack.c.b16 %v1698, %v1696
        %v1743 = vpack.c.b16 %v1701, %v1699
        %v1744 = vpack.c.b16 %v1702, %v1700
        %v1745 = vpack.c.b16 %v1705, %v1703
        %v1746 = vpack.c.b16 %v1706, %v1704
        %v1747 = vpack.c.b16 %v1709, %v1707
        %v1748 = vpack.c.b16 %v1710, %v1708
        %v1749 = vpack.c.b16 %v1713, %v1711
        %v1750 = vpack.c.b16 %v1714, %v1712
        %v1751 = vpack.c.b16 %v1717, %v1715
        %v1752 = vpack.c.b16 %v1718, %v1716
        %v1753 = vpack.c.b16 %v1721, %v1719
        %v1754 = vpack.c.b16 %v1722, %v1720
        %1787 = vmatpush.bf16.msra.mxu0 %v1417
        %1788 = vmatpush.bf16.msra.mxu0 %v1415
        %1789 = vmatpush.bf16.msra.mxu0 %v1413
        %1790 = vmatpush.bf16.msra.mxu0 %v1411
        %1791 = vmatpush.bf16.msra.mxu0 %v1409
        %1792 = vmatpush.bf16.msra.mxu0 %v1407
        %1793 = vmatpush.bf16.msra.mxu0 %v1405
        %1794 = vmatpush.bf16.msra.mxu0 %v1403
        %1795 = vmatmul.bf16.gmra.mxu0 %v1723
        %v1796 = vpop.f32.mrf.mxu0
        %v1797 = vadd.f32 %v1470, %v1796
        %v1798 = vpop.f32.mrf.mxu0
        %v1799 = vadd.f32 %v1475, %v1798
        %1800 = vmatmul.bf16.gmra.mxu0 %v1725
        %v1801 = vpop.f32.mrf.mxu0
        %v1802 = vadd.f32 %v1480, %v1801
        %v1803 = vpop.f32.mrf.mxu0
        %v1804 = vadd.f32 %v1485, %v1803
        %1805 = vmatmul.bf16.gmra.mxu0 %v1727
        %v1806 = vpop.f32.mrf.mxu0
        %v1807 = vadd.f32 %v1490, %v1806
        %v1808 = vpop.f32.mrf.mxu0
        %v1809 = vadd.f32 %v1495, %v1808
        %1810 = vmatmul.bf16.gmra.mxu0 %v1729
        %v1811 = vpop.f32.mrf.mxu0
        %v1812 = vadd.f32 %v1500, %v1811
        %v1813 = vpop.f32.mrf.mxu0
        %v1814 = vadd.f32 %v1505, %v1813
        %1815 = vmatmul.bf16.gmra.mxu0 %v1731
        %v1816 = vpop.f32.mrf.mxu0
        %v1817 = vadd.f32 %v1510, %v1816
        %v1818 = vpop.f32.mrf.mxu0
        %v1819 = vadd.f32 %v1515, %v1818
        %1820 = vmatmul.bf16.gmra.mxu0 %v1733
        %v1821 = vpop.f32.mrf.mxu0
        %v1822 = vadd.f32 %v1520, %v1821
        %v1823 = vpop.f32.mrf.mxu0
        %v1824 = vadd.f32 %v1525, %v1823
        %1825 = vmatmul.bf16.gmra.mxu0 %v1735
        %v1826 = vpop.f32.mrf.mxu0
        %v1827 = vadd.f32 %v1530, %v1826
        %v1828 = vpop.f32.mrf.mxu0
        %v1829 = vadd.f32 %v1535, %v1828
        %1830 = vmatmul.bf16.gmra.mxu0 %v1737
        %v1831 = vpop.f32.mrf.mxu0
        %v1832 = vadd.f32 %v1540, %v1831
        %v1833 = vpop.f32.mrf.mxu0
        %v1834 = vadd.f32 %v1545, %v1833
        %1835 = vmatmul.bf16.gmra.mxu0 %v1739
        %v1836 = vpop.f32.mrf.mxu0
        %v1837 = vadd.f32 %v1550, %v1836
        %v1838 = vpop.f32.mrf.mxu0
        %v1839 = vadd.f32 %v1555, %v1838
        %1840 = vmatmul.bf16.gmra.mxu0 %v1741
        %v1841 = vpop.f32.mrf.mxu0
        %v1842 = vadd.f32 %v1560, %v1841
        %v1843 = vpop.f32.mrf.mxu0
        %v1844 = vadd.f32 %v1565, %v1843
        %1845 = vmatmul.bf16.gmra.mxu0 %v1743
        %v1846 = vpop.f32.mrf.mxu0
        %v1847 = vadd.f32 %v1570, %v1846
        %v1848 = vpop.f32.mrf.mxu0
        %v1849 = vadd.f32 %v1575, %v1848
        %1850 = vmatmul.bf16.gmra.mxu0 %v1745
        %v1851 = vpop.f32.mrf.mxu0
        %v1852 = vadd.f32 %v1580, %v1851
        %v1853 = vpop.f32.mrf.mxu0
        %v1854 = vadd.f32 %v1585, %v1853
        %1855 = vmatmul.bf16.gmra.mxu0 %v1747
        %v1856 = vpop.f32.mrf.mxu0
        %v1857 = vadd.f32 %v1590, %v1856
        %v1858 = vpop.f32.mrf.mxu0
        %v1859 = vadd.f32 %v1595, %v1858
        %1860 = vmatmul.bf16.gmra.mxu0 %v1749
        %v1861 = vpop.f32.mrf.mxu0
        %v1862 = vadd.f32 %v1600, %v1861
        %v1863 = vpop.f32.mrf.mxu0
        %v1864 = vadd.f32 %v1605, %v1863
        %1865 = vmatmul.bf16.gmra.mxu0 %v1751
        %v1866 = vpop.f32.mrf.mxu0
        %v1867 = vadd.f32 %v1610, %v1866
        %v1868 = vpop.f32.mrf.mxu0
        %v1869 = vadd.f32 %v1615, %v1868
        %1870 = vmatmul.bf16.gmra.mxu0 %v1753
        %v1871 = vpop.f32.mrf.mxu0
        %v1872 = vadd.f32 %v1620, %v1871
        %v1873 = vpop.f32.mrf.mxu0
        %v1874 = vadd.f32 %v1625, %v1873
        %1875 = vdwg.mxu0
        %1876 = vmatpush.bf16.msra.mxu0 %v1433
        %1877 = vmatpush.bf16.msra.mxu0 %v1431
        %1878 = vmatpush.bf16.msra.mxu0 %v1429
        %1879 = vmatpush.bf16.msra.mxu0 %v1427
        %1880 = vmatpush.bf16.msra.mxu0 %v1425
        %1881 = vmatpush.bf16.msra.mxu0 %v1423
        %1882 = vmatpush.bf16.msra.mxu0 %v1421
        %1883 = vmatpush.bf16.msra.mxu0 %v1419
        %1884 = vmatmul.bf16.gmra.mxu0 %v1724
        %v1885 = vpop.f32.mrf.mxu0
        %v1886 = vadd.f32 %v1797, %v1885
        %v1887 = vpop.f32.mrf.mxu0
        %v1888 = vadd.f32 %v1799, %v1887
        %1889 = vmatmul.bf16.gmra.mxu0 %v1726
        %v1890 = vpop.f32.mrf.mxu0
        %v1891 = vadd.f32 %v1802, %v1890
        %v1892 = vpop.f32.mrf.mxu0
        %v1893 = vadd.f32 %v1804, %v1892
        %1894 = vmatmul.bf16.gmra.mxu0 %v1728
        %v1895 = vpop.f32.mrf.mxu0
        %v1896 = vadd.f32 %v1807, %v1895
        %v1897 = vpop.f32.mrf.mxu0
        %v1898 = vadd.f32 %v1809, %v1897
        %1899 = vmatmul.bf16.gmra.mxu0 %v1730
        %v1900 = vpop.f32.mrf.mxu0
        %v1901 = vadd.f32 %v1812, %v1900
        %v1902 = vpop.f32.mrf.mxu0
        %v1903 = vadd.f32 %v1814, %v1902
        %1904 = vmatmul.bf16.gmra.mxu0 %v1732
        %v1905 = vpop.f32.mrf.mxu0
        %v1906 = vadd.f32 %v1817, %v1905
        %v1907 = vpop.f32.mrf.mxu0
        %v1908 = vadd.f32 %v1819, %v1907
        %1909 = vmatmul.bf16.gmra.mxu0 %v1734
        %v1910 = vpop.f32.mrf.mxu0
        %v1911 = vadd.f32 %v1822, %v1910
        %v1912 = vpop.f32.mrf.mxu0
        %v1913 = vadd.f32 %v1824, %v1912
        %1914 = vmatmul.bf16.gmra.mxu0 %v1736
        %v1915 = vpop.f32.mrf.mxu0
        %v1916 = vadd.f32 %v1827, %v1915
        %v1917 = vpop.f32.mrf.mxu0
        %v1918 = vadd.f32 %v1829, %v1917
        %1919 = vmatmul.bf16.gmra.mxu0 %v1738
        %v1920 = vpop.f32.mrf.mxu0
        %v1921 = vadd.f32 %v1832, %v1920
        %v1922 = vpop.f32.mrf.mxu0
        %v1923 = vadd.f32 %v1834, %v1922
        %1924 = vmatmul.bf16.gmra.mxu0 %v1740
        %v1925 = vpop.f32.mrf.mxu0
        %v1926 = vadd.f32 %v1837, %v1925
        %v1927 = vpop.f32.mrf.mxu0
        %v1928 = vadd.f32 %v1839, %v1927
        %1929 = vmatmul.bf16.gmra.mxu0 %v1742
        %v1930 = vpop.f32.mrf.mxu0
        %v1931 = vadd.f32 %v1842, %v1930
        %v1932 = vpop.f32.mrf.mxu0
        %v1933 = vadd.f32 %v1844, %v1932
        %1934 = vmatmul.bf16.gmra.mxu0 %v1744
        %v1935 = vpop.f32.mrf.mxu0
        %v1936 = vadd.f32 %v1847, %v1935
        %v1937 = vpop.f32.mrf.mxu0
        %v1938 = vadd.f32 %v1849, %v1937
        %1939 = vmatmul.bf16.gmra.mxu0 %v1746
        %v1940 = vpop.f32.mrf.mxu0
        %v1941 = vadd.f32 %v1852, %v1940
        %v1942 = vpop.f32.mrf.mxu0
        %v1943 = vadd.f32 %v1854, %v1942
        %1944 = vmatmul.bf16.gmra.mxu0 %v1748
        %v1945 = vpop.f32.mrf.mxu0
        %v1946 = vadd.f32 %v1857, %v1945
        %v1947 = vpop.f32.mrf.mxu0
        %v1948 = vadd.f32 %v1859, %v1947
        %1949 = vmatmul.bf16.gmra.mxu0 %v1750
        %v1950 = vpop.f32.mrf.mxu0
        %v1951 = vadd.f32 %v1862, %v1950
        %v1952 = vpop.f32.mrf.mxu0
        %v1953 = vadd.f32 %v1864, %v1952
        %1954 = vmatmul.bf16.gmra.mxu0 %v1752
        %v1955 = vpop.f32.mrf.mxu0
        %v1956 = vadd.f32 %v1867, %v1955
        %v1957 = vpop.f32.mrf.mxu0
        %v1958 = vadd.f32 %v1869, %v1957
        %1959 = vmatmul.bf16.gmra.mxu0 %v1754
        %v1960 = vpop.f32.mrf.mxu0
        %v1961 = vadd.f32 %v1872, %v1960
        %v1962 = vpop.f32.mrf.mxu0
        %v1963 = vadd.f32 %v1874, %v1962
        %1964 = vdwg.mxu0
        %1965 = vmatpush.bf16.msra.mxu0 %v1418
        %1966 = vmatpush.bf16.msra.mxu0 %v1416
        %1967 = vmatpush.bf16.msra.mxu0 %v1414
        %1968 = vmatpush.bf16.msra.mxu0 %v1412
        %1969 = vmatpush.bf16.msra.mxu0 %v1410
        %1970 = vmatpush.bf16.msra.mxu0 %v1408
        %1971 = vmatpush.bf16.msra.mxu0 %v1406
        %1972 = vmatpush.bf16.msra.mxu0 %v1404
        %1973 = vmatmul.bf16.gmra.mxu0 %v1723
        %v1974 = vpop.f32.mrf.mxu0
        %v1975 = vadd.f32 %v1470, %v1974
        %v1976 = vpop.f32.mrf.mxu0
        %v1977 = vadd.f32 %v1475, %v1976
        %1978 = vmatmul.bf16.gmra.mxu0 %v1725
        %v1979 = vpop.f32.mrf.mxu0
        %v1980 = vadd.f32 %v1480, %v1979
        %v1981 = vpop.f32.mrf.mxu0
        %v1982 = vadd.f32 %v1485, %v1981
        %1983 = vmatmul.bf16.gmra.mxu0 %v1727
        %v1984 = vpop.f32.mrf.mxu0
        %v1985 = vadd.f32 %v1490, %v1984
        %v1986 = vpop.f32.mrf.mxu0
        %v1987 = vadd.f32 %v1495, %v1986
        %1988 = vmatmul.bf16.gmra.mxu0 %v1729
        %v1989 = vpop.f32.mrf.mxu0
        %v1990 = vadd.f32 %v1500, %v1989
        %v1991 = vpop.f32.mrf.mxu0
        %v1992 = vadd.f32 %v1505, %v1991
        %1993 = vmatmul.bf16.gmra.mxu0 %v1731
        %v1994 = vpop.f32.mrf.mxu0
        %v1995 = vadd.f32 %v1510, %v1994
        %v1996 = vpop.f32.mrf.mxu0
        %v1997 = vadd.f32 %v1515, %v1996
        %1998 = vmatmul.bf16.gmra.mxu0 %v1733
        %v1999 = vpop.f32.mrf.mxu0
        %v2000 = vadd.f32 %v1520, %v1999
        %v2001 = vpop.f32.mrf.mxu0
        %v2002 = vadd.f32 %v1525, %v2001
        %2003 = vmatmul.bf16.gmra.mxu0 %v1735
        %v2004 = vpop.f32.mrf.mxu0
        %v2005 = vadd.f32 %v1530, %v2004
        %v2006 = vpop.f32.mrf.mxu0
        %v2007 = vadd.f32 %v1535, %v2006
        %2008 = vmatmul.bf16.gmra.mxu0 %v1737
        %v2009 = vpop.f32.mrf.mxu0
        %v2010 = vadd.f32 %v1540, %v2009
        %v2011 = vpop.f32.mrf.mxu0
        %v2012 = vadd.f32 %v1545, %v2011
        %2013 = vmatmul.bf16.gmra.mxu0 %v1739
        %v2014 = vpop.f32.mrf.mxu0
        %v2015 = vadd.f32 %v1550, %v2014
        %v2016 = vpop.f32.mrf.mxu0
        %v2017 = vadd.f32 %v1555, %v2016
        %2018 = vmatmul.bf16.gmra.mxu0 %v1741
        %v2019 = vpop.f32.mrf.mxu0
        %v2020 = vadd.f32 %v1560, %v2019
        %v2021 = vpop.f32.mrf.mxu0
        %v2022 = vadd.f32 %v1565, %v2021
        %2023 = vmatmul.bf16.gmra.mxu0 %v1743
        %v2024 = vpop.f32.mrf.mxu0
        %v2025 = vadd.f32 %v1570, %v2024
        %v2026 = vpop.f32.mrf.mxu0
        %v2027 = vadd.f32 %v1575, %v2026
        %2028 = vmatmul.bf16.gmra.mxu0 %v1745
        %v2029 = vpop.f32.mrf.mxu0
        %v2030 = vadd.f32 %v1580, %v2029
        %v2031 = vpop.f32.mrf.mxu0
        %v2032 = vadd.f32 %v1585, %v2031
        %2033 = vmatmul.bf16.gmra.mxu0 %v1747
        %v2034 = vpop.f32.mrf.mxu0
        %v2035 = vadd.f32 %v1590, %v2034
        %v2036 = vpop.f32.mrf.mxu0
        %v2037 = vadd.f32 %v1595, %v2036
        %2038 = vmatmul.bf16.gmra.mxu0 %v1749
        %v2039 = vpop.f32.mrf.mxu0
        %v2040 = vadd.f32 %v1600, %v2039
        %v2041 = vpop.f32.mrf.mxu0
        %v2042 = vadd.f32 %v1605, %v2041
        %2043 = vmatmul.bf16.gmra.mxu0 %v1751
        %v2044 = vpop.f32.mrf.mxu0
        %v2045 = vadd.f32 %v1610, %v2044
        %v2046 = vpop.f32.mrf.mxu0
        %v2047 = vadd.f32 %v1615, %v2046
        %2048 = vmatmul.bf16.gmra.mxu0 %v1753
        %v2049 = vpop.f32.mrf.mxu0
        %v2050 = vadd.f32 %v1620, %v2049
        %v2051 = vpop.f32.mrf.mxu0
        %v2052 = vadd.f32 %v1625, %v2051
        %2053 = vdwg.mxu0
        %2054 = vmatpush.bf16.msra.mxu0 %v1434
        %2055 = vmatpush.bf16.msra.mxu0 %v1432
        %2056 = vmatpush.bf16.msra.mxu0 %v1430
        %2057 = vmatpush.bf16.msra.mxu0 %v1428
        %2058 = vmatpush.bf16.msra.mxu0 %v1426
        %2059 = vmatpush.bf16.msra.mxu0 %v1424
        %2060 = vmatpush.bf16.msra.mxu0 %v1422
        %2061 = vmatpush.bf16.msra.mxu0 %v1420
        %2062 = vmatmul.bf16.gmra.mxu0 %v1724
        %v2063 = vpop.f32.mrf.mxu0
        %v2064 = vadd.f32 %v1975, %v2063
        %v2065 = vpop.f32.mrf.mxu0
        %v2066 = vadd.f32 %v1977, %v2065
        %2067 = vmatmul.bf16.gmra.mxu0 %v1726
        %v2068 = vpop.f32.mrf.mxu0
        %v2069 = vadd.f32 %v1980, %v2068
        %v2070 = vpop.f32.mrf.mxu0
        %v2071 = vadd.f32 %v1982, %v2070
        %2072 = vmatmul.bf16.gmra.mxu0 %v1728
        %v2073 = vpop.f32.mrf.mxu0
        %v2074 = vadd.f32 %v1985, %v2073
        %v2075 = vpop.f32.mrf.mxu0
        %v2076 = vadd.f32 %v1987, %v2075
        %2077 = vmatmul.bf16.gmra.mxu0 %v1730
        %v2078 = vpop.f32.mrf.mxu0
        %v2079 = vadd.f32 %v1990, %v2078
        %v2080 = vpop.f32.mrf.mxu0
        %v2081 = vadd.f32 %v1992, %v2080
        %2082 = vmatmul.bf16.gmra.mxu0 %v1732
        %v2083 = vpop.f32.mrf.mxu0
        %v2084 = vadd.f32 %v1995, %v2083
        %v2085 = vpop.f32.mrf.mxu0
        %v2086 = vadd.f32 %v1997, %v2085
        %2087 = vmatmul.bf16.gmra.mxu0 %v1734
        %v2088 = vpop.f32.mrf.mxu0
        %v2089 = vadd.f32 %v2000, %v2088
        %v2090 = vpop.f32.mrf.mxu0
        %v2091 = vadd.f32 %v2002, %v2090
        %2092 = vmatmul.bf16.gmra.mxu0 %v1736
        %v2093 = vpop.f32.mrf.mxu0
        %v2094 = vadd.f32 %v2005, %v2093
        %v2095 = vpop.f32.mrf.mxu0
        %v2096 = vadd.f32 %v2007, %v2095
        %2097 = vmatmul.bf16.gmra.mxu0 %v1738
        %v2098 = vpop.f32.mrf.mxu0
        %v2099 = vadd.f32 %v2010, %v2098
        %v2100 = vpop.f32.mrf.mxu0
        %v2101 = vadd.f32 %v2012, %v2100
        %2102 = vmatmul.bf16.gmra.mxu0 %v1740
        %v2103 = vpop.f32.mrf.mxu0
        %v2104 = vadd.f32 %v2015, %v2103
        %v2105 = vpop.f32.mrf.mxu0
        %v2106 = vadd.f32 %v2017, %v2105
        %2107 = vmatmul.bf16.gmra.mxu0 %v1742
        %v2108 = vpop.f32.mrf.mxu0
        %v2109 = vadd.f32 %v2020, %v2108
        %v2110 = vpop.f32.mrf.mxu0
        %v2111 = vadd.f32 %v2022, %v2110
        %2112 = vmatmul.bf16.gmra.mxu0 %v1744
        %v2113 = vpop.f32.mrf.mxu0
        %v2114 = vadd.f32 %v2025, %v2113
        %v2115 = vpop.f32.mrf.mxu0
        %v2116 = vadd.f32 %v2027, %v2115
        %2117 = vmatmul.bf16.gmra.mxu0 %v1746
        %v2118 = vpop.f32.mrf.mxu0
        %v2119 = vadd.f32 %v2030, %v2118
        %v2120 = vpop.f32.mrf.mxu0
        %v2121 = vadd.f32 %v2032, %v2120
        %2122 = vmatmul.bf16.gmra.mxu0 %v1748
        %v2123 = vpop.f32.mrf.mxu0
        %v2124 = vadd.f32 %v2035, %v2123
        %v2125 = vpop.f32.mrf.mxu0
        %v2126 = vadd.f32 %v2037, %v2125
        %2127 = vmatmul.bf16.gmra.mxu0 %v1750
        %v2128 = vpop.f32.mrf.mxu0
        %v2129 = vadd.f32 %v2040, %v2128
        %v2130 = vpop.f32.mrf.mxu0
        %v2131 = vadd.f32 %v2042, %v2130
        %2132 = vmatmul.bf16.gmra.mxu0 %v1752
        %v2133 = vpop.f32.mrf.mxu0
        %v2134 = vadd.f32 %v2045, %v2133
        %v2135 = vpop.f32.mrf.mxu0
        %v2136 = vadd.f32 %v2047, %v2135
        %2137 = vmatmul.bf16.gmra.mxu0 %v1754
        %v2138 = vpop.f32.mrf.mxu0
        %v2139 = vadd.f32 %v2050, %v2138
        %v2140 = vpop.f32.mrf.mxu0
        %v2141 = vadd.f32 %v2052, %v2140
        %2142 = vdwg.mxu0
        %v2143 = vadd.f32 %v1886, %v2064
        %2144 = vadd.xlane.f32.xlu0 %v2143
        %v2145 = vpop.xlane.xlu0 %2144
        %v2146 = vadd.f32 %v1888, %v2066
        %2147 = vadd.xlane.f32.xlu0 %v2146
        %v2148 = vpop.xlane.xlu0 %2147
        %v2149 = vadd.f32 %v1891, %v2069
        %2150 = vadd.xlane.f32.xlu0 %v2149
        %v2151 = vpop.xlane.xlu0 %2150
        %v2152 = vadd.f32 %v1893, %v2071
        %2153 = vadd.xlane.f32.xlu0 %v2152
        %v2154 = vpop.xlane.xlu0 %2153
        %v2155 = vadd.f32 %v1896, %v2074
        %2156 = vadd.xlane.f32.xlu0 %v2155
        %v2157 = vpop.xlane.xlu0 %2156
        %v2158 = vadd.f32 %v1898, %v2076
        %2159 = vadd.xlane.f32.xlu0 %v2158
        %v2160 = vpop.xlane.xlu0 %2159
        %v2161 = vadd.f32 %v1901, %v2079
        %2162 = vadd.xlane.f32.xlu0 %v2161
        %v2163 = vpop.xlane.xlu0 %2162
        %v2164 = vadd.f32 %v1903, %v2081
        %2165 = vadd.xlane.f32.xlu0 %v2164
        %v2166 = vpop.xlane.xlu0 %2165
        %v2167 = vadd.f32 %v1906, %v2084
        %2168 = vadd.xlane.f32.xlu0 %v2167
        %v2169 = vpop.xlane.xlu0 %2168
        %v2170 = vadd.f32 %v1908, %v2086
        %2171 = vadd.xlane.f32.xlu0 %v2170
        %v2172 = vpop.xlane.xlu0 %2171
        %v2173 = vadd.f32 %v1911, %v2089
        %2174 = vadd.xlane.f32.xlu0 %v2173
        %v2175 = vpop.xlane.xlu0 %2174
        %v2176 = vadd.f32 %v1913, %v2091
        %2177 = vadd.xlane.f32.xlu0 %v2176
        %v2178 = vpop.xlane.xlu0 %2177
        %v2179 = vadd.f32 %v1916, %v2094
        %2180 = vadd.xlane.f32.xlu0 %v2179
        %v2181 = vpop.xlane.xlu0 %2180
        %v2182 = vadd.f32 %v1918, %v2096
        %2183 = vadd.xlane.f32.xlu0 %v2182
        %v2184 = vpop.xlane.xlu0 %2183
        %v2185 = vadd.f32 %v1921, %v2099
        %2186 = vadd.xlane.f32.xlu0 %v2185
        %v2187 = vpop.xlane.xlu0 %2186
        %v2188 = vadd.f32 %v1923, %v2101
        %2189 = vadd.xlane.f32.xlu0 %v2188
        %v2190 = vpop.xlane.xlu0 %2189
        %v2191 = vadd.f32 %v1926, %v2104
        %2192 = vadd.xlane.f32.xlu0 %v2191
        %v2193 = vpop.xlane.xlu0 %2192
        %v2194 = vadd.f32 %v1928, %v2106
        %2195 = vadd.xlane.f32.xlu0 %v2194
        %v2196 = vpop.xlane.xlu0 %2195
        %v2197 = vadd.f32 %v1931, %v2109
        %2198 = vadd.xlane.f32.xlu0 %v2197
        %v2199 = vpop.xlane.xlu0 %2198
        %v2200 = vadd.f32 %v1933, %v2111
        %2201 = vadd.xlane.f32.xlu0 %v2200
        %v2202 = vpop.xlane.xlu0 %2201
        %v2203 = vadd.f32 %v1936, %v2114
        %2204 = vadd.xlane.f32.xlu0 %v2203
        %v2205 = vpop.xlane.xlu0 %2204
        %v2206 = vadd.f32 %v1938, %v2116
        %2207 = vadd.xlane.f32.xlu0 %v2206
        %v2208 = vpop.xlane.xlu0 %2207
        %v2209 = vadd.f32 %v1941, %v2119
        %2210 = vadd.xlane.f32.xlu0 %v2209
        %v2211 = vpop.xlane.xlu0 %2210
        %v2212 = vadd.f32 %v1943, %v2121
        %2213 = vadd.xlane.f32.xlu0 %v2212
        %v2214 = vpop.xlane.xlu0 %2213
        %v2215 = vadd.f32 %v1946, %v2124
        %2216 = vadd.xlane.f32.xlu0 %v2215
        %v2217 = vpop.xlane.xlu0 %2216
        %v2218 = vadd.f32 %v1948, %v2126
        %2219 = vadd.xlane.f32.xlu0 %v2218
        %v2220 = vpop.xlane.xlu0 %2219
        %v2221 = vadd.f32 %v1951, %v2129
        %2222 = vadd.xlane.f32.xlu0 %v2221
        %v2223 = vpop.xlane.xlu0 %2222
        %v2224 = vadd.f32 %v1953, %v2131
        %2225 = vadd.xlane.f32.xlu0 %v2224
        %v2226 = vpop.xlane.xlu0 %2225
        %v2227 = vadd.f32 %v1956, %v2134
        %2228 = vadd.xlane.f32.xlu0 %v2227
        %v2229 = vpop.xlane.xlu0 %2228
        %v2230 = vadd.f32 %v1958, %v2136
        %2231 = vadd.xlane.f32.xlu0 %v2230
        %v2232 = vpop.xlane.xlu0 %2231
        %v2233 = vadd.f32 %v1961, %v2139
        %2234 = vadd.xlane.f32.xlu0 %v2233
        %v2235 = vpop.xlane.xlu0 %2234
        %v2236 = vadd.f32 %v1963, %v2141
        %2237 = vadd.xlane.f32.xlu0 %v2236
        %v2238 = vpop.xlane.xlu0 %2237
        %v2239 = vrcp.pop 256.0
        %v2240 = vmul.f32 256.0, %v2239
        %v2241 = vsub.f32 1.0, %v2240
        %v2242 = vmul.f32 %v2239, %v2241
        %v2243 = vadd.f32 %v2239, %v2242
        %vm2244 = vweird.f32 %v2239
        %v2245 = vsel %vm2244, %v2239, %v2243
        %v2246 = vmul.f32 %v2145, %v2245
        %v2247 = vmul.f32 %v2148, %v2245
        %v2248 = vmul.f32 %v2151, %v2245
        %v2249 = vmul.f32 %v2154, %v2245
        %v2250 = vmul.f32 %v2157, %v2245
        %v2251 = vmul.f32 %v2160, %v2245
        %v2252 = vmul.f32 %v2163, %v2245
        %v2253 = vmul.f32 %v2166, %v2245
        %v2254 = vmul.f32 %v2169, %v2245
        %v2255 = vmul.f32 %v2172, %v2245
        %v2256 = vmul.f32 %v2175, %v2245
        %v2257 = vmul.f32 %v2178, %v2245
        %v2258 = vmul.f32 %v2181, %v2245
        %v2259 = vmul.f32 %v2184, %v2245
        %v2260 = vmul.f32 %v2187, %v2245
        %v2261 = vmul.f32 %v2190, %v2245
        %v2262 = vmul.f32 %v2193, %v2245
        %v2263 = vmul.f32 %v2196, %v2245
        %v2264 = vmul.f32 %v2199, %v2245
        %v2265 = vmul.f32 %v2202, %v2245
        %v2266 = vmul.f32 %v2205, %v2245
        %v2267 = vmul.f32 %v2208, %v2245
        %v2268 = vmul.f32 %v2211, %v2245
        %v2269 = vmul.f32 %v2214, %v2245
        %v2270 = vmul.f32 %v2217, %v2245
        %v2271 = vmul.f32 %v2220, %v2245
        %v2272 = vmul.f32 %v2223, %v2245
        %v2273 = vmul.f32 %v2226, %v2245
        %v2274 = vmul.f32 %v2229, %v2245
        %v2275 = vmul.f32 %v2232, %v2245
        %v2276 = vmul.f32 %v2235, %v2245
        %v2277 = vmul.f32 %v2238, %v2245
        %v2278 = vmax.f32 %v1886, %v2064
        %2279 = vmax.xlane.f32.xlu0 %v2278
        %v2280 = vpop.xlane.xlu0 %2279
        %v2281 = vmax.f32 %v1888, %v2066
        %2282 = vmax.xlane.f32.xlu0 %v2281
        %v2283 = vpop.xlane.xlu0 %2282
        %v2284 = vmax.f32 %v1891, %v2069
        %2285 = vmax.xlane.f32.xlu0 %v2284
        %v2286 = vpop.xlane.xlu0 %2285
        %v2287 = vmax.f32 %v1893, %v2071
        %2288 = vmax.xlane.f32.xlu0 %v2287
        %v2289 = vpop.xlane.xlu0 %2288
        %v2290 = vmax.f32 %v1896, %v2074
        %2291 = vmax.xlane.f32.xlu0 %v2290
        %v2292 = vpop.xlane.xlu0 %2291
        %v2293 = vmax.f32 %v1898, %v2076
        %2294 = vmax.xlane.f32.xlu0 %v2293
        %v2295 = vpop.xlane.xlu0 %2294
        %v2296 = vmax.f32 %v1901, %v2079
        %2297 = vmax.xlane.f32.xlu0 %v2296
        %v2298 = vpop.xlane.xlu0 %2297
        %v2299 = vmax.f32 %v1903, %v2081
        %2300 = vmax.xlane.f32.xlu0 %v2299
        %v2301 = vpop.xlane.xlu0 %2300
        %v2302 = vmax.f32 %v1906, %v2084
        %2303 = vmax.xlane.f32.xlu0 %v2302
        %v2304 = vpop.xlane.xlu0 %2303
        %v2305 = vmax.f32 %v1908, %v2086
        %2306 = vmax.xlane.f32.xlu0 %v2305
        %v2307 = vpop.xlane.xlu0 %2306
        %v2308 = vmax.f32 %v1911, %v2089
        %2309 = vmax.xlane.f32.xlu0 %v2308
        %v2310 = vpop.xlane.xlu0 %2309
        %v2311 = vmax.f32 %v1913, %v2091
        %2312 = vmax.xlane.f32.xlu0 %v2311
        %v2313 = vpop.xlane.xlu0 %2312
        %v2314 = vmax.f32 %v1916, %v2094
        %2315 = vmax.xlane.f32.xlu0 %v2314
        %v2316 = vpop.xlane.xlu0 %2315
        %v2317 = vmax.f32 %v1918, %v2096
        %2318 = vmax.xlane.f32.xlu0 %v2317
        %v2319 = vpop.xlane.xlu0 %2318
        %v2320 = vmax.f32 %v1921, %v2099
        %2321 = vmax.xlane.f32.xlu0 %v2320
        %v2322 = vpop.xlane.xlu0 %2321
        %v2323 = vmax.f32 %v1923, %v2101
        %2324 = vmax.xlane.f32.xlu0 %v2323
        %v2325 = vpop.xlane.xlu0 %2324
        %v2326 = vmax.f32 %v1926, %v2104
        %2327 = vmax.xlane.f32.xlu0 %v2326
        %v2328 = vpop.xlane.xlu0 %2327
        %v2329 = vmax.f32 %v1928, %v2106
        %2330 = vmax.xlane.f32.xlu0 %v2329
        %v2331 = vpop.xlane.xlu0 %2330
        %v2332 = vmax.f32 %v1931, %v2109
        %2333 = vmax.xlane.f32.xlu0 %v2332
        %v2334 = vpop.xlane.xlu0 %2333
        %v2335 = vmax.f32 %v1933, %v2111
        %2336 = vmax.xlane.f32.xlu0 %v2335
        %v2337 = vpop.xlane.xlu0 %2336
        %v2338 = vmax.f32 %v1936, %v2114
        %2339 = vmax.xlane.f32.xlu0 %v2338
        %v2340 = vpop.xlane.xlu0 %2339
        %v2341 = vmax.f32 %v1938, %v2116
        %2342 = vmax.xlane.f32.xlu0 %v2341
        %v2343 = vpop.xlane.xlu0 %2342
        %v2344 = vmax.f32 %v1941, %v2119
        %2345 = vmax.xlane.f32.xlu0 %v2344
        %v2346 = vpop.xlane.xlu0 %2345
        %v2347 = vmax.f32 %v1943, %v2121
        %2348 = vmax.xlane.f32.xlu0 %v2347
        %v2349 = vpop.xlane.xlu0 %2348
        %v2350 = vmax.f32 %v1946, %v2124
        %2351 = vmax.xlane.f32.xlu0 %v2350
        %v2352 = vpop.xlane.xlu0 %2351
        %v2353 = vmax.f32 %v1948, %v2126
        %2354 = vmax.xlane.f32.xlu0 %v2353
        %v2355 = vpop.xlane.xlu0 %2354
        %v2356 = vmax.f32 %v1951, %v2129
        %2357 = vmax.xlane.f32.xlu0 %v2356
        %v2358 = vpop.xlane.xlu0 %2357
        %v2359 = vmax.f32 %v1953, %v2131
        %2360 = vmax.xlane.f32.xlu0 %v2359
        %v2361 = vpop.xlane.xlu0 %2360
        %v2362 = vmax.f32 %v1956, %v2134
        %2363 = vmax.xlane.f32.xlu0 %v2362
        %v2364 = vpop.xlane.xlu0 %2363
        %v2365 = vmax.f32 %v1958, %v2136
        %2366 = vmax.xlane.f32.xlu0 %v2365
        %v2367 = vpop.xlane.xlu0 %2366
        %v2368 = vmax.f32 %v1961, %v2139
        %2369 = vmax.xlane.f32.xlu0 %v2368
        %v2370 = vpop.xlane.xlu0 %2369
        %v2371 = vmax.f32 %v1963, %v2141
        %2372 = vmax.xlane.f32.xlu0 %v2371
        %v2373 = vpop.xlane.xlu0 %2372
        %v2374 = vadd.f32 %v2246, %v2280
        %v2375 = vadd.f32 %v2247, %v2283
        %v2376 = vadd.f32 %v2248, %v2286
        %v2377 = vadd.f32 %v2249, %v2289
        %v2378 = vadd.f32 %v2250, %v2292
        %v2379 = vadd.f32 %v2251, %v2295
        %v2380 = vadd.f32 %v2252, %v2298
        %v2381 = vadd.f32 %v2253, %v2301
        %v2382 = vadd.f32 %v2254, %v2304
        %v2383 = vadd.f32 %v2255, %v2307
        %v2384 = vadd.f32 %v2256, %v2310
        %v2385 = vadd.f32 %v2257, %v2313
        %v2386 = vadd.f32 %v2258, %v2316
        %v2387 = vadd.f32 %v2259, %v2319
        %v2388 = vadd.f32 %v2260, %v2322
        %v2389 = vadd.f32 %v2261, %v2325
        %v2390 = vadd.f32 %v2262, %v2328
        %v2391 = vadd.f32 %v2263, %v2331
        %v2392 = vadd.f32 %v2264, %v2334
        %v2393 = vadd.f32 %v2265, %v2337
        %v2394 = vadd.f32 %v2266, %v2340
        %v2395 = vadd.f32 %v2267, %v2343
        %v2396 = vadd.f32 %v2268, %v2346
        %v2397 = vadd.f32 %v2269, %v2349
        %v2398 = vadd.f32 %v2270, %v2352
        %v2399 = vadd.f32 %v2271, %v2355
        %v2400 = vadd.f32 %v2272, %v2358
        %v2401 = vadd.f32 %v2273, %v2361
        %v2402 = vadd.f32 %v2274, %v2364
        %v2403 = vadd.f32 %v2275, %v2367
        %v2404 = vadd.f32 %v2276, %v2370
        %v2405 = vadd.f32 %v2277, %v2373
        %v2406 = vld [vmem:[%s5] sm:$0xff]
        %v2407 = vld [vmem:[%s5 + $0x8] sm:$0xff]
        %v2408 = vld [vmem:[%s5 + $0x10] sm:$0xff]
        %v2409 = vld [vmem:[%s5 + $0x18] sm:$0xff]
        %2410 = vmatpush.msra.mxu0 %v2389
        %2411 = vmatpush.msra.mxu0 %v2388
        %2412 = vmatpush.msra.mxu0 %v2387
        %2413 = vmatpush.msra.mxu0 %v2386
        %2414 = vmatpush.msra.mxu0 %v2385
        %2415 = vmatpush.msra.mxu0 %v2384
        %2416 = vmatpush.msra.mxu0 %v2383
        %2417 = vmatpush.msra.mxu0 %v2382
        %2418 = vmatpush.msra.mxu0 %v2381
        %2419 = vmatpush.msra.mxu0 %v2380
        %2420 = vmatpush.msra.mxu0 %v2379
        %2421 = vmatpush.msra.mxu0 %v2378
        %2422 = vmatpush.msra.mxu0 %v2377
        %2423 = vmatpush.msra.mxu0 %v2376
        %2424 = vmatpush.msra.mxu0 %v2375
        %2425 = vmatpush.msra.mxu0 %v2374
        %2426 = vmatmul.f32.gmra.mxu0 %v2406
        %v2427 = vpop.f32.mrf.mxu0
        %v2428 = vadd.f32 0.0, %v2427
        %2429 = vmatmul.f32.gmra.mxu0 %v2408
        %v2430 = vpop.f32.mrf.mxu0
        %v2431 = vadd.f32 0.0, %v2430
        %2432 = vdwg.mxu0
        %2433 = vmatpush.msra.mxu0 %v2405
        %2434 = vmatpush.msra.mxu0 %v2404
        %2435 = vmatpush.msra.mxu0 %v2403
        %2436 = vmatpush.msra.mxu0 %v2402
        %2437 = vmatpush.msra.mxu0 %v2401
        %2438 = vmatpush.msra.mxu0 %v2400
        %2439 = vmatpush.msra.mxu0 %v2399
        %2440 = vmatpush.msra.mxu0 %v2398
        %2441 = vmatpush.msra.mxu0 %v2397
        %2442 = vmatpush.msra.mxu0 %v2396
        %2443 = vmatpush.msra.mxu0 %v2395
        %2444 = vmatpush.msra.mxu0 %v2394
        %2445 = vmatpush.msra.mxu0 %v2393
        %2446 = vmatpush.msra.mxu0 %v2392
        %2447 = vmatpush.msra.mxu0 %v2391
        %2448 = vmatpush.msra.mxu0 %v2390
        %2449 = vmatmul.f32.gmra.mxu0 %v2407
        %v2450 = vpop.f32.mrf.mxu0
        %v2451 = vadd.f32 %v2428, %v2450
        %2452 = vmatmul.f32.gmra.mxu0 %v2409
        %v2453 = vpop.f32.mrf.mxu0
        %v2454 = vadd.f32 %v2431, %v2453
        %2455 = vdwg.mxu0
        %v2456 = vmax.f32 %v2451, 0.0
        %v2457 = vmax.f32 %v2454, 0.0
        %v2458 = vld [vmem:[%s6] sm:$0xff]
        %v2459 = vld [vmem:[%s6 + $0x8] sm:$0xff]
        %v2460 = vld [vmem:[%s6 + $0x10] sm:$0xff]
        %v2461 = vld [vmem:[%s6 + $0x18] sm:$0xff]
        %v2462 = vld [vmem:[%s6 + $0x20] sm:$0xff]
        %v2463 = vld [vmem:[%s6 + $0x28] sm:$0xff]
        %v2464 = vld [vmem:[%s6 + $0x30] sm:$0xff]
        %v2465 = vld [vmem:[%s6 + $0x38] sm:$0xff]
        %v2466 = vld [vmem:[%s6 + $0x40] sm:$0xff]
        %v2467 = vld [vmem:[%s6 + $0x48] sm:$0xff]
        %v2468 = vld [vmem:[%s6 + $0x50] sm:$0xff]
        %v2469 = vld [vmem:[%s6 + $0x58] sm:$0xff]
        %v2470 = vld [vmem:[%s6 + $0x60] sm:$0xff]
        %v2471 = vld [vmem:[%s6 + $0x68] sm:$0xff]
        %v2472 = vld [vmem:[%s6 + $0x70] sm:$0xff]
        %v2473 = vld [vmem:[%s6 + $0x78] sm:$0xff]
        %v2474 = vld [vmem:[%s6 + $0x80] sm:$0xff]
        %v2475 = vld [vmem:[%s6 + $0x88] sm:$0xff]
        %v2476 = vld [vmem:[%s6 + $0x90] sm:$0xff]
        %v2477 = vld [vmem:[%s6 + $0x98] sm:$0xff]
        %v2478 = vld [vmem:[%s6 + $0xa0] sm:$0xff]
        %v2479 = vld [vmem:[%s6 + $0xa8] sm:$0xff]
        %v2480 = vld [vmem:[%s6 + $0xb0] sm:$0xff]
        %v2481 = vld [vmem:[%s6 + $0xb8] sm:$0xff]
        %v2482 = vld [vmem:[%s6 + $0xc0] sm:$0xff]
        %v2483 = vld [vmem:[%s6 + $0xc8] sm:$0xff]
        %v2484 = vld [vmem:[%s6 + $0xd0] sm:$0xff]
        %v2485 = vld [vmem:[%s6 + $0xd8] sm:$0xff]
        %v2486 = vld [vmem:[%s6 + $0xe0] sm:$0xff]
        %v2487 = vld [vmem:[%s6 + $0xe8] sm:$0xff]
        %v2488 = vld [vmem:[%s6 + $0xf0] sm:$0xff]
        %v2489 = vld [vmem:[%s6 + $0xf8] sm:$0xff]
        %vm2490 = vcmask 130048
        %v2492 = vsel %vm2490, %v2458, 0
        %v2495 = vsel %vm2490, %v2459, 0
        %v2498 = vsel %vm2490, %v2460, 0
        %v2501 = vsel %vm2490, %v2461, 0
        %v2504 = vsel %vm2490, %v2462, 0
        %v2507 = vsel %vm2490, %v2463, 0
        %v2510 = vsel %vm2490, %v2464, 0
        %v2513 = vsel %vm2490, %v2465, 0
        %v2516 = vsel %vm2490, %v2466, 0
        %v2519 = vsel %vm2490, %v2467, 0
        %v2522 = vsel %vm2490, %v2468, 0
        %v2525 = vsel %vm2490, %v2469, 0
        %v2528 = vsel %vm2490, %v2470, 0
        %v2531 = vsel %vm2490, %v2471, 0
        %v2534 = vsel %vm2490, %v2472, 0
        %v2537 = vsel %vm2490, %v2473, 0
        %v2540 = vsel %vm2490, %v2474, 0
        %v2543 = vsel %vm2490, %v2475, 0
        %v2546 = vsel %vm2490, %v2476, 0
        %v2549 = vsel %vm2490, %v2477, 0
        %v2552 = vsel %vm2490, %v2478, 0
        %v2555 = vsel %vm2490, %v2479, 0
        %v2558 = vsel %vm2490, %v2480, 0
        %v2561 = vsel %vm2490, %v2481, 0
        %v2564 = vsel %vm2490, %v2482, 0
        %v2567 = vsel %vm2490, %v2483, 0
        %v2570 = vsel %vm2490, %v2484, 0
        %v2573 = vsel %vm2490, %v2485, 0
        %v2576 = vsel %vm2490, %v2486, 0
        %v2579 = vsel %vm2490, %v2487, 0
        %v2582 = vsel %vm2490, %v2488, 0
        %v2585 = vsel %vm2490, %v2489, 0
        %2587 = vmatpush.msra.mxu0 0.0
        %2588 = vmatpush.msra.mxu0 0.0
        %2589 = vmatpush.msra.mxu0 0.0
        %2590 = vmatpush.msra.mxu0 0.0
        %2591 = vmatpush.msra.mxu0 0.0
        %2592 = vmatpush.msra.mxu0 0.0
        %2593 = vmatpush.msra.mxu0 0.0
        %2594 = vmatpush.msra.mxu0 0.0
        %2595 = vmatpush.msra.mxu0 0.0
        %2596 = vmatpush.msra.mxu0 0.0
        %2597 = vmatpush.msra.mxu0 0.0
        %2598 = vmatpush.msra.mxu0 0.0
        %2599 = vmatpush.msra.mxu0 0.0
        %2600 = vmatpush.msra.mxu0 0.0
        %2601 = vmatpush.msra.mxu0 %v2457
        %2602 = vmatpush.msra.mxu0 %v2456
        %2603 = vmatmul.f32.gmra.mxu0 %v2492
        %v2604 = vpop.f32.mrf.mxu0
        %v2605 = vadd.f32 0.0, %v2604
        %2606 = vmatmul.f32.gmra.mxu0 %v2495
        %v2607 = vpop.f32.mrf.mxu0
        %v2608 = vadd.f32 0.0, %v2607
        %2609 = vmatmul.f32.gmra.mxu0 %v2498
        %v2610 = vpop.f32.mrf.mxu0
        %v2611 = vadd.f32 0.0, %v2610
        %2612 = vmatmul.f32.gmra.mxu0 %v2501
        %v2613 = vpop.f32.mrf.mxu0
        %v2614 = vadd.f32 0.0, %v2613
        %2615 = vmatmul.f32.gmra.mxu0 %v2504
        %v2616 = vpop.f32.mrf.mxu0
        %v2617 = vadd.f32 0.0, %v2616
        %2618 = vmatmul.f32.gmra.mxu0 %v2507
        %v2619 = vpop.f32.mrf.mxu0
        %v2620 = vadd.f32 0.0, %v2619
        %2621 = vmatmul.f32.gmra.mxu0 %v2510
        %v2622 = vpop.f32.mrf.mxu0
        %v2623 = vadd.f32 0.0, %v2622
        %2624 = vmatmul.f32.gmra.mxu0 %v2513
        %v2625 = vpop.f32.mrf.mxu0
        %v2626 = vadd.f32 0.0, %v2625
        %2627 = vmatmul.f32.gmra.mxu0 %v2516
        %v2628 = vpop.f32.mrf.mxu0
        %v2629 = vadd.f32 0.0, %v2628
        %2630 = vmatmul.f32.gmra.mxu0 %v2519
        %v2631 = vpop.f32.mrf.mxu0
        %v2632 = vadd.f32 0.0, %v2631
        %2633 = vmatmul.f32.gmra.mxu0 %v2522
        %v2634 = vpop.f32.mrf.mxu0
        %v2635 = vadd.f32 0.0, %v2634
        %2636 = vmatmul.f32.gmra.mxu0 %v2525
        %v2637 = vpop.f32.mrf.mxu0
        %v2638 = vadd.f32 0.0, %v2637
        %2639 = vmatmul.f32.gmra.mxu0 %v2528
        %v2640 = vpop.f32.mrf.mxu0
        %v2641 = vadd.f32 0.0, %v2640
        %2642 = vmatmul.f32.gmra.mxu0 %v2531
        %v2643 = vpop.f32.mrf.mxu0
        %v2644 = vadd.f32 0.0, %v2643
        %2645 = vmatmul.f32.gmra.mxu0 %v2534
        %v2646 = vpop.f32.mrf.mxu0
        %v2647 = vadd.f32 0.0, %v2646
        %2648 = vmatmul.f32.gmra.mxu0 %v2537
        %v2649 = vpop.f32.mrf.mxu0
        %v2650 = vadd.f32 0.0, %v2649
        %2651 = vmatmul.f32.gmra.mxu0 %v2540
        %v2652 = vpop.f32.mrf.mxu0
        %v2653 = vadd.f32 0.0, %v2652
        %2654 = vmatmul.f32.gmra.mxu0 %v2543
        %v2655 = vpop.f32.mrf.mxu0
        %v2656 = vadd.f32 0.0, %v2655
        %2657 = vmatmul.f32.gmra.mxu0 %v2546
        %v2658 = vpop.f32.mrf.mxu0
        %v2659 = vadd.f32 0.0, %v2658
        %2660 = vmatmul.f32.gmra.mxu0 %v2549
        %v2661 = vpop.f32.mrf.mxu0
        %v2662 = vadd.f32 0.0, %v2661
        %2663 = vmatmul.f32.gmra.mxu0 %v2552
        %v2664 = vpop.f32.mrf.mxu0
        %v2665 = vadd.f32 0.0, %v2664
        %2666 = vmatmul.f32.gmra.mxu0 %v2555
        %v2667 = vpop.f32.mrf.mxu0
        %v2668 = vadd.f32 0.0, %v2667
        %2669 = vmatmul.f32.gmra.mxu0 %v2558
        %v2670 = vpop.f32.mrf.mxu0
        %v2671 = vadd.f32 0.0, %v2670
        %2672 = vmatmul.f32.gmra.mxu0 %v2561
        %v2673 = vpop.f32.mrf.mxu0
        %v2674 = vadd.f32 0.0, %v2673
        %2675 = vmatmul.f32.gmra.mxu0 %v2564
        %v2676 = vpop.f32.mrf.mxu0
        %v2677 = vadd.f32 0.0, %v2676
        %2678 = vmatmul.f32.gmra.mxu0 %v2567
        %v2679 = vpop.f32.mrf.mxu0
        %v2680 = vadd.f32 0.0, %v2679
        %2681 = vmatmul.f32.gmra.mxu0 %v2570
        %v2682 = vpop.f32.mrf.mxu0
        %v2683 = vadd.f32 0.0, %v2682
        %2684 = vmatmul.f32.gmra.mxu0 %v2573
        %v2685 = vpop.f32.mrf.mxu0
        %v2686 = vadd.f32 0.0, %v2685
        %2687 = vmatmul.f32.gmra.mxu0 %v2576
        %v2688 = vpop.f32.mrf.mxu0
        %v2689 = vadd.f32 0.0, %v2688
        %2690 = vmatmul.f32.gmra.mxu0 %v2579
        %v2691 = vpop.f32.mrf.mxu0
        %v2692 = vadd.f32 0.0, %v2691
        %2693 = vmatmul.f32.gmra.mxu0 %v2582
        %v2694 = vpop.f32.mrf.mxu0
        %v2695 = vadd.f32 0.0, %v2694
        %2696 = vmatmul.f32.gmra.mxu0 %v2585
        %v2697 = vpop.f32.mrf.mxu0
        %v2698 = vadd.f32 0.0, %v2697
        %2699 = vdwg.mxu0
        %v2700 = vxor.u32 %v2605, 2147483648
        %v2701 = vxor.u32 %v2608, 2147483648
        %v2702 = vxor.u32 %v2611, 2147483648
        %v2703 = vxor.u32 %v2614, 2147483648
        %v2704 = vxor.u32 %v2617, 2147483648
        %v2705 = vxor.u32 %v2620, 2147483648
        %v2706 = vxor.u32 %v2623, 2147483648
        %v2707 = vxor.u32 %v2626, 2147483648
        %v2708 = vxor.u32 %v2629, 2147483648
        %v2709 = vxor.u32 %v2632, 2147483648
        %v2710 = vxor.u32 %v2635, 2147483648
        %v2711 = vxor.u32 %v2638, 2147483648
        %v2712 = vxor.u32 %v2641, 2147483648
        %v2713 = vxor.u32 %v2644, 2147483648
        %v2714 = vxor.u32 %v2647, 2147483648
        %v2715 = vxor.u32 %v2650, 2147483648
        %v2716 = vxor.u32 %v2653, 2147483648
        %v2717 = vxor.u32 %v2656, 2147483648
        %v2718 = vxor.u32 %v2659, 2147483648
        %v2719 = vxor.u32 %v2662, 2147483648
        %v2720 = vxor.u32 %v2665, 2147483648
        %v2721 = vxor.u32 %v2668, 2147483648
        %v2722 = vxor.u32 %v2671, 2147483648
        %v2723 = vxor.u32 %v2674, 2147483648
        %v2724 = vxor.u32 %v2677, 2147483648
        %v2725 = vxor.u32 %v2680, 2147483648
        %v2726 = vxor.u32 %v2683, 2147483648
        %v2727 = vxor.u32 %v2686, 2147483648
        %v2728 = vxor.u32 %v2689, 2147483648
        %v2729 = vxor.u32 %v2692, 2147483648
        %v2730 = vxor.u32 %v2695, 2147483648
        %v2731 = vxor.u32 %v2698, 2147483648
        %v2732 = vmul.f32 %v2700, 1.442695
        %v2733 = vpow.pop %v2732
        %v2734 = vmul.f32 %v2701, 1.442695
        %v2735 = vpow.pop %v2734
        %v2736 = vmul.f32 %v2702, 1.442695
        %v2737 = vpow.pop %v2736
        %v2738 = vmul.f32 %v2703, 1.442695
        %v2739 = vpow.pop %v2738
        %v2740 = vmul.f32 %v2704, 1.442695
        %v2741 = vpow.pop %v2740
        %v2742 = vmul.f32 %v2705, 1.442695
        %v2743 = vpow.pop %v2742
        %v2744 = vmul.f32 %v2706, 1.442695
        %v2745 = vpow.pop %v2744
        %v2746 = vmul.f32 %v2707, 1.442695
        %v2747 = vpow.pop %v2746
        %v2748 = vmul.f32 %v2708, 1.442695
        %v2749 = vpow.pop %v2748
        %v2750 = vmul.f32 %v2709, 1.442695
        %v2751 = vpow.pop %v2750
        %v2752 = vmul.f32 %v2710, 1.442695
        %v2753 = vpow.pop %v2752
        %v2754 = vmul.f32 %v2711, 1.442695
        %v2755 = vpow.pop %v2754
        %v2756 = vmul.f32 %v2712, 1.442695
        %v2757 = vpow.pop %v2756
        %v2758 = vmul.f32 %v2713, 1.442695
        %v2759 = vpow.pop %v2758
        %v2760 = vmul.f32 %v2714, 1.442695
        %v2761 = vpow.pop %v2760
        %v2762 = vmul.f32 %v2715, 1.442695
        %v2763 = vpow.pop %v2762
        %v2764 = vmul.f32 %v2716, 1.442695
        %v2765 = vpow.pop %v2764
        %v2766 = vmul.f32 %v2717, 1.442695
        %v2767 = vpow.pop %v2766
        %v2768 = vmul.f32 %v2718, 1.442695
        %v2769 = vpow.pop %v2768
        %v2770 = vmul.f32 %v2719, 1.442695
        %v2771 = vpow.pop %v2770
        %v2772 = vmul.f32 %v2720, 1.442695
        %v2773 = vpow.pop %v2772
        %v2774 = vmul.f32 %v2721, 1.442695
        %v2775 = vpow.pop %v2774
        %v2776 = vmul.f32 %v2722, 1.442695
        %v2777 = vpow.pop %v2776
        %v2778 = vmul.f32 %v2723, 1.442695
        %v2779 = vpow.pop %v2778
        %v2780 = vmul.f32 %v2724, 1.442695
        %v2781 = vpow.pop %v2780
        %v2782 = vmul.f32 %v2725, 1.442695
        %v2783 = vpow.pop %v2782
        %v2784 = vmul.f32 %v2726, 1.442695
        %v2785 = vpow.pop %v2784
        %v2786 = vmul.f32 %v2727, 1.442695
        %v2787 = vpow.pop %v2786
        %v2788 = vmul.f32 %v2728, 1.442695
        %v2789 = vpow.pop %v2788
        %v2790 = vmul.f32 %v2729, 1.442695
        %v2791 = vpow.pop %v2790
        %v2792 = vmul.f32 %v2730, 1.442695
        %v2793 = vpow.pop %v2792
        %v2794 = vmul.f32 %v2731, 1.442695
        %v2795 = vpow.pop %v2794
        %v2796 = vadd.f32 %v2733, 1.0
        %v2797 = vadd.f32 %v2735, 1.0
        %v2798 = vadd.f32 %v2737, 1.0
        %v2799 = vadd.f32 %v2739, 1.0
        %v2800 = vadd.f32 %v2741, 1.0
        %v2801 = vadd.f32 %v2743, 1.0
        %v2802 = vadd.f32 %v2745, 1.0
        %v2803 = vadd.f32 %v2747, 1.0
        %v2804 = vadd.f32 %v2749, 1.0
        %v2805 = vadd.f32 %v2751, 1.0
        %v2806 = vadd.f32 %v2753, 1.0
        %v2807 = vadd.f32 %v2755, 1.0
        %v2808 = vadd.f32 %v2757, 1.0
        %v2809 = vadd.f32 %v2759, 1.0
        %v2810 = vadd.f32 %v2761, 1.0
        %v2811 = vadd.f32 %v2763, 1.0
        %v2812 = vadd.f32 %v2765, 1.0
        %v2813 = vadd.f32 %v2767, 1.0
        %v2814 = vadd.f32 %v2769, 1.0
        %v2815 = vadd.f32 %v2771, 1.0
        %v2816 = vadd.f32 %v2773, 1.0
        %v2817 = vadd.f32 %v2775, 1.0
        %v2818 = vadd.f32 %v2777, 1.0
        %v2819 = vadd.f32 %v2779, 1.0
        %v2820 = vadd.f32 %v2781, 1.0
        %v2821 = vadd.f32 %v2783, 1.0
        %v2822 = vadd.f32 %v2785, 1.0
        %v2823 = vadd.f32 %v2787, 1.0
        %v2824 = vadd.f32 %v2789, 1.0
        %v2825 = vadd.f32 %v2791, 1.0
        %v2826 = vadd.f32 %v2793, 1.0
        %v2827 = vadd.f32 %v2795, 1.0
        %v2828 = vrcp.pop %v2796
        %v2829 = vmul.f32 %v2796, %v2828
        %v2830 = vsub.f32 1.0, %v2829
        %v2831 = vmul.f32 %v2828, %v2830
        %v2832 = vadd.f32 %v2828, %v2831
        %vm2833 = vweird.f32 %v2796
        %vm2834 = vweird.f32 %v2828
        %vm2835 = vmor %vm2833, %vm2834
        %v2836 = vsel %vm2835, %v2828, %v2832
        %v2837 = vand.u32 2147483647, %v2796
        %vm2838 = vcmp.eq.f32.partialorder %v2837, 8.507059e+37
        %v2839 = vand.u32 %v2796, 2147483648
        %v2840 = vor.u32 1.1754944e-38, %v2839
        %v2841 = vsel %vm2838, %v2840, %v2836
        %v2842 = vmul.f32 1.0, %v2841
        %v2843 = vrcp.pop %v2797
        %v2844 = vmul.f32 %v2797, %v2843
        %v2845 = vsub.f32 1.0, %v2844
        %v2846 = vmul.f32 %v2843, %v2845
        %v2847 = vadd.f32 %v2843, %v2846
        %vm2848 = vweird.f32 %v2797
        %vm2849 = vweird.f32 %v2843
        %vm2850 = vmor %vm2848, %vm2849
        %v2851 = vsel %vm2850, %v2843, %v2847
        %v2852 = vand.u32 2147483647, %v2797
        %vm2853 = vcmp.eq.f32.partialorder %v2852, 8.507059e+37
        %v2854 = vand.u32 %v2797, 2147483648
        %v2855 = vor.u32 1.1754944e-38, %v2854
        %v2856 = vsel %vm2853, %v2855, %v2851
        %v2857 = vmul.f32 1.0, %v2856
        %v2858 = vrcp.pop %v2798
        %v2859 = vmul.f32 %v2798, %v2858
        %v2860 = vsub.f32 1.0, %v2859
        %v2861 = vmul.f32 %v2858, %v2860
        %v2862 = vadd.f32 %v2858, %v2861
        %vm2863 = vweird.f32 %v2798
        %vm2864 = vweird.f32 %v2858
        %vm2865 = vmor %vm2863, %vm2864
        %v2866 = vsel %vm2865, %v2858, %v2862
        %v2867 = vand.u32 2147483647, %v2798
        %vm2868 = vcmp.eq.f32.partialorder %v2867, 8.507059e+37
        %v2869 = vand.u32 %v2798, 2147483648
        %v2870 = vor.u32 1.1754944e-38, %v2869
        %v2871 = vsel %vm2868, %v2870, %v2866
        %v2872 = vmul.f32 1.0, %v2871
        %v2873 = vrcp.pop %v2799
        %v2874 = vmul.f32 %v2799, %v2873
        %v2875 = vsub.f32 1.0, %v2874
        %v2876 = vmul.f32 %v2873, %v2875
        %v2877 = vadd.f32 %v2873, %v2876
        %vm2878 = vweird.f32 %v2799
        %vm2879 = vweird.f32 %v2873
        %vm2880 = vmor %vm2878, %vm2879
        %v2881 = vsel %vm2880, %v2873, %v2877
        %v2882 = vand.u32 2147483647, %v2799
        %vm2883 = vcmp.eq.f32.partialorder %v2882, 8.507059e+37
        %v2884 = vand.u32 %v2799, 2147483648
        %v2885 = vor.u32 1.1754944e-38, %v2884
        %v2886 = vsel %vm2883, %v2885, %v2881
        %v2887 = vmul.f32 1.0, %v2886
        %v2888 = vrcp.pop %v2800
        %v2889 = vmul.f32 %v2800, %v2888
        %v2890 = vsub.f32 1.0, %v2889
        %v2891 = vmul.f32 %v2888, %v2890
        %v2892 = vadd.f32 %v2888, %v2891
        %vm2893 = vweird.f32 %v2800
        %vm2894 = vweird.f32 %v2888
        %vm2895 = vmor %vm2893, %vm2894
        %v2896 = vsel %vm2895, %v2888, %v2892
        %v2897 = vand.u32 2147483647, %v2800
        %vm2898 = vcmp.eq.f32.partialorder %v2897, 8.507059e+37
        %v2899 = vand.u32 %v2800, 2147483648
        %v2900 = vor.u32 1.1754944e-38, %v2899
        %v2901 = vsel %vm2898, %v2900, %v2896
        %v2902 = vmul.f32 1.0, %v2901
        %v2903 = vrcp.pop %v2801
        %v2904 = vmul.f32 %v2801, %v2903
        %v2905 = vsub.f32 1.0, %v2904
        %v2906 = vmul.f32 %v2903, %v2905
        %v2907 = vadd.f32 %v2903, %v2906
        %vm2908 = vweird.f32 %v2801
        %vm2909 = vweird.f32 %v2903
        %vm2910 = vmor %vm2908, %vm2909
        %v2911 = vsel %vm2910, %v2903, %v2907
        %v2912 = vand.u32 2147483647, %v2801
        %vm2913 = vcmp.eq.f32.partialorder %v2912, 8.507059e+37
        %v2914 = vand.u32 %v2801, 2147483648
        %v2915 = vor.u32 1.1754944e-38, %v2914
        %v2916 = vsel %vm2913, %v2915, %v2911
        %v2917 = vmul.f32 1.0, %v2916
        %v2918 = vrcp.pop %v2802
        %v2919 = vmul.f32 %v2802, %v2918
        %v2920 = vsub.f32 1.0, %v2919
        %v2921 = vmul.f32 %v2918, %v2920
        %v2922 = vadd.f32 %v2918, %v2921
        %vm2923 = vweird.f32 %v2802
        %vm2924 = vweird.f32 %v2918
        %vm2925 = vmor %vm2923, %vm2924
        %v2926 = vsel %vm2925, %v2918, %v2922
        %v2927 = vand.u32 2147483647, %v2802
        %vm2928 = vcmp.eq.f32.partialorder %v2927, 8.507059e+37
        %v2929 = vand.u32 %v2802, 2147483648
        %v2930 = vor.u32 1.1754944e-38, %v2929
        %v2931 = vsel %vm2928, %v2930, %v2926
        %v2932 = vmul.f32 1.0, %v2931
        %v2933 = vrcp.pop %v2803
        %v2934 = vmul.f32 %v2803, %v2933
        %v2935 = vsub.f32 1.0, %v2934
        %v2936 = vmul.f32 %v2933, %v2935
        %v2937 = vadd.f32 %v2933, %v2936
        %vm2938 = vweird.f32 %v2803
        %vm2939 = vweird.f32 %v2933
        %vm2940 = vmor %vm2938, %vm2939
        %v2941 = vsel %vm2940, %v2933, %v2937
        %v2942 = vand.u32 2147483647, %v2803
        %vm2943 = vcmp.eq.f32.partialorder %v2942, 8.507059e+37
        %v2944 = vand.u32 %v2803, 2147483648
        %v2945 = vor.u32 1.1754944e-38, %v2944
        %v2946 = vsel %vm2943, %v2945, %v2941
        %v2947 = vmul.f32 1.0, %v2946
        %v2948 = vrcp.pop %v2804
        %v2949 = vmul.f32 %v2804, %v2948
        %v2950 = vsub.f32 1.0, %v2949
        %v2951 = vmul.f32 %v2948, %v2950
        %v2952 = vadd.f32 %v2948, %v2951
        %vm2953 = vweird.f32 %v2804
        %vm2954 = vweird.f32 %v2948
        %vm2955 = vmor %vm2953, %vm2954
        %v2956 = vsel %vm2955, %v2948, %v2952
        %v2957 = vand.u32 2147483647, %v2804
        %vm2958 = vcmp.eq.f32.partialorder %v2957, 8.507059e+37
        %v2959 = vand.u32 %v2804, 2147483648
        %v2960 = vor.u32 1.1754944e-38, %v2959
        %v2961 = vsel %vm2958, %v2960, %v2956
        %v2962 = vmul.f32 1.0, %v2961
        %v2963 = vrcp.pop %v2805
        %v2964 = vmul.f32 %v2805, %v2963
        %v2965 = vsub.f32 1.0, %v2964
        %v2966 = vmul.f32 %v2963, %v2965
        %v2967 = vadd.f32 %v2963, %v2966
        %vm2968 = vweird.f32 %v2805
        %vm2969 = vweird.f32 %v2963
        %vm2970 = vmor %vm2968, %vm2969
        %v2971 = vsel %vm2970, %v2963, %v2967
        %v2972 = vand.u32 2147483647, %v2805
        %vm2973 = vcmp.eq.f32.partialorder %v2972, 8.507059e+37
        %v2974 = vand.u32 %v2805, 2147483648
        %v2975 = vor.u32 1.1754944e-38, %v2974
        %v2976 = vsel %vm2973, %v2975, %v2971
        %v2977 = vmul.f32 1.0, %v2976
        %v2978 = vrcp.pop %v2806
        %v2979 = vmul.f32 %v2806, %v2978
        %v2980 = vsub.f32 1.0, %v2979
        %v2981 = vmul.f32 %v2978, %v2980
        %v2982 = vadd.f32 %v2978, %v2981
        %vm2983 = vweird.f32 %v2806
        %vm2984 = vweird.f32 %v2978
        %vm2985 = vmor %vm2983, %vm2984
        %v2986 = vsel %vm2985, %v2978, %v2982
        %v2987 = vand.u32 2147483647, %v2806
        %vm2988 = vcmp.eq.f32.partialorder %v2987, 8.507059e+37
        %v2989 = vand.u32 %v2806, 2147483648
        %v2990 = vor.u32 1.1754944e-38, %v2989
        %v2991 = vsel %vm2988, %v2990, %v2986
        %v2992 = vmul.f32 1.0, %v2991
        %v2993 = vrcp.pop %v2807
        %v2994 = vmul.f32 %v2807, %v2993
        %v2995 = vsub.f32 1.0, %v2994
        %v2996 = vmul.f32 %v2993, %v2995
        %v2997 = vadd.f32 %v2993, %v2996
        %vm2998 = vweird.f32 %v2807
        %vm2999 = vweird.f32 %v2993
        %vm3000 = vmor %vm2998, %vm2999
        %v3001 = vsel %vm3000, %v2993, %v2997
        %v3002 = vand.u32 2147483647, %v2807
        %vm3003 = vcmp.eq.f32.partialorder %v3002, 8.507059e+37
        %v3004 = vand.u32 %v2807, 2147483648
        %v3005 = vor.u32 1.1754944e-38, %v3004
        %v3006 = vsel %vm3003, %v3005, %v3001
        %v3007 = vmul.f32 1.0, %v3006
        %v3008 = vrcp.pop %v2808
        %v3009 = vmul.f32 %v2808, %v3008
        %v3010 = vsub.f32 1.0, %v3009
        %v3011 = vmul.f32 %v3008, %v3010
        %v3012 = vadd.f32 %v3008, %v3011
        %vm3013 = vweird.f32 %v2808
        %vm3014 = vweird.f32 %v3008
        %vm3015 = vmor %vm3013, %vm3014
        %v3016 = vsel %vm3015, %v3008, %v3012
        %v3017 = vand.u32 2147483647, %v2808
        %vm3018 = vcmp.eq.f32.partialorder %v3017, 8.507059e+37
        %v3019 = vand.u32 %v2808, 2147483648
        %v3020 = vor.u32 1.1754944e-38, %v3019
        %v3021 = vsel %vm3018, %v3020, %v3016
        %v3022 = vmul.f32 1.0, %v3021
        %v3023 = vrcp.pop %v2809
        %v3024 = vmul.f32 %v2809, %v3023
        %v3025 = vsub.f32 1.0, %v3024
        %v3026 = vmul.f32 %v3023, %v3025
        %v3027 = vadd.f32 %v3023, %v3026
        %vm3028 = vweird.f32 %v2809
        %vm3029 = vweird.f32 %v3023
        %vm3030 = vmor %vm3028, %vm3029
        %v3031 = vsel %vm3030, %v3023, %v3027
        %v3032 = vand.u32 2147483647, %v2809
        %vm3033 = vcmp.eq.f32.partialorder %v3032, 8.507059e+37
        %v3034 = vand.u32 %v2809, 2147483648
        %v3035 = vor.u32 1.1754944e-38, %v3034
        %v3036 = vsel %vm3033, %v3035, %v3031
        %v3037 = vmul.f32 1.0, %v3036
        %v3038 = vrcp.pop %v2810
        %v3039 = vmul.f32 %v2810, %v3038
        %v3040 = vsub.f32 1.0, %v3039
        %v3041 = vmul.f32 %v3038, %v3040
        %v3042 = vadd.f32 %v3038, %v3041
        %vm3043 = vweird.f32 %v2810
        %vm3044 = vweird.f32 %v3038
        %vm3045 = vmor %vm3043, %vm3044
        %v3046 = vsel %vm3045, %v3038, %v3042
        %v3047 = vand.u32 2147483647, %v2810
        %vm3048 = vcmp.eq.f32.partialorder %v3047, 8.507059e+37
        %v3049 = vand.u32 %v2810, 2147483648
        %v3050 = vor.u32 1.1754944e-38, %v3049
        %v3051 = vsel %vm3048, %v3050, %v3046
        %v3052 = vmul.f32 1.0, %v3051
        %v3053 = vrcp.pop %v2811
        %v3054 = vmul.f32 %v2811, %v3053
        %v3055 = vsub.f32 1.0, %v3054
        %v3056 = vmul.f32 %v3053, %v3055
        %v3057 = vadd.f32 %v3053, %v3056
        %vm3058 = vweird.f32 %v2811
        %vm3059 = vweird.f32 %v3053
        %vm3060 = vmor %vm3058, %vm3059
        %v3061 = vsel %vm3060, %v3053, %v3057
        %v3062 = vand.u32 2147483647, %v2811
        %vm3063 = vcmp.eq.f32.partialorder %v3062, 8.507059e+37
        %v3064 = vand.u32 %v2811, 2147483648
        %v3065 = vor.u32 1.1754944e-38, %v3064
        %v3066 = vsel %vm3063, %v3065, %v3061
        %v3067 = vmul.f32 1.0, %v3066
        %v3068 = vrcp.pop %v2812
        %v3069 = vmul.f32 %v2812, %v3068
        %v3070 = vsub.f32 1.0, %v3069
        %v3071 = vmul.f32 %v3068, %v3070
        %v3072 = vadd.f32 %v3068, %v3071
        %vm3073 = vweird.f32 %v2812
        %vm3074 = vweird.f32 %v3068
        %vm3075 = vmor %vm3073, %vm3074
        %v3076 = vsel %vm3075, %v3068, %v3072
        %v3077 = vand.u32 2147483647, %v2812
        %vm3078 = vcmp.eq.f32.partialorder %v3077, 8.507059e+37
        %v3079 = vand.u32 %v2812, 2147483648
        %v3080 = vor.u32 1.1754944e-38, %v3079
        %v3081 = vsel %vm3078, %v3080, %v3076
        %v3082 = vmul.f32 1.0, %v3081
        %v3083 = vrcp.pop %v2813
        %v3084 = vmul.f32 %v2813, %v3083
        %v3085 = vsub.f32 1.0, %v3084
        %v3086 = vmul.f32 %v3083, %v3085
        %v3087 = vadd.f32 %v3083, %v3086
        %vm3088 = vweird.f32 %v2813
        %vm3089 = vweird.f32 %v3083
        %vm3090 = vmor %vm3088, %vm3089
        %v3091 = vsel %vm3090, %v3083, %v3087
        %v3092 = vand.u32 2147483647, %v2813
        %vm3093 = vcmp.eq.f32.partialorder %v3092, 8.507059e+37
        %v3094 = vand.u32 %v2813, 2147483648
        %v3095 = vor.u32 1.1754944e-38, %v3094
        %v3096 = vsel %vm3093, %v3095, %v3091
        %v3097 = vmul.f32 1.0, %v3096
        %v3098 = vrcp.pop %v2814
        %v3099 = vmul.f32 %v2814, %v3098
        %v3100 = vsub.f32 1.0, %v3099
        %v3101 = vmul.f32 %v3098, %v3100
        %v3102 = vadd.f32 %v3098, %v3101
        %vm3103 = vweird.f32 %v2814
        %vm3104 = vweird.f32 %v3098
        %vm3105 = vmor %vm3103, %vm3104
        %v3106 = vsel %vm3105, %v3098, %v3102
        %v3107 = vand.u32 2147483647, %v2814
        %vm3108 = vcmp.eq.f32.partialorder %v3107, 8.507059e+37
        %v3109 = vand.u32 %v2814, 2147483648
        %v3110 = vor.u32 1.1754944e-38, %v3109
        %v3111 = vsel %vm3108, %v3110, %v3106
        %v3112 = vmul.f32 1.0, %v3111
        %v3113 = vrcp.pop %v2815
        %v3114 = vmul.f32 %v2815, %v3113
        %v3115 = vsub.f32 1.0, %v3114
        %v3116 = vmul.f32 %v3113, %v3115
        %v3117 = vadd.f32 %v3113, %v3116
        %vm3118 = vweird.f32 %v2815
        %vm3119 = vweird.f32 %v3113
        %vm3120 = vmor %vm3118, %vm3119
        %v3121 = vsel %vm3120, %v3113, %v3117
        %v3122 = vand.u32 2147483647, %v2815
        %vm3123 = vcmp.eq.f32.partialorder %v3122, 8.507059e+37
        %v3124 = vand.u32 %v2815, 2147483648
        %v3125 = vor.u32 1.1754944e-38, %v3124
        %v3126 = vsel %vm3123, %v3125, %v3121
        %v3127 = vmul.f32 1.0, %v3126
        %v3128 = vrcp.pop %v2816
        %v3129 = vmul.f32 %v2816, %v3128
        %v3130 = vsub.f32 1.0, %v3129
        %v3131 = vmul.f32 %v3128, %v3130
        %v3132 = vadd.f32 %v3128, %v3131
        %vm3133 = vweird.f32 %v2816
        %vm3134 = vweird.f32 %v3128
        %vm3135 = vmor %vm3133, %vm3134
        %v3136 = vsel %vm3135, %v3128, %v3132
        %v3137 = vand.u32 2147483647, %v2816
        %vm3138 = vcmp.eq.f32.partialorder %v3137, 8.507059e+37
        %v3139 = vand.u32 %v2816, 2147483648
        %v3140 = vor.u32 1.1754944e-38, %v3139
        %v3141 = vsel %vm3138, %v3140, %v3136
        %v3142 = vmul.f32 1.0, %v3141
        %v3143 = vrcp.pop %v2817
        %v3144 = vmul.f32 %v2817, %v3143
        %v3145 = vsub.f32 1.0, %v3144
        %v3146 = vmul.f32 %v3143, %v3145
        %v3147 = vadd.f32 %v3143, %v3146
        %vm3148 = vweird.f32 %v2817
        %vm3149 = vweird.f32 %v3143
        %vm3150 = vmor %vm3148, %vm3149
        %v3151 = vsel %vm3150, %v3143, %v3147
        %v3152 = vand.u32 2147483647, %v2817
        %vm3153 = vcmp.eq.f32.partialorder %v3152, 8.507059e+37
        %v3154 = vand.u32 %v2817, 2147483648
        %v3155 = vor.u32 1.1754944e-38, %v3154
        %v3156 = vsel %vm3153, %v3155, %v3151
        %v3157 = vmul.f32 1.0, %v3156
        %v3158 = vrcp.pop %v2818
        %v3159 = vmul.f32 %v2818, %v3158
        %v3160 = vsub.f32 1.0, %v3159
        %v3161 = vmul.f32 %v3158, %v3160
        %v3162 = vadd.f32 %v3158, %v3161
        %vm3163 = vweird.f32 %v2818
        %vm3164 = vweird.f32 %v3158
        %vm3165 = vmor %vm3163, %vm3164
        %v3166 = vsel %vm3165, %v3158, %v3162
        %v3167 = vand.u32 2147483647, %v2818
        %vm3168 = vcmp.eq.f32.partialorder %v3167, 8.507059e+37
        %v3169 = vand.u32 %v2818, 2147483648
        %v3170 = vor.u32 1.1754944e-38, %v3169
        %v3171 = vsel %vm3168, %v3170, %v3166
        %v3172 = vmul.f32 1.0, %v3171
        %v3173 = vrcp.pop %v2819
        %v3174 = vmul.f32 %v2819, %v3173
        %v3175 = vsub.f32 1.0, %v3174
        %v3176 = vmul.f32 %v3173, %v3175
        %v3177 = vadd.f32 %v3173, %v3176
        %vm3178 = vweird.f32 %v2819
        %vm3179 = vweird.f32 %v3173
        %vm3180 = vmor %vm3178, %vm3179
        %v3181 = vsel %vm3180, %v3173, %v3177
        %v3182 = vand.u32 2147483647, %v2819
        %vm3183 = vcmp.eq.f32.partialorder %v3182, 8.507059e+37
        %v3184 = vand.u32 %v2819, 2147483648
        %v3185 = vor.u32 1.1754944e-38, %v3184
        %v3186 = vsel %vm3183, %v3185, %v3181
        %v3187 = vmul.f32 1.0, %v3186
        %v3188 = vrcp.pop %v2820
        %v3189 = vmul.f32 %v2820, %v3188
        %v3190 = vsub.f32 1.0, %v3189
        %v3191 = vmul.f32 %v3188, %v3190
        %v3192 = vadd.f32 %v3188, %v3191
        %vm3193 = vweird.f32 %v2820
        %vm3194 = vweird.f32 %v3188
        %vm3195 = vmor %vm3193, %vm3194
        %v3196 = vsel %vm3195, %v3188, %v3192
        %v3197 = vand.u32 2147483647, %v2820
        %vm3198 = vcmp.eq.f32.partialorder %v3197, 8.507059e+37
        %v3199 = vand.u32 %v2820, 2147483648
        %v3200 = vor.u32 1.1754944e-38, %v3199
        %v3201 = vsel %vm3198, %v3200, %v3196
        %v3202 = vmul.f32 1.0, %v3201
        %v3203 = vrcp.pop %v2821
        %v3204 = vmul.f32 %v2821, %v3203
        %v3205 = vsub.f32 1.0, %v3204
        %v3206 = vmul.f32 %v3203, %v3205
        %v3207 = vadd.f32 %v3203, %v3206
        %vm3208 = vweird.f32 %v2821
        %vm3209 = vweird.f32 %v3203
        %vm3210 = vmor %vm3208, %vm3209
        %v3211 = vsel %vm3210, %v3203, %v3207
        %v3212 = vand.u32 2147483647, %v2821
        %vm3213 = vcmp.eq.f32.partialorder %v3212, 8.507059e+37
        %v3214 = vand.u32 %v2821, 2147483648
        %v3215 = vor.u32 1.1754944e-38, %v3214
        %v3216 = vsel %vm3213, %v3215, %v3211
        %v3217 = vmul.f32 1.0, %v3216
        %v3218 = vrcp.pop %v2822
        %v3219 = vmul.f32 %v2822, %v3218
        %v3220 = vsub.f32 1.0, %v3219
        %v3221 = vmul.f32 %v3218, %v3220
        %v3222 = vadd.f32 %v3218, %v3221
        %vm3223 = vweird.f32 %v2822
        %vm3224 = vweird.f32 %v3218
        %vm3225 = vmor %vm3223, %vm3224
        %v3226 = vsel %vm3225, %v3218, %v3222
        %v3227 = vand.u32 2147483647, %v2822
        %vm3228 = vcmp.eq.f32.partialorder %v3227, 8.507059e+37
        %v3229 = vand.u32 %v2822, 2147483648
        %v3230 = vor.u32 1.1754944e-38, %v3229
        %v3231 = vsel %vm3228, %v3230, %v3226
        %v3232 = vmul.f32 1.0, %v3231
        %v3233 = vrcp.pop %v2823
        %v3234 = vmul.f32 %v2823, %v3233
        %v3235 = vsub.f32 1.0, %v3234
        %v3236 = vmul.f32 %v3233, %v3235
        %v3237 = vadd.f32 %v3233, %v3236
        %vm3238 = vweird.f32 %v2823
        %vm3239 = vweird.f32 %v3233
        %vm3240 = vmor %vm3238, %vm3239
        %v3241 = vsel %vm3240, %v3233, %v3237
        %v3242 = vand.u32 2147483647, %v2823
        %vm3243 = vcmp.eq.f32.partialorder %v3242, 8.507059e+37
        %v3244 = vand.u32 %v2823, 2147483648
        %v3245 = vor.u32 1.1754944e-38, %v3244
        %v3246 = vsel %vm3243, %v3245, %v3241
        %v3247 = vmul.f32 1.0, %v3246
        %v3248 = vrcp.pop %v2824
        %v3249 = vmul.f32 %v2824, %v3248
        %v3250 = vsub.f32 1.0, %v3249
        %v3251 = vmul.f32 %v3248, %v3250
        %v3252 = vadd.f32 %v3248, %v3251
        %vm3253 = vweird.f32 %v2824
        %vm3254 = vweird.f32 %v3248
        %vm3255 = vmor %vm3253, %vm3254
        %v3256 = vsel %vm3255, %v3248, %v3252
        %v3257 = vand.u32 2147483647, %v2824
        %vm3258 = vcmp.eq.f32.partialorder %v3257, 8.507059e+37
        %v3259 = vand.u32 %v2824, 2147483648
        %v3260 = vor.u32 1.1754944e-38, %v3259
        %v3261 = vsel %vm3258, %v3260, %v3256
        %v3262 = vmul.f32 1.0, %v3261
        %v3263 = vrcp.pop %v2825
        %v3264 = vmul.f32 %v2825, %v3263
        %v3265 = vsub.f32 1.0, %v3264
        %v3266 = vmul.f32 %v3263, %v3265
        %v3267 = vadd.f32 %v3263, %v3266
        %vm3268 = vweird.f32 %v2825
        %vm3269 = vweird.f32 %v3263
        %vm3270 = vmor %vm3268, %vm3269
        %v3271 = vsel %vm3270, %v3263, %v3267
        %v3272 = vand.u32 2147483647, %v2825
        %vm3273 = vcmp.eq.f32.partialorder %v3272, 8.507059e+37
        %v3274 = vand.u32 %v2825, 2147483648
        %v3275 = vor.u32 1.1754944e-38, %v3274
        %v3276 = vsel %vm3273, %v3275, %v3271
        %v3277 = vmul.f32 1.0, %v3276
        %v3278 = vrcp.pop %v2826
        %v3279 = vmul.f32 %v2826, %v3278
        %v3280 = vsub.f32 1.0, %v3279
        %v3281 = vmul.f32 %v3278, %v3280
        %v3282 = vadd.f32 %v3278, %v3281
        %vm3283 = vweird.f32 %v2826
        %vm3284 = vweird.f32 %v3278
        %vm3285 = vmor %vm3283, %vm3284
        %v3286 = vsel %vm3285, %v3278, %v3282
        %v3287 = vand.u32 2147483647, %v2826
        %vm3288 = vcmp.eq.f32.partialorder %v3287, 8.507059e+37
        %v3289 = vand.u32 %v2826, 2147483648
        %v3290 = vor.u32 1.1754944e-38, %v3289
        %v3291 = vsel %vm3288, %v3290, %v3286
        %v3292 = vmul.f32 1.0, %v3291
        %v3293 = vrcp.pop %v2827
        %v3294 = vmul.f32 %v2827, %v3293
        %v3295 = vsub.f32 1.0, %v3294
        %v3296 = vmul.f32 %v3293, %v3295
        %v3297 = vadd.f32 %v3293, %v3296
        %vm3298 = vweird.f32 %v2827
        %vm3299 = vweird.f32 %v3293
        %vm3300 = vmor %vm3298, %vm3299
        %v3301 = vsel %vm3300, %v3293, %v3297
        %v3302 = vand.u32 2147483647, %v2827
        %vm3303 = vcmp.eq.f32.partialorder %v3302, 8.507059e+37
        %v3304 = vand.u32 %v2827, 2147483648
        %v3305 = vor.u32 1.1754944e-38, %v3304
        %v3306 = vsel %vm3303, %v3305, %v3301
        %v3307 = vmul.f32 1.0, %v3306
        %3309 = vset.pattern.permute.xlu0 0
        %3310 = vperm.xlu0 %3309, %v2842
        %v3311 = vpop.permute.xlu0 %3310
        %3314 = vset.pattern.permute.xlu0 0
        %3315 = vperm.xlu0 %3314, %v2857
        %v3316 = vpop.permute.xlu0 %3315
        %3319 = vset.pattern.permute.xlu0 0
        %3320 = vperm.xlu0 %3319, %v2872
        %v3321 = vpop.permute.xlu0 %3320
        %3324 = vset.pattern.permute.xlu0 0
        %3325 = vperm.xlu0 %3324, %v2887
        %v3326 = vpop.permute.xlu0 %3325
        %3329 = vset.pattern.permute.xlu0 0
        %3330 = vperm.xlu0 %3329, %v2902
        %v3331 = vpop.permute.xlu0 %3330
        %3334 = vset.pattern.permute.xlu0 0
        %3335 = vperm.xlu0 %3334, %v2917
        %v3336 = vpop.permute.xlu0 %3335
        %3339 = vset.pattern.permute.xlu0 0
        %3340 = vperm.xlu0 %3339, %v2932
        %v3341 = vpop.permute.xlu0 %3340
        %3344 = vset.pattern.permute.xlu0 0
        %3345 = vperm.xlu0 %3344, %v2947
        %v3346 = vpop.permute.xlu0 %3345
        %3349 = vset.pattern.permute.xlu0 0
        %3350 = vperm.xlu0 %3349, %v2962
        %v3351 = vpop.permute.xlu0 %3350
        %3354 = vset.pattern.permute.xlu0 0
        %3355 = vperm.xlu0 %3354, %v2977
        %v3356 = vpop.permute.xlu0 %3355
        %3359 = vset.pattern.permute.xlu0 0
        %3360 = vperm.xlu0 %3359, %v2992
        %v3361 = vpop.permute.xlu0 %3360
        %3364 = vset.pattern.permute.xlu0 0
        %3365 = vperm.xlu0 %3364, %v3007
        %v3366 = vpop.permute.xlu0 %3365
        %3369 = vset.pattern.permute.xlu0 0
        %3370 = vperm.xlu0 %3369, %v3022
        %v3371 = vpop.permute.xlu0 %3370
        %3374 = vset.pattern.permute.xlu0 0
        %3375 = vperm.xlu0 %3374, %v3037
        %v3376 = vpop.permute.xlu0 %3375
        %3379 = vset.pattern.permute.xlu0 0
        %3380 = vperm.xlu0 %3379, %v3052
        %v3381 = vpop.permute.xlu0 %3380
        %3384 = vset.pattern.permute.xlu0 0
        %3385 = vperm.xlu0 %3384, %v3067
        %v3386 = vpop.permute.xlu0 %3385
        %3389 = vset.pattern.permute.xlu0 0
        %3390 = vperm.xlu0 %3389, %v3082
        %v3391 = vpop.permute.xlu0 %3390
        %3394 = vset.pattern.permute.xlu0 0
        %3395 = vperm.xlu0 %3394, %v3097
        %v3396 = vpop.permute.xlu0 %3395
        %3399 = vset.pattern.permute.xlu0 0
        %3400 = vperm.xlu0 %3399, %v3112
        %v3401 = vpop.permute.xlu0 %3400
        %3404 = vset.pattern.permute.xlu0 0
        %3405 = vperm.xlu0 %3404, %v3127
        %v3406 = vpop.permute.xlu0 %3405
        %3409 = vset.pattern.permute.xlu0 0
        %3410 = vperm.xlu0 %3409, %v3142
        %v3411 = vpop.permute.xlu0 %3410
        %3414 = vset.pattern.permute.xlu0 0
        %3415 = vperm.xlu0 %3414, %v3157
        %v3416 = vpop.permute.xlu0 %3415
        %3419 = vset.pattern.permute.xlu0 0
        %3420 = vperm.xlu0 %3419, %v3172
        %v3421 = vpop.permute.xlu0 %3420
        %3424 = vset.pattern.permute.xlu0 0
        %3425 = vperm.xlu0 %3424, %v3187
        %v3426 = vpop.permute.xlu0 %3425
        %3429 = vset.pattern.permute.xlu0 0
        %3430 = vperm.xlu0 %3429, %v3202
        %v3431 = vpop.permute.xlu0 %3430
        %3434 = vset.pattern.permute.xlu0 0
        %3435 = vperm.xlu0 %3434, %v3217
        %v3436 = vpop.permute.xlu0 %3435
        %3439 = vset.pattern.permute.xlu0 0
        %3440 = vperm.xlu0 %3439, %v3232
        %v3441 = vpop.permute.xlu0 %3440
        %3444 = vset.pattern.permute.xlu0 0
        %3445 = vperm.xlu0 %3444, %v3247
        %v3446 = vpop.permute.xlu0 %3445
        %3449 = vset.pattern.permute.xlu0 0
        %3450 = vperm.xlu0 %3449, %v3262
        %v3451 = vpop.permute.xlu0 %3450
        %3454 = vset.pattern.permute.xlu0 0
        %3455 = vperm.xlu0 %3454, %v3277
        %v3456 = vpop.permute.xlu0 %3455
        %3459 = vset.pattern.permute.xlu0 0
        %3460 = vperm.xlu0 %3459, %v3292
        %v3461 = vpop.permute.xlu0 %3460
        %3464 = vset.pattern.permute.xlu0 0
        %3465 = vperm.xlu0 %3464, %v3307
        %v3466 = vpop.permute.xlu0 %3465
        %v3468 = vmul.f32 %v1886, %v3311
        %v3469 = vmul.f32 %v2064, %v3311
        %v3470 = vmul.f32 %v1888, %v3316
        %v3471 = vmul.f32 %v2066, %v3316
        %v3472 = vmul.f32 %v1891, %v3321
        %v3473 = vmul.f32 %v2069, %v3321
        %v3474 = vmul.f32 %v1893, %v3326
        %v3475 = vmul.f32 %v2071, %v3326
        %v3476 = vmul.f32 %v1896, %v3331
        %v3477 = vmul.f32 %v2074, %v3331
        %v3478 = vmul.f32 %v1898, %v3336
        %v3479 = vmul.f32 %v2076, %v3336
        %v3480 = vmul.f32 %v1901, %v3341
        %v3481 = vmul.f32 %v2079, %v3341
        %v3482 = vmul.f32 %v1903, %v3346
        %v3483 = vmul.f32 %v2081, %v3346
        %v3484 = vmul.f32 %v1906, %v3351
        %v3485 = vmul.f32 %v2084, %v3351
        %v3486 = vmul.f32 %v1908, %v3356
        %v3487 = vmul.f32 %v2086, %v3356
        %v3488 = vmul.f32 %v1911, %v3361
        %v3489 = vmul.f32 %v2089, %v3361
        %v3490 = vmul.f32 %v1913, %v3366
        %v3491 = vmul.f32 %v2091, %v3366
        %v3492 = vmul.f32 %v1916, %v3371
        %v3493 = vmul.f32 %v2094, %v3371
        %v3494 = vmul.f32 %v1918, %v3376
        %v3495 = vmul.f32 %v2096, %v3376
        %v3496 = vmul.f32 %v1921, %v3381
        %v3497 = vmul.f32 %v2099, %v3381
        %v3498 = vmul.f32 %v1923, %v3386
        %v3499 = vmul.f32 %v2101, %v3386
        %v3500 = vmul.f32 %v1926, %v3391
        %v3501 = vmul.f32 %v2104, %v3391
        %v3502 = vmul.f32 %v1928, %v3396
        %v3503 = vmul.f32 %v2106, %v3396
        %v3504 = vmul.f32 %v1931, %v3401
        %v3505 = vmul.f32 %v2109, %v3401
        %v3506 = vmul.f32 %v1933, %v3406
        %v3507 = vmul.f32 %v2111, %v3406
        %v3508 = vmul.f32 %v1936, %v3411
        %v3509 = vmul.f32 %v2114, %v3411
        %v3510 = vmul.f32 %v1938, %v3416
        %v3511 = vmul.f32 %v2116, %v3416
        %v3512 = vmul.f32 %v1941, %v3421
        %v3513 = vmul.f32 %v2119, %v3421
        %v3514 = vmul.f32 %v1943, %v3426
        %v3515 = vmul.f32 %v2121, %v3426
        %v3516 = vmul.f32 %v1946, %v3431
        %v3517 = vmul.f32 %v2124, %v3431
        %v3518 = vmul.f32 %v1948, %v3436
        %v3519 = vmul.f32 %v2126, %v3436
        %v3520 = vmul.f32 %v1951, %v3441
        %v3521 = vmul.f32 %v2129, %v3441
        %v3522 = vmul.f32 %v1953, %v3446
        %v3523 = vmul.f32 %v2131, %v3446
        %v3524 = vmul.f32 %v1956, %v3451
        %v3525 = vmul.f32 %v2134, %v3451
        %v3526 = vmul.f32 %v1958, %v3456
        %v3527 = vmul.f32 %v2136, %v3456
        %v3528 = vmul.f32 %v1961, %v3461
        %v3529 = vmul.f32 %v2139, %v3461
        %v3530 = vmul.f32 %v1963, %v3466
        %v3531 = vmul.f32 %v2141, %v3466
        %v3532 = vadd.f32 %v3468, %v340
        %v3533 = vadd.f32 %v3469, %v341
        %v3534 = vadd.f32 %v3470, %v342
        %v3535 = vadd.f32 %v3471, %v343
        %v3536 = vadd.f32 %v3472, %v344
        %v3537 = vadd.f32 %v3473, %v345
        %v3538 = vadd.f32 %v3474, %v346
        %v3539 = vadd.f32 %v3475, %v347
        %v3540 = vadd.f32 %v3476, %v348
        %v3541 = vadd.f32 %v3477, %v349
        %v3542 = vadd.f32 %v3478, %v350
        %v3543 = vadd.f32 %v3479, %v351
        %v3544 = vadd.f32 %v3480, %v352
        %v3545 = vadd.f32 %v3481, %v353
        %v3546 = vadd.f32 %v3482, %v354
        %v3547 = vadd.f32 %v3483, %v355
        %v3548 = vadd.f32 %v3484, %v356
        %v3549 = vadd.f32 %v3485, %v357
        %v3550 = vadd.f32 %v3486, %v358
        %v3551 = vadd.f32 %v3487, %v359
        %v3552 = vadd.f32 %v3488, %v360
        %v3553 = vadd.f32 %v3489, %v361
        %v3554 = vadd.f32 %v3490, %v362
        %v3555 = vadd.f32 %v3491, %v363
        %v3556 = vadd.f32 %v3492, %v364
        %v3557 = vadd.f32 %v3493, %v365
        %v3558 = vadd.f32 %v3494, %v366
        %v3559 = vadd.f32 %v3495, %v367
        %v3560 = vadd.f32 %v3496, %v368
        %v3561 = vadd.f32 %v3497, %v369
        %v3562 = vadd.f32 %v3498, %v370
        %v3563 = vadd.f32 %v3499, %v371
        %v3564 = vadd.f32 %v3500, %v372
        %v3565 = vadd.f32 %v3501, %v373
        %v3566 = vadd.f32 %v3502, %v374
        %v3567 = vadd.f32 %v3503, %v375
        %v3568 = vadd.f32 %v3504, %v376
        %v3569 = vadd.f32 %v3505, %v377
        %v3570 = vadd.f32 %v3506, %v378
        %v3571 = vadd.f32 %v3507, %v379
        %v3572 = vadd.f32 %v3508, %v380
        %v3573 = vadd.f32 %v3509, %v381
        %v3574 = vadd.f32 %v3510, %v382
        %v3575 = vadd.f32 %v3511, %v383
        %v3576 = vadd.f32 %v3512, %v384
        %v3577 = vadd.f32 %v3513, %v385
        %v3578 = vadd.f32 %v3514, %v386
        %v3579 = vadd.f32 %v3515, %v387
        %v3580 = vadd.f32 %v3516, %v388
        %v3581 = vadd.f32 %v3517, %v389
        %v3582 = vadd.f32 %v3518, %v390
        %v3583 = vadd.f32 %v3519, %v391
        %v3584 = vadd.f32 %v3520, %v392
        %v3585 = vadd.f32 %v3521, %v393
        %v3586 = vadd.f32 %v3522, %v394
        %v3587 = vadd.f32 %v3523, %v395
        %v3588 = vadd.f32 %v3524, %v396
        %v3589 = vadd.f32 %v3525, %v397
        %v3590 = vadd.f32 %v3526, %v398
        %v3591 = vadd.f32 %v3527, %v399
        %v3592 = vadd.f32 %v3528, %v400
        %v3593 = vadd.f32 %v3529, %v401
        %v3594 = vadd.f32 %v3530, %v402
        %v3595 = vadd.f32 %v3531, %v403
        %vm3596 = vcmp.gt.f32.partialorder %v3532, 0.0
        %vm3597 = vcmp.gt.f32.partialorder %v3533, 0.0
        %vm3598 = vcmp.gt.f32.partialorder %v3534, 0.0
        %vm3599 = vcmp.gt.f32.partialorder %v3535, 0.0
        %vm3600 = vcmp.gt.f32.partialorder %v3536, 0.0
        %vm3601 = vcmp.gt.f32.partialorder %v3537, 0.0
        %vm3602 = vcmp.gt.f32.partialorder %v3538, 0.0
        %vm3603 = vcmp.gt.f32.partialorder %v3539, 0.0
        %vm3604 = vcmp.gt.f32.partialorder %v3540, 0.0
        %vm3605 = vcmp.gt.f32.partialorder %v3541, 0.0
        %vm3606 = vcmp.gt.f32.partialorder %v3542, 0.0
        %vm3607 = vcmp.gt.f32.partialorder %v3543, 0.0
        %vm3608 = vcmp.gt.f32.partialorder %v3544, 0.0
        %vm3609 = vcmp.gt.f32.partialorder %v3545, 0.0
        %vm3610 = vcmp.gt.f32.partialorder %v3546, 0.0
        %vm3611 = vcmp.gt.f32.partialorder %v3547, 0.0
        %vm3612 = vcmp.gt.f32.partialorder %v3548, 0.0
        %vm3613 = vcmp.gt.f32.partialorder %v3549, 0.0
        %vm3614 = vcmp.gt.f32.partialorder %v3550, 0.0
        %vm3615 = vcmp.gt.f32.partialorder %v3551, 0.0
        %vm3616 = vcmp.gt.f32.partialorder %v3552, 0.0
        %vm3617 = vcmp.gt.f32.partialorder %v3553, 0.0
        %vm3618 = vcmp.gt.f32.partialorder %v3554, 0.0
        %vm3619 = vcmp.gt.f32.partialorder %v3555, 0.0
        %vm3620 = vcmp.gt.f32.partialorder %v3556, 0.0
        %vm3621 = vcmp.gt.f32.partialorder %v3557, 0.0
        %vm3622 = vcmp.gt.f32.partialorder %v3558, 0.0
        %vm3623 = vcmp.gt.f32.partialorder %v3559, 0.0
        %vm3624 = vcmp.gt.f32.partialorder %v3560, 0.0
        %vm3625 = vcmp.gt.f32.partialorder %v3561, 0.0
        %vm3626 = vcmp.gt.f32.partialorder %v3562, 0.0
        %vm3627 = vcmp.gt.f32.partialorder %v3563, 0.0
        %vm3628 = vcmp.gt.f32.partialorder %v3564, 0.0
        %vm3629 = vcmp.gt.f32.partialorder %v3565, 0.0
        %vm3630 = vcmp.gt.f32.partialorder %v3566, 0.0
        %vm3631 = vcmp.gt.f32.partialorder %v3567, 0.0
        %vm3632 = vcmp.gt.f32.partialorder %v3568, 0.0
        %vm3633 = vcmp.gt.f32.partialorder %v3569, 0.0
        %vm3634 = vcmp.gt.f32.partialorder %v3570, 0.0
        %vm3635 = vcmp.gt.f32.partialorder %v3571, 0.0
        %vm3636 = vcmp.gt.f32.partialorder %v3572, 0.0
        %vm3637 = vcmp.gt.f32.partialorder %v3573, 0.0
        %vm3638 = vcmp.gt.f32.partialorder %v3574, 0.0
        %vm3639 = vcmp.gt.f32.partialorder %v3575, 0.0
        %vm3640 = vcmp.gt.f32.partialorder %v3576, 0.0
        %vm3641 = vcmp.gt.f32.partialorder %v3577, 0.0
        %vm3642 = vcmp.gt.f32.partialorder %v3578, 0.0
        %vm3643 = vcmp.gt.f32.partialorder %v3579, 0.0
        %vm3644 = vcmp.gt.f32.partialorder %v3580, 0.0
        %vm3645 = vcmp.gt.f32.partialorder %v3581, 0.0
        %vm3646 = vcmp.gt.f32.partialorder %v3582, 0.0
        %vm3647 = vcmp.gt.f32.partialorder %v3583, 0.0
        %vm3648 = vcmp.gt.f32.partialorder %v3584, 0.0
        %vm3649 = vcmp.gt.f32.partialorder %v3585, 0.0
        %vm3650 = vcmp.gt.f32.partialorder %v3586, 0.0
        %vm3651 = vcmp.gt.f32.partialorder %v3587, 0.0
        %vm3652 = vcmp.gt.f32.partialorder %v3588, 0.0
        %vm3653 = vcmp.gt.f32.partialorder %v3589, 0.0
        %vm3654 = vcmp.gt.f32.partialorder %v3590, 0.0
        %vm3655 = vcmp.gt.f32.partialorder %v3591, 0.0
        %vm3656 = vcmp.gt.f32.partialorder %v3592, 0.0
        %vm3657 = vcmp.gt.f32.partialorder %v3593, 0.0
        %vm3658 = vcmp.gt.f32.partialorder %v3594, 0.0
        %vm3659 = vcmp.gt.f32.partialorder %v3595, 0.0
        %v3660 = vstv %s405
        %v3661 = vmul.f32 %v3660, %v3532
        %v3662 = vmul.f32 %v3660, %v3533
        %v3663 = vmul.f32 %v3660, %v3534
        %v3664 = vmul.f32 %v3660, %v3535
        %v3665 = vmul.f32 %v3660, %v3536
        %v3666 = vmul.f32 %v3660, %v3537
        %v3667 = vmul.f32 %v3660, %v3538
        %v3668 = vmul.f32 %v3660, %v3539
        %v3669 = vmul.f32 %v3660, %v3540
        %v3670 = vmul.f32 %v3660, %v3541
        %v3671 = vmul.f32 %v3660, %v3542
        %v3672 = vmul.f32 %v3660, %v3543
        %v3673 = vmul.f32 %v3660, %v3544
        %v3674 = vmul.f32 %v3660, %v3545
        %v3675 = vmul.f32 %v3660, %v3546
        %v3676 = vmul.f32 %v3660, %v3547
        %v3677 = vmul.f32 %v3660, %v3548
        %v3678 = vmul.f32 %v3660, %v3549
        %v3679 = vmul.f32 %v3660, %v3550
        %v3680 = vmul.f32 %v3660, %v3551
        %v3681 = vmul.f32 %v3660, %v3552
        %v3682 = vmul.f32 %v3660, %v3553
        %v3683 = vmul.f32 %v3660, %v3554
        %v3684 = vmul.f32 %v3660, %v3555
        %v3685 = vmul.f32 %v3660, %v3556
        %v3686 = vmul.f32 %v3660, %v3557
        %v3687 = vmul.f32 %v3660, %v3558
        %v3688 = vmul.f32 %v3660, %v3559
        %v3689 = vmul.f32 %v3660, %v3560
        %v3690 = vmul.f32 %v3660, %v3561
        %v3691 = vmul.f32 %v3660, %v3562
        %v3692 = vmul.f32 %v3660, %v3563
        %v3693 = vmul.f32 %v3660, %v3564
        %v3694 = vmul.f32 %v3660, %v3565
        %v3695 = vmul.f32 %v3660, %v3566
        %v3696 = vmul.f32 %v3660, %v3567
        %v3697 = vmul.f32 %v3660, %v3568
        %v3698 = vmul.f32 %v3660, %v3569
        %v3699 = vmul.f32 %v3660, %v3570
        %v3700 = vmul.f32 %v3660, %v3571
        %v3701 = vmul.f32 %v3660, %v3572
        %v3702 = vmul.f32 %v3660, %v3573
        %v3703 = vmul.f32 %v3660, %v3574
        %v3704 = vmul.f32 %v3660, %v3575
        %v3705 = vmul.f32 %v3660, %v3576
        %v3706 = vmul.f32 %v3660, %v3577
        %v3707 = vmul.f32 %v3660, %v3578
        %v3708 = vmul.f32 %v3660, %v3579
        %v3709 = vmul.f32 %v3660, %v3580
        %v3710 = vmul.f32 %v3660, %v3581
        %v3711 = vmul.f32 %v3660, %v3582
        %v3712 = vmul.f32 %v3660, %v3583
        %v3713 = vmul.f32 %v3660, %v3584
        %v3714 = vmul.f32 %v3660, %v3585
        %v3715 = vmul.f32 %v3660, %v3586
        %v3716 = vmul.f32 %v3660, %v3587
        %v3717 = vmul.f32 %v3660, %v3588
        %v3718 = vmul.f32 %v3660, %v3589
        %v3719 = vmul.f32 %v3660, %v3590
        %v3720 = vmul.f32 %v3660, %v3591
        %v3721 = vmul.f32 %v3660, %v3592
        %v3722 = vmul.f32 %v3660, %v3593
        %v3723 = vmul.f32 %v3660, %v3594
        %v3724 = vmul.f32 %v3660, %v3595
        %v3725 = vsel %vm3596, %v3532, %v3661
        %v3726 = vsel %vm3597, %v3533, %v3662
        %v3727 = vsel %vm3598, %v3534, %v3663
        %v3728 = vsel %vm3599, %v3535, %v3664
        %v3729 = vsel %vm3600, %v3536, %v3665
        %v3730 = vsel %vm3601, %v3537, %v3666
        %v3731 = vsel %vm3602, %v3538, %v3667
        %v3732 = vsel %vm3603, %v3539, %v3668
        %v3733 = vsel %vm3604, %v3540, %v3669
        %v3734 = vsel %vm3605, %v3541, %v3670
        %v3735 = vsel %vm3606, %v3542, %v3671
        %v3736 = vsel %vm3607, %v3543, %v3672
        %v3737 = vsel %vm3608, %v3544, %v3673
        %v3738 = vsel %vm3609, %v3545, %v3674
        %v3739 = vsel %vm3610, %v3546, %v3675
        %v3740 = vsel %vm3611, %v3547, %v3676
        %v3741 = vsel %vm3612, %v3548, %v3677
        %v3742 = vsel %vm3613, %v3549, %v3678
        %v3743 = vsel %vm3614, %v3550, %v3679
        %v3744 = vsel %vm3615, %v3551, %v3680
        %v3745 = vsel %vm3616, %v3552, %v3681
        %v3746 = vsel %vm3617, %v3553, %v3682
        %v3747 = vsel %vm3618, %v3554, %v3683
        %v3748 = vsel %vm3619, %v3555, %v3684
        %v3749 = vsel %vm3620, %v3556, %v3685
        %v3750 = vsel %vm3621, %v3557, %v3686
        %v3751 = vsel %vm3622, %v3558, %v3687
        %v3752 = vsel %vm3623, %v3559, %v3688
        %v3753 = vsel %vm3624, %v3560, %v3689
        %v3754 = vsel %vm3625, %v3561, %v3690
        %v3755 = vsel %vm3626, %v3562, %v3691
        %v3756 = vsel %vm3627, %v3563, %v3692
        %v3757 = vsel %vm3628, %v3564, %v3693
        %v3758 = vsel %vm3629, %v3565, %v3694
        %v3759 = vsel %vm3630, %v3566, %v3695
        %v3760 = vsel %vm3631, %v3567, %v3696
        %v3761 = vsel %vm3632, %v3568, %v3697
        %v3762 = vsel %vm3633, %v3569, %v3698
        %v3763 = vsel %vm3634, %v3570, %v3699
        %v3764 = vsel %vm3635, %v3571, %v3700
        %v3765 = vsel %vm3636, %v3572, %v3701
        %v3766 = vsel %vm3637, %v3573, %v3702
        %v3767 = vsel %vm3638, %v3574, %v3703
        %v3768 = vsel %vm3639, %v3575, %v3704
        %v3769 = vsel %vm3640, %v3576, %v3705
        %v3770 = vsel %vm3641, %v3577, %v3706
        %v3771 = vsel %vm3642, %v3578, %v3707
        %v3772 = vsel %vm3643, %v3579, %v3708
        %v3773 = vsel %vm3644, %v3580, %v3709
        %v3774 = vsel %vm3645, %v3581, %v3710
        %v3775 = vsel %vm3646, %v3582, %v3711
        %v3776 = vsel %vm3647, %v3583, %v3712
        %v3777 = vsel %vm3648, %v3584, %v3713
        %v3778 = vsel %vm3649, %v3585, %v3714
        %v3779 = vsel %vm3650, %v3586, %v3715
        %v3780 = vsel %vm3651, %v3587, %v3716
        %v3781 = vsel %vm3652, %v3588, %v3717
        %v3782 = vsel %vm3653, %v3589, %v3718
        %v3783 = vsel %vm3654, %v3590, %v3719
        %v3784 = vsel %vm3655, %v3591, %v3720
        %v3785 = vsel %vm3656, %v3592, %v3721
        %v3786 = vsel %vm3657, %v3593, %v3722
        %v3787 = vsel %vm3658, %v3594, %v3723
        %v3788 = vsel %vm3659, %v3595, %v3724
        %3789 = vst [vmem:[%s339] sm:$0xff] %v3725
        %3790 = vst [vmem:[%s339 + $0x8] sm:$0xff] %v3726
        %3791 = vst [vmem:[%s339 + $0x10] sm:$0xff] %v3727
        %3792 = vst [vmem:[%s339 + $0x18] sm:$0xff] %v3728
        %3793 = vst [vmem:[%s339 + $0x20] sm:$0xff] %v3729
        %3794 = vst [vmem:[%s339 + $0x28] sm:$0xff] %v3730
        %3795 = vst [vmem:[%s339 + $0x30] sm:$0xff] %v3731
        %3796 = vst [vmem:[%s339 + $0x38] sm:$0xff] %v3732
        %3797 = vst [vmem:[%s339 + $0x40] sm:$0xff] %v3733
        %3798 = vst [vmem:[%s339 + $0x48] sm:$0xff] %v3734
        %3799 = vst [vmem:[%s339 + $0x50] sm:$0xff] %v3735
        %3800 = vst [vmem:[%s339 + $0x58] sm:$0xff] %v3736
        %3801 = vst [vmem:[%s339 + $0x60] sm:$0xff] %v3737
        %3802 = vst [vmem:[%s339 + $0x68] sm:$0xff] %v3738
        %3803 = vst [vmem:[%s339 + $0x70] sm:$0xff] %v3739
        %3804 = vst [vmem:[%s339 + $0x78] sm:$0xff] %v3740
        %3805 = vst [vmem:[%s339 + $0x80] sm:$0xff] %v3741
        %3806 = vst [vmem:[%s339 + $0x88] sm:$0xff] %v3742
        %3807 = vst [vmem:[%s339 + $0x90] sm:$0xff] %v3743
        %3808 = vst [vmem:[%s339 + $0x98] sm:$0xff] %v3744
        %3809 = vst [vmem:[%s339 + $0xa0] sm:$0xff] %v3745
        %3810 = vst [vmem:[%s339 + $0xa8] sm:$0xff] %v3746
        %3811 = vst [vmem:[%s339 + $0xb0] sm:$0xff] %v3747
        %3812 = vst [vmem:[%s339 + $0xb8] sm:$0xff] %v3748
        %3813 = vst [vmem:[%s339 + $0xc0] sm:$0xff] %v3749
        %3814 = vst [vmem:[%s339 + $0xc8] sm:$0xff] %v3750
        %3815 = vst [vmem:[%s339 + $0xd0] sm:$0xff] %v3751
        %3816 = vst [vmem:[%s339 + $0xd8] sm:$0xff] %v3752
        %3817 = vst [vmem:[%s339 + $0xe0] sm:$0xff] %v3753
        %3818 = vst [vmem:[%s339 + $0xe8] sm:$0xff] %v3754
        %3819 = vst [vmem:[%s339 + $0xf0] sm:$0xff] %v3755
        %3820 = vst [vmem:[%s339 + $0xf8] sm:$0xff] %v3756
        %3821 = vst [vmem:[%s339 + $0x100] sm:$0xff] %v3757
        %3822 = vst [vmem:[%s339 + $0x108] sm:$0xff] %v3758
        %3823 = vst [vmem:[%s339 + $0x110] sm:$0xff] %v3759
        %3824 = vst [vmem:[%s339 + $0x118] sm:$0xff] %v3760
        %3825 = vst [vmem:[%s339 + $0x120] sm:$0xff] %v3761
        %3826 = vst [vmem:[%s339 + $0x128] sm:$0xff] %v3762
        %3827 = vst [vmem:[%s339 + $0x130] sm:$0xff] %v3763
        %3828 = vst [vmem:[%s339 + $0x138] sm:$0xff] %v3764
        %3829 = vst [vmem:[%s339 + $0x140] sm:$0xff] %v3765
        %3830 = vst [vmem:[%s339 + $0x148] sm:$0xff] %v3766
        %3831 = vst [vmem:[%s339 + $0x150] sm:$0xff] %v3767
        %3832 = vst [vmem:[%s339 + $0x158] sm:$0xff] %v3768
        %3833 = vst [vmem:[%s339 + $0x160] sm:$0xff] %v3769
        %3834 = vst [vmem:[%s339 + $0x168] sm:$0xff] %v3770
        %3835 = vst [vmem:[%s339 + $0x170] sm:$0xff] %v3771
        %3836 = vst [vmem:[%s339 + $0x178] sm:$0xff] %v3772
        %3837 = vst [vmem:[%s339 + $0x180] sm:$0xff] %v3773
        %3838 = vst [vmem:[%s339 + $0x188] sm:$0xff] %v3774
        %3839 = vst [vmem:[%s339 + $0x190] sm:$0xff] %v3775
        %3840 = vst [vmem:[%s339 + $0x198] sm:$0xff] %v3776
        %3841 = vst [vmem:[%s339 + $0x1a0] sm:$0xff] %v3777
        %3842 = vst [vmem:[%s339 + $0x1a8] sm:$0xff] %v3778
        %3843 = vst [vmem:[%s339 + $0x1b0] sm:$0xff] %v3779
        %3844 = vst [vmem:[%s339 + $0x1b8] sm:$0xff] %v3780
        %3845 = vst [vmem:[%s339 + $0x1c0] sm:$0xff] %v3781
        %3846 = vst [vmem:[%s339 + $0x1c8] sm:$0xff] %v3782
        %3847 = vst [vmem:[%s339 + $0x1d0] sm:$0xff] %v3783
        %3848 = vst [vmem:[%s339 + $0x1d8] sm:$0xff] %v3784
        %3849 = vst [vmem:[%s339 + $0x1e0] sm:$0xff] %v3785
        %3850 = vst [vmem:[%s339 + $0x1e8] sm:$0xff] %v3786
        %3851 = vst [vmem:[%s339 + $0x1f0] sm:$0xff] %v3787
        %3852 = vst [vmem:[%s339 + $0x1f8] sm:$0xff] %v3788
        %s3853 = sand.u32 %s207, 1
        %s3854 = scalar_lea.sflag [#allocation4], %s3853
        %s3855 = sand.u32 %s207, 1
        %s3856 = smul.addr %s3855, 512
        %s3857 = scalar_lea.vmem [#allocation7], %s3856
        // Predicated region
        $region61: #{tpu_custom_call.1} parent=51 // pred_check
          %p3858 = pneg %p217
        $region62: #{tpu_custom_call.1} parent=51 // pred_check_branch
          %3860 = sbr.rel (%p3858) target = $region64
        $region63: #{tpu_custom_call.1} parent=51 // pred_region
          %3862 = vsyncadd %s3854, 0
          %s3863 = smul.addr %s26, 64
          %s3864 = smul.addr %s3863, 8
          %s3865 = scalar_lea.hbm %s8, %s3864
          %s3866 = sshll.u32 %s3857, 4
          %s3867 = int_to_ptr.vmem [resolvable:$true] %s3866
          %s3868 = sshll.u32 %s3865, 4
          %s3869 = int_to_ptr.hbm [resolvable:$true] %s3868
          %3874 = dma.vmem_to_hbm [thread:$0]  %s3867, 8192, %s3869, %s3854, 256, 256, 16
        $region64: #{tpu_custom_call.1} parent=51 // pred_fallthru
          _
      $region52: #{tpu_custom_call.1} parent=5 // pred_fallthru
        _
      %p3875 = scmp.le.s32.totalorder 2, %s21
      // Predicated region
      $region65: #{tpu_custom_call.1} parent=5 // pred_check
        %p3876 = pneg %p3875
      $region66: #{tpu_custom_call.1} parent=5 // pred_check_branch
        %3878 = sbr.rel (%p3876) target = $region68
      $region67: #{tpu_custom_call.1} parent=5 // pred_region
        %s3879 = ssub.s32 %s21, 2
        // Predicated region
        $region69: #{tpu_custom_call.1} parent=67 // pred_check
          %p3880 = pneg %p223
        $region70: #{tpu_custom_call.1} parent=67 // pred_check_branch
          %3882 = sbr.rel (%p3880) target = $region72
        $region71: #{tpu_custom_call.1} parent=67 // pred_region
          %s3883 = sand.u32 %s208, 1
          %s3884 = scalar_lea.sflag [#allocation4], %s3883
          %s3885 = sand.u32 %s208, 1
          %s3886 = smul.addr %s3885, 512
          %s3887 = scalar_lea.vmem [#allocation7], %s3886
          %3889 = dma.done %s3884, 8192
        $region72: #{tpu_custom_call.1} parent=67 // pred_fallthru
          _
      $region68: #{tpu_custom_call.1} parent=5 // pred_fallthru
        _
    $region6: #{tpu_custom_call.1} parent=1 // loop_footer
      %s25 = sadd.s32 1, %s21
    $region7: #{tpu_custom_call.1} parent=1 // loop_footer_branch
      %20 = sbr.rel target = $region3
    $region8: #{tpu_custom_call.1} parent=1 // loop_exit
      _
    %3890 = vsyncpa [#allocation3], 1
    %s3891 = scalar_lea.sflag [#allocation3], 1
    %3892 = vsyncpa %s3891, 1
    %3893 = vsyncpa [#allocation4], 1
    %s3894 = scalar_lea.sflag [#allocation4], 1
    %3895 = vsyncpa %s3894, 1
    %3896 = vsyncpa [#allocation5], 1
    %s3897 = scalar_lea.sflag [#allocation5], 1
    %3898 = vsyncpa %s3897, 1

</llo_original>
